<compile_context>
chip_gen: v6e
topology: v6e:2x2x1
jax: 0.10.0
libtpu: 0.0.40
codegen_flags: <defaults>
</compile_context>

<pallas_src>
import math
import functools

import jax
import jax.numpy as jnp
from jax import lax
from jax.experimental import pallas as pl
from jax.experimental.pallas import tpu as pltpu


def _gelu(x):
    # TODO(synk): PyTorch nn.GELU() default is the exact erf form; the tanh approximation is
    # used here (guaranteed Mosaic lowering), max deviation ~1e-3.
    c = math.sqrt(2.0 / math.pi)
    return 0.5 * x * (1.0 + jnp.tanh(c * (x + 0.044715 * (x * x * x))))


def _tst_encoder_layer_kernel(src_ref, wqkv_ref, wo_ref,
                              wff1_ref, bff1_ref, wff2_ref, bff2_ref,
                              bn1s_ref, bn1b_ref, bn2s_ref, bn2b_ref,
                              out_ref, ctx_ref,
                              *, n_heads, d_k, d_v, b_blk, q_len, use_bf16):
    mm = jnp.bfloat16 if use_bf16 else jnp.float32
    d_model = src_ref.shape[-1]
    rows = b_blk * q_len
    hdk = n_heads * d_k
    hdv = n_heads * d_v

    # Flatten the batch block into one lane-dense row slab for all dense matmuls
    # (leading-dim merge only; the trailing (q_len, d_model) tiles are untouched).
    x = src_ref[...].reshape(rows, d_model)                       # [rows, d_model] f32

    # ---- fused QKV projection: one MXU matmul for all heads & tensors --------------------
    # 1/sqrt(d_k) is already folded into the W_Q columns of w_qkv on the host.
    qkv = jnp.dot(x.astype(mm), wqkv_ref[...].astype(mm),
                  preferred_element_type=jnp.float32)             # [rows, 2*hdk + hdv]

    qkv3 = qkv.reshape(b_blk, q_len, 2 * hdk + hdv)               # leading-dim split only
    q3 = qkv3[..., :hdk]                                          # [b_blk, q_len, hdk]
    k3 = qkv3[..., hdk:2 * hdk]
    v3 = qkv3[..., 2 * hdk:]

    # ---- example-batched attention, small static unroll over heads -----------------------
    # Softmax math stays f32; denominator reciprocal goes to the EUP slot.
    for h in range(n_heads):
        q_h = q3[..., h * d_k:(h + 1) * d_k].astype(mm)           # [b_blk, q_len, d_k]
        k_h = k3[..., h * d_k:(h + 1) * d_k].astype(mm)
        v_h = v3[..., h * d_v:(h + 1) * d_v].astype(mm)
        s = jnp.einsum("bqd,bkd->bqk", q_h, k_h,
                       preferred_element_type=jnp.float32)        # [b_blk, q_len, q_len]
        m = jnp.max(s, axis=-1, keepdims=True)
        e = jnp.exp(s - m)
        denom = jnp.sum(e, axis=-1, keepdims=True)
        p = e * pl.reciprocal(denom, approx=True)
        # Per-head context stored at a static lane offset of the VMEM scratch (no concat,
        # per-head temporaries die each iteration).
        ctx_ref[:, :, h * d_v:(h + 1) * d_v] = jnp.einsum(
            "bqk,bkd->bqd", p.astype(mm), v_h,
            preferred_element_type=jnp.float32)

    ctx = ctx_ref[...].reshape(rows, hdv)                         # [rows, hdv]

    # ---- output projection over all heads (single lane-dense matmul) ---------------------
    attn_out = jnp.dot(ctx.astype(mm), wo_ref[...].astype(mm),
                       preferred_element_type=jnp.float32)        # [rows, d_model]

    # ---- residual + BatchNorm1d(q_len) (pre-folded, pre-tiled dense scale/shift) ---------
    x1 = (x + attn_out) * bn1s_ref[...] + bn1b_ref[...]

    # ---- feed-forward: Linear -> GELU -> Linear (f32 activation math) --------------------
    hid = jnp.dot(x1.astype(mm), wff1_ref[...].astype(mm),
                  preferred_element_type=jnp.float32) + bff1_ref[...]
    hid = _gelu(hid)
    ff = jnp.dot(hid.astype(mm), wff2_ref[...].astype(mm),
                 preferred_element_type=jnp.float32) + bff2_ref[...]

    # ---- residual + second BatchNorm; single store per grid step -------------------------
    x2 = (x1 + ff) * bn2s_ref[...] + bn2b_ref[...]
    out_ref[...] = x2.reshape(b_blk, q_len, d_model).astype(out_ref.dtype)


def tst_encoder_layer(src, W_Q, W_K, W_V, W_O, W_F1, b_F1, W_F2, b_F2,
                      bn1_gamma, bn1_beta, bn1_mean, bn1_var,
                      bn2_gamma, bn2_beta, bn2_mean, bn2_var,
                      *, n_heads, d_k, d_v, eps=1e-5,
                      block_bs=None, use_bf16_matmul=False):
    """Eval-mode forward of _TSTEncoderLayer.

    src: [bs, q_len, d_model].  Weights are in PyTorch layout:
      W_Q/W_K: [H*d_k, d_model], W_V: [H*d_v, d_model], W_O: [d_model, H*d_v],
      W_F1: [d_ff, d_model], b_F1: [d_ff], W_F2: [d_model, d_ff], b_F2: [d_model],
      bn*_{gamma,beta,mean,var}: [q_len] (BatchNorm1d(q_len) running stats, eval mode).
    """
    bs, q_len, d_model = src.shape
    hdk, hdv = n_heads * d_k, n_heads * d_v
    d_ff = W_F1.shape[0]

    # ---- host-side (one-time) parameter prep: layout, scale-fold, BN-fold ----------------
    inv_sqrt_dk = 1.0 / math.sqrt(d_k)
    w_qkv = jnp.concatenate([W_Q.T * inv_sqrt_dk, W_K.T, W_V.T], axis=1)  # [d_model, 2hdk+hdv]
    w_o = W_O.T                                                            # [hdv, d_model]
    w_ff1 = W_F1.T                                                         # [d_model, d_ff]
    w_ff2 = W_F2.T                                                         # [d_ff, d_model]
    b_ff1 = b_F1.reshape(1, d_ff)
    b_ff2 = b_F2.reshape(1, d_model)

    # ---- batch block: fill the MXU M-dimension (>=256 rows on v6e/v7x; >=128 on v5e) -----
    if block_bs is None:
        target_rows = 256
        block_bs = max(1, min(bs, max(1, target_rows // q_len)))
    block_bs = max(1, min(block_bs, bs))
    while bs % block_bs:
        block_bs -= 1
    rows = block_bs * q_len

    def bn_fold(gamma, beta, mean, var):
        s = gamma / jnp.sqrt(var + eps)                     # [q_len]
        sh = beta - mean * s
        s2d = jnp.broadcast_to(s[:, None], (q_len, d_model))
        sh2d = jnp.broadcast_to(sh[:, None], (q_len, d_model))
        # Pre-tile to the per-block row slab so the kernel does a pure dense fma.
        return jnp.tile(s2d, (block_bs, 1)), jnp.tile(sh2d, (block_bs, 1))

    bn1s, bn1b = bn_fold(bn1_gamma, bn1_beta, bn1_mean, bn1_var)
    bn2s, bn2b = bn_fold(bn2_gamma, bn2_beta, bn2_mean, bn2_var)

    kernel = functools.partial(_tst_encoder_layer_kernel,
                               n_heads=n_heads, d_k=d_k, d_v=d_v,
                               b_blk=block_bs, q_len=q_len,
                               use_bf16=use_bf16_matmul)

    def resident(arr):
        # Full-array block with a constant block index: DMA'd once, VMEM-resident.
        # TODO(synk): request pl.Buffered(1) here on 64 MiB-VMEM parts (v7x) to avoid
        # double-buffering constant weights.
        zeros = (0,) * arr.ndim
        return pl.BlockSpec(arr.shape, lambda b, _z=zeros: _z)

    src_spec = pl.BlockSpec((block_bs, q_len, d_model), lambda b: (b, 0, 0))
    out_spec = pl.BlockSpec((block_bs, q_len, d_model), lambda b: (b, 0, 0))

    # ---- advisory cost estimate for XLA's scheduler ---------------------------------------
    flops = (2 * bs * q_len * (d_model * (2 * hdk + hdv) + hdv * d_model
                               + 2 * d_model * d_ff)
             + 2 * bs * n_heads * q_len * q_len * (d_k + d_v))
    transcendentals = bs * n_heads * q_len * q_len + bs * q_len * d_ff + bs * n_heads * q_len
    bytes_accessed = 4 * (2 * bs * q_len * d_model
                          + w_qkv.size + w_o.size + w_ff1.size + w_ff2.size
                          + b_ff1.size + b_ff2.size
                          + 4 * rows * d_model)

    return pl.pallas_call(
        kernel,
        out_shape=jax.ShapeDtypeStruct((bs, q_len, d_model), src.dtype),
        grid_spec=pltpu.PrefetchScalarGridSpec(
            num_scalar_prefetch=0,
            grid=(bs // block_bs,),
            in_specs=[src_spec,
                      resident(w_qkv), resident(w_o),
                      resident(w_ff1), resident(b_ff1),
                      resident(w_ff2), resident(b_ff2),
                      resident(bn1s), resident(bn1b),
                      resident(bn2s), resident(bn2b)],
            out_specs=out_spec,
            scratch_shapes=[pltpu.VMEM((block_bs, q_len, hdv), jnp.float32)],
        ),
        compiler_params=pltpu.CompilerParams(
            dimension_semantics=("parallel",),
        ),
        cost_estimate=pl.CostEstimate(flops=int(flops),
                                      transcendentals=int(transcendentals),
                                      bytes_accessed=int(bytes_accessed)),
    )(src, w_qkv, w_o, w_ff1, b_ff1, w_ff2, b_ff2, bn1s, bn1b, bn2s, bn2b)


def _reference(src, W_Q, W_K, W_V, W_O, W_F1, b_F1, W_F2, b_F2,
               g1, be1, m1, v1, g2, be2, m2, v2, *, eps, n_heads, d_k, d_v):
    """Pure-JAX eval-mode reference mirroring the PyTorch module."""
    bs, q_len, d_model = src.shape
    q = (src @ W_Q.T).reshape(bs, q_len, n_heads, d_k)
    k = (src @ W_K.T).reshape(bs, q_len, n_heads, d_k)
    vv = (src @ W_V.T).reshape(bs, q_len, n_heads, d_v)
    scores = jnp.einsum("bqhd,bkhd->bhqk", q, k) / math.sqrt(d_k)
    attn = jax.nn.softmax(scores, axis=-1)
    ctx = jnp.einsum("bhqk,bkhd->bqhd", attn, vv).reshape(bs, q_len, n_heads * d_v)

    def bn(x, g, b, mean, var):
        return ((x - mean[None, :, None]) / jnp.sqrt(var[None, :, None] + eps)
                * g[None, :, None] + b[None, :, None])

    x1 = bn(src + ctx @ W_O.T, g1, be1, m1, v1)
    hid = _gelu(x1 @ W_F1.T + b_F1)
    x2 = x1 + (hid @ W_F2.T + b_F2)
    return bn(x2, g2, be2, m2, v2)


if __name__ == "__main__":
    # Small shapes consistent with the module: q_len=8, d_model=32, H=4, d_k=d_v=8, d_ff=64.
    bs, q_len, d_model = 8, 8, 32
    n_heads = 4
    d_k = d_v = d_model // n_heads
    d_ff = 64
    eps = 1e-5

    keys = jax.random.split(jax.random.PRNGKey(0), 20)
    src = jax.random.normal(keys[0], (bs, q_len, d_model), jnp.float32)

    def linear_weight(k, out_f, in_f):
        bound = 1.0 / math.sqrt(in_f)
        return jax.random.uniform(k, (out_f, in_f), jnp.float32, -bound, bound)

    # PyTorch-layout parameters.
    W_Q = linear_weight(keys[1], n_heads * d_k, d_model)
    W_K = linear_weight(keys[2], n_heads * d_k, d_model)
    W_V = linear_weight(keys[3], n_heads * d_v, d_model)
    W_O = linear_weight(keys[4], d_model, n_heads * d_v)
    W_F1 = linear_weight(keys[5], d_ff, d_model)
    b_F1 = jax.random.uniform(keys[6], (d_ff,), jnp.float32, -0.1, 0.1)
    W_F2 = linear_weight(keys[7], d_model, d_ff)
    b_F2 = jax.random.uniform(keys[8], (d_model,), jnp.float32, -0.1, 0.1)

    g1 = jax.random.uniform(keys[9], (q_len,), jnp.float32, 0.5, 1.5)
    be1 = jax.random.uniform(keys[10], (q_len,), jnp.float32, -0.5, 0.5)
    m1 = 0.1 * jax.random.normal(keys[11], (q_len,), jnp.float32)
    v1 = jax.random.uniform(keys[12], (q_len,), jnp.float32, 0.5, 1.5)
    g2 = jax.random.uniform(keys[13], (q_len,), jnp.float32, 0.5, 1.5)
    be2 = jax.random.uniform(keys[14], (q_len,), jnp.float32, -0.5, 0.5)
    m2 = 0.1 * jax.random.normal(keys[15], (q_len,), jnp.float32)
    v2 = jax.random.uniform(keys[16], (q_len,), jnp.float32, 0.5, 1.5)

    params = (W_Q, W_K, W_V, W_O, W_F1, b_F1, W_F2, b_F2,
              g1, be1, m1, v1, g2, be2, m2, v2)

    with jax.default_matmul_precision("highest"):
        ref = _reference(src, *params, eps=eps, n_heads=n_heads, d_k=d_k, d_v=d_v)
    ref = jax.block_until_ready(ref)

    # Default (auto batch block: one grid step at these shapes).
    out = tst_encoder_layer(src, *params, n_heads=n_heads, d_k=d_k, d_v=d_v, eps=eps)
    out = jax.block_until_ready(out)
    assert out.shape == ref.shape
    err = float(jnp.max(jnp.abs(out - ref)))
    assert err < 5e-3, f"f32 output mismatch (auto block), max abs diff {err}"

    # Smaller explicit block to exercise a multi-step grid and the batch index maps.
    out2 = tst_encoder_layer(src, *params, n_heads=n_heads, d_k=d_k, d_v=d_v, eps=eps,
                             block_bs=2)
    out2 = jax.block_until_ready(out2)
    err2 = float(jnp.max(jnp.abs(out2 - ref)))
    assert err2 < 5e-3, f"f32 output mismatch (block_bs=2), max abs diff {err2}"

    print("KERNEL_OK")
</pallas_src>

<mosaic_0001>
module attributes {stable_mosaic.version = 11 : i64} {
  func.func @_tst_encoder_layer_kernel(%arg0: i32, %arg1: memref<8x8x32xf32, #tpu.memory_space<vmem>>, %arg2: memref<32x96xf32, #tpu.memory_space<vmem>>, %arg3: memref<32x32xf32, #tpu.memory_space<vmem>>, %arg4: memref<32x64xf32, #tpu.memory_space<vmem>>, %arg5: memref<1x64xf32, #tpu.memory_space<vmem>>, %arg6: memref<64x32xf32, #tpu.memory_space<vmem>>, %arg7: memref<1x32xf32, #tpu.memory_space<vmem>>, %arg8: memref<64x32xf32, #tpu.memory_space<vmem>>, %arg9: memref<64x32xf32, #tpu.memory_space<vmem>>, %arg10: memref<64x32xf32, #tpu.memory_space<vmem>>, %arg11: memref<64x32xf32, #tpu.memory_space<vmem>>, %arg12: memref<8x8x32xf32, #tpu.memory_space<vmem>>, %arg13: memref<8x8x32xf32, #tpu.memory_space<vmem>>) attributes {dimension_semantics = [#tpu.dimension_semantics<parallel>], iteration_bounds = array<i64: 1>, scalar_prefetch = 0 : i64, scratch_operands = 1 : i64, tpu.core_type = #tpu.core_type<tc>, window_params = [{transform_indices = @transform_0, window_bounds = array<i64: 8, 8, 32>}, {pipeline_mode = #tpu.pipeline_mode<synchronous>, transform_indices = @transform_1, window_bounds = array<i64: 32, 96>}, {pipeline_mode = #tpu.pipeline_mode<synchronous>, transform_indices = @transform_2, window_bounds = array<i64: 32, 32>}, {pipeline_mode = #tpu.pipeline_mode<synchronous>, transform_indices = @transform_3, window_bounds = array<i64: 32, 64>}, {pipeline_mode = #tpu.pipeline_mode<synchronous>, transform_indices = @transform_4, window_bounds = array<i64: 1, 64>}, {pipeline_mode = #tpu.pipeline_mode<synchronous>, transform_indices = @transform_5, window_bounds = array<i64: 64, 32>}, {pipeline_mode = #tpu.pipeline_mode<synchronous>, transform_indices = @transform_6, window_bounds = array<i64: 1, 32>}, {pipeline_mode = #tpu.pipeline_mode<synchronous>, transform_indices = @transform_7, window_bounds = array<i64: 64, 32>}, {pipeline_mode = #tpu.pipeline_mode<synchronous>, transform_indices = @transform_8, window_bounds = array<i64: 64, 32>}, {pipeline_mode = #tpu.pipeline_mode<synchronous>, transform_indices = @transform_9, window_bounds = array<i64: 64, 32>}, {pipeline_mode = #tpu.pipeline_mode<synchronous>, transform_indices = @transform_10, window_bounds = array<i64: 64, 32>}, {transform_indices = @transform_11, window_bounds = array<i64: 8, 8, 32>}]} {
    %c0 = arith.constant 0 : index
    %c0_0 = arith.constant 0 : index
    %c0_1 = arith.constant 0 : index
    %0 = vector.load %arg1[%c0, %c0_0, %c0_1] : memref<8x8x32xf32, #tpu.memory_space<vmem>>, vector<8x8x32xf32>
    %1 = vector.shape_cast %0 : vector<8x8x32xf32> to vector<64x32xf32>
    %c0_2 = arith.constant 0 : index
    %c0_3 = arith.constant 0 : index
    %2 = vector.load %arg2[%c0_2, %c0_3] : memref<32x96xf32, #tpu.memory_space<vmem>>, vector<32x96xf32>
    %cst = arith.constant dense<0.000000e+00> : vector<64x96xf32>
    %3 = tpu.matmul %1, %2, %cst {dimension_numbers = #tpu.dot_dimension_numbers<[1], [0], [0], [1], [0, 0, 1, 1], [], []>} : vector<64x32xf32>, vector<32x96xf32>, vector<64x96xf32> -> vector<64x96xf32>
    %4 = vector.shape_cast %3 : vector<64x96xf32> to vector<8x8x96xf32>
    %5 = vector.extract_strided_slice %4 {offsets = [0, 0, 0], sizes = [8, 8, 32], strides = [1, 1, 1]} : vector<8x8x96xf32> to vector<8x8x32xf32>
    %6 = vector.extract_strided_slice %4 {offsets = [0, 0, 32], sizes = [8, 8, 32], strides = [1, 1, 1]} : vector<8x8x96xf32> to vector<8x8x32xf32>
    %7 = vector.extract_strided_slice %4 {offsets = [0, 0, 64], sizes = [8, 8, 32], strides = [1, 1, 1]} : vector<8x8x96xf32> to vector<8x8x32xf32>
    %8 = vector.extract_strided_slice %5 {offsets = [0, 0, 0], sizes = [8, 8, 8], strides = [1, 1, 1]} : vector<8x8x32xf32> to vector<8x8x8xf32>
    %9 = vector.extract_strided_slice %6 {offsets = [0, 0, 0], sizes = [8, 8, 8], strides = [1, 1, 1]} : vector<8x8x32xf32> to vector<8x8x8xf32>
    %10 = vector.extract_strided_slice %7 {offsets = [0, 0, 0], sizes = [8, 8, 8], strides = [1, 1, 1]} : vector<8x8x32xf32> to vector<8x8x8xf32>
    "tpu.trace_start"() <{level = 10 : i32, message = "bqd,bkd->bqk"}> : () -> ()
    %cst_4 = arith.constant dense<0.000000e+00> : vector<8x8x8xf32>
    %11 = tpu.matmul %8, %9, %cst_4 {dimension_numbers = #tpu.dot_dimension_numbers<[2], [2], [1], [1], [0, 0, 0, 1, 1, 1], [0], [0]>} : vector<8x8x8xf32>, vector<8x8x8xf32>, vector<8x8x8xf32> -> vector<8x8x8xf32>
    "tpu.trace_stop"() : () -> ()
    %cst_5 = arith.constant dense<0xFF800000> : vector<8x8xf32>
    %12 = vector.multi_reduction <maximumf>, %11, %cst_5 [2] : vector<8x8x8xf32> to vector<8x8xf32>
    %13 = vector.shape_cast %12 : vector<8x8xf32> to vector<8x8x1xf32>
    %14 = vector.broadcast %13 : vector<8x8x1xf32> to vector<8x8x8xf32>
    %15 = arith.subf %11, %14 : vector<8x8x8xf32>
    %16 = math.exp %15 : vector<8x8x8xf32>
    %cst_6 = arith.constant dense<0.000000e+00> : vector<8x8xf32>
    %17 = vector.multi_reduction <add>, %16, %cst_6 [2] : vector<8x8x8xf32> to vector<8x8xf32>
    %18 = vector.shape_cast %17 : vector<8x8xf32> to vector<8x8x1xf32>
    %19 = tpu.reciprocal %18 {approx = true} : vector<8x8x1xf32> -> vector<8x8x1xf32>
    %20 = vector.broadcast %19 : vector<8x8x1xf32> to vector<8x8x8xf32>
    %21 = arith.mulf %16, %20 : vector<8x8x8xf32>
    "tpu.trace_start"() <{level = 10 : i32, message = "bqk,bkd->bqd"}> : () -> ()
    %cst_7 = arith.constant dense<0.000000e+00> : vector<8x8x8xf32>
    %22 = tpu.matmul %21, %10, %cst_7 {dimension_numbers = #tpu.dot_dimension_numbers<[2], [1], [1], [2], [0, 0, 0, 1, 1, 2], [0], [0]>} : vector<8x8x8xf32>, vector<8x8x8xf32>, vector<8x8x8xf32> -> vector<8x8x8xf32>
    "tpu.trace_stop"() : () -> ()
    %c0_8 = arith.constant 0 : index
    %c0_9 = arith.constant 0 : index
    %c0_10 = arith.constant 0 : index
    %23 = vector.load %arg13[%c0_8, %c0_9, %c0_10] : memref<8x8x32xf32, #tpu.memory_space<vmem>>, vector<8x8x8xf32>
    tpu.vector_store %arg13[%c0_8, %c0_9, %c0_10], %22 {strides = array<i32>} : memref<8x8x32xf32, #tpu.memory_space<vmem>>, vector<8x8x8xf32>,
    %24 = vector.extract_strided_slice %5 {offsets = [0, 0, 8], sizes = [8, 8, 8], strides = [1, 1, 1]} : vector<8x8x32xf32> to vector<8x8x8xf32>
    %25 = vector.extract_strided_slice %6 {offsets = [0, 0, 8], sizes = [8, 8, 8], strides = [1, 1, 1]} : vector<8x8x32xf32> to vector<8x8x8xf32>
    %26 = vector.extract_strided_slice %7 {offsets = [0, 0, 8], sizes = [8, 8, 8], strides = [1, 1, 1]} : vector<8x8x32xf32> to vector<8x8x8xf32>
    "tpu.trace_start"() <{level = 10 : i32, message = "bqd,bkd->bqk"}> : () -> ()
    %cst_11 = arith.constant dense<0.000000e+00> : vector<8x8x8xf32>
    %27 = tpu.matmul %24, %25, %cst_11 {dimension_numbers = #tpu.dot_dimension_numbers<[2], [2], [1], [1], [0, 0, 0, 1, 1, 1], [0], [0]>} : vector<8x8x8xf32>, vector<8x8x8xf32>, vector<8x8x8xf32> -> vector<8x8x8xf32>
    "tpu.trace_stop"() : () -> ()
    %cst_12 = arith.constant dense<0xFF800000> : vector<8x8xf32>
    %28 = vector.multi_reduction <maximumf>, %27, %cst_12 [2] : vector<8x8x8xf32> to vector<8x8xf32>
    %29 = vector.shape_cast %28 : vector<8x8xf32> to vector<8x8x1xf32>
    %30 = vector.broadcast %29 : vector<8x8x1xf32> to vector<8x8x8xf32>
    %31 = arith.subf %27, %30 : vector<8x8x8xf32>
    %32 = math.exp %31 : vector<8x8x8xf32>
    %cst_13 = arith.constant dense<0.000000e+00> : vector<8x8xf32>
    %33 = vector.multi_reduction <add>, %32, %cst_13 [2] : vector<8x8x8xf32> to vector<8x8xf32>
    %34 = vector.shape_cast %33 : vector<8x8xf32> to vector<8x8x1xf32>
    %35 = tpu.reciprocal %34 {approx = true} : vector<8x8x1xf32> -> vector<8x8x1xf32>
    %36 = vector.broadcast %35 : vector<8x8x1xf32> to vector<8x8x8xf32>
    %37 = arith.mulf %32, %36 : vector<8x8x8xf32>
    "tpu.trace_start"() <{level = 10 : i32, message = "bqk,bkd->bqd"}> : () -> ()
    %cst_14 = arith.constant dense<0.000000e+00> : vector<8x8x8xf32>
    %38 = tpu.matmul %37, %26, %cst_14 {dimension_numbers = #tpu.dot_dimension_numbers<[2], [1], [1], [2], [0, 0, 0, 1, 1, 2], [0], [0]>} : vector<8x8x8xf32>, vector<8x8x8xf32>, vector<8x8x8xf32> -> vector<8x8x8xf32>
    "tpu.trace_stop"() : () -> ()
    %c0_15 = arith.constant 0 : index
    %c0_16 = arith.constant 0 : index
    %c8 = arith.constant 8 : index
    %39 = vector.load %arg13[%c0_15, %c0_16, %c8] : memref<8x8x32xf32, #tpu.memory_space<vmem>>, vector<8x8x8xf32>
    tpu.vector_store %arg13[%c0_15, %c0_16, %c8], %38 {strides = array<i32>} : memref<8x8x32xf32, #tpu.memory_space<vmem>>, vector<8x8x8xf32>,
    %40 = vector.extract_strided_slice %5 {offsets = [0, 0, 16], sizes = [8, 8, 8], strides = [1, 1, 1]} : vector<8x8x32xf32> to vector<8x8x8xf32>
    %41 = vector.extract_strided_slice %6 {offsets = [0, 0, 16], sizes = [8, 8, 8], strides = [1, 1, 1]} : vector<8x8x32xf32> to vector<8x8x8xf32>
    %42 = vector.extract_strided_slice %7 {offsets = [0, 0, 16], sizes = [8, 8, 8], strides = [1, 1, 1]} : vector<8x8x32xf32> to vector<8x8x8xf32>
    "tpu.trace_start"() <{level = 10 : i32, message = "bqd,bkd->bqk"}> : () -> ()
    %cst_17 = arith.constant dense<0.000000e+00> : vector<8x8x8xf32>
    %43 = tpu.matmul %40, %41, %cst_17 {dimension_numbers = #tpu.dot_dimension_numbers<[2], [2], [1], [1], [0, 0, 0, 1, 1, 1], [0], [0]>} : vector<8x8x8xf32>, vector<8x8x8xf32>, vector<8x8x8xf32> -> vector<8x8x8xf32>
    "tpu.trace_stop"() : () -> ()
    %cst_18 = arith.constant dense<0xFF800000> : vector<8x8xf32>
    %44 = vector.multi_reduction <maximumf>, %43, %cst_18 [2] : vector<8x8x8xf32> to vector<8x8xf32>
    %45 = vector.shape_cast %44 : vector<8x8xf32> to vector<8x8x1xf32>
    %46 = vector.broadcast %45 : vector<8x8x1xf32> to vector<8x8x8xf32>
    %47 = arith.subf %43, %46 : vector<8x8x8xf32>
    %48 = math.exp %47 : vector<8x8x8xf32>
    %cst_19 = arith.constant dense<0.000000e+00> : vector<8x8xf32>
    %49 = vector.multi_reduction <add>, %48, %cst_19 [2] : vector<8x8x8xf32> to vector<8x8xf32>
    %50 = vector.shape_cast %49 : vector<8x8xf32> to vector<8x8x1xf32>
    %51 = tpu.reciprocal %50 {approx = true} : vector<8x8x1xf32> -> vector<8x8x1xf32>
    %52 = vector.broadcast %51 : vector<8x8x1xf32> to vector<8x8x8xf32>
    %53 = arith.mulf %48, %52 : vector<8x8x8xf32>
    "tpu.trace_start"() <{level = 10 : i32, message = "bqk,bkd->bqd"}> : () -> ()
    %cst_20 = arith.constant dense<0.000000e+00> : vector<8x8x8xf32>
    %54 = tpu.matmul %53, %42, %cst_20 {dimension_numbers = #tpu.dot_dimension_numbers<[2], [1], [1], [2], [0, 0, 0, 1, 1, 2], [0], [0]>} : vector<8x8x8xf32>, vector<8x8x8xf32>, vector<8x8x8xf32> -> vector<8x8x8xf32>
    "tpu.trace_stop"() : () -> ()
    %c0_21 = arith.constant 0 : index
    %c0_22 = arith.constant 0 : index
    %c16 = arith.constant 16 : index
    %55 = vector.load %arg13[%c0_21, %c0_22, %c16] : memref<8x8x32xf32, #tpu.memory_space<vmem>>, vector<8x8x8xf32>
    tpu.vector_store %arg13[%c0_21, %c0_22, %c16], %54 {strides = array<i32>} : memref<8x8x32xf32, #tpu.memory_space<vmem>>, vector<8x8x8xf32>,
    %56 = vector.extract_strided_slice %5 {offsets = [0, 0, 24], sizes = [8, 8, 8], strides = [1, 1, 1]} : vector<8x8x32xf32> to vector<8x8x8xf32>
    %57 = vector.extract_strided_slice %6 {offsets = [0, 0, 24], sizes = [8, 8, 8], strides = [1, 1, 1]} : vector<8x8x32xf32> to vector<8x8x8xf32>
    %58 = vector.extract_strided_slice %7 {offsets = [0, 0, 24], sizes = [8, 8, 8], strides = [1, 1, 1]} : vector<8x8x32xf32> to vector<8x8x8xf32>
    "tpu.trace_start"() <{level = 10 : i32, message = "bqd,bkd->bqk"}> : () -> ()
    %cst_23 = arith.constant dense<0.000000e+00> : vector<8x8x8xf32>
    %59 = tpu.matmul %56, %57, %cst_23 {dimension_numbers = #tpu.dot_dimension_numbers<[2], [2], [1], [1], [0, 0, 0, 1, 1, 1], [0], [0]>} : vector<8x8x8xf32>, vector<8x8x8xf32>, vector<8x8x8xf32> -> vector<8x8x8xf32>
    "tpu.trace_stop"() : () -> ()
    %cst_24 = arith.constant dense<0xFF800000> : vector<8x8xf32>
    %60 = vector.multi_reduction <maximumf>, %59, %cst_24 [2] : vector<8x8x8xf32> to vector<8x8xf32>
    %61 = vector.shape_cast %60 : vector<8x8xf32> to vector<8x8x1xf32>
    %62 = vector.broadcast %61 : vector<8x8x1xf32> to vector<8x8x8xf32>
    %63 = arith.subf %59, %62 : vector<8x8x8xf32>
    %64 = math.exp %63 : vector<8x8x8xf32>
    %cst_25 = arith.constant dense<0.000000e+00> : vector<8x8xf32>
    %65 = vector.multi_reduction <add>, %64, %cst_25 [2] : vector<8x8x8xf32> to vector<8x8xf32>
    %66 = vector.shape_cast %65 : vector<8x8xf32> to vector<8x8x1xf32>
    %67 = tpu.reciprocal %66 {approx = true} : vector<8x8x1xf32> -> vector<8x8x1xf32>
    %68 = vector.broadcast %67 : vector<8x8x1xf32> to vector<8x8x8xf32>
    %69 = arith.mulf %64, %68 : vector<8x8x8xf32>
    "tpu.trace_start"() <{level = 10 : i32, message = "bqk,bkd->bqd"}> : () -> ()
    %cst_26 = arith.constant dense<0.000000e+00> : vector<8x8x8xf32>
    %70 = tpu.matmul %69, %58, %cst_26 {dimension_numbers = #tpu.dot_dimension_numbers<[2], [1], [1], [2], [0, 0, 0, 1, 1, 2], [0], [0]>} : vector<8x8x8xf32>, vector<8x8x8xf32>, vector<8x8x8xf32> -> vector<8x8x8xf32>
    "tpu.trace_stop"() : () -> ()
    %c0_27 = arith.constant 0 : index
    %c0_28 = arith.constant 0 : index
    %c24 = arith.constant 24 : index
    %71 = vector.load %arg13[%c0_27, %c0_28, %c24] : memref<8x8x32xf32, #tpu.memory_space<vmem>>, vector<8x8x8xf32>
    tpu.vector_store %arg13[%c0_27, %c0_28, %c24], %70 {strides = array<i32>} : memref<8x8x32xf32, #tpu.memory_space<vmem>>, vector<8x8x8xf32>,
    %c0_29 = arith.constant 0 : index
    %c0_30 = arith.constant 0 : index
    %c0_31 = arith.constant 0 : index
    %72 = vector.load %arg13[%c0_29, %c0_30, %c0_31] : memref<8x8x32xf32, #tpu.memory_space<vmem>>, vector<8x8x32xf32>
    %73 = vector.shape_cast %72 : vector<8x8x32xf32> to vector<64x32xf32>
    %c0_32 = arith.constant 0 : index
    %c0_33 = arith.constant 0 : index
    %74 = vector.load %arg3[%c0_32, %c0_33] : memref<32x32xf32, #tpu.memory_space<vmem>>, vector<32x32xf32>
    %cst_34 = arith.constant dense<0.000000e+00> : vector<64x32xf32>
    %75 = tpu.matmul %73, %74, %cst_34 {dimension_numbers = #tpu.dot_dimension_numbers<[1], [0], [0], [1], [0, 0, 1, 1], [], []>} : vector<64x32xf32>, vector<32x32xf32>, vector<64x32xf32> -> vector<64x32xf32>
    %76 = arith.addf %1, %75 : vector<64x32xf32>
    %c0_35 = arith.constant 0 : index
    %c0_36 = arith.constant 0 : index
    %77 = vector.load %arg8[%c0_35, %c0_36] : memref<64x32xf32, #tpu.memory_space<vmem>>, vector<64x32xf32>
    %78 = arith.mulf %76, %77 : vector<64x32xf32>
    %c0_37 = arith.constant 0 : index
    %c0_38 = arith.constant 0 : index
    %79 = vector.load %arg9[%c0_37, %c0_38] : memref<64x32xf32, #tpu.memory_space<vmem>>, vector<64x32xf32>
    %80 = arith.addf %78, %79 : vector<64x32xf32>
    %c0_39 = arith.constant 0 : index
    %c0_40 = arith.constant 0 : index
    %81 = vector.load %arg4[%c0_39, %c0_40] : memref<32x64xf32, #tpu.memory_space<vmem>>, vector<32x64xf32>
    %cst_41 = arith.constant dense<0.000000e+00> : vector<64x64xf32>
    %82 = tpu.matmul %80, %81, %cst_41 {dimension_numbers = #tpu.dot_dimension_numbers<[1], [0], [0], [1], [0, 0, 1, 1], [], []>} : vector<64x32xf32>, vector<32x64xf32>, vector<64x64xf32> -> vector<64x64xf32>
    %c0_42 = arith.constant 0 : index
    %c0_43 = arith.constant 0 : index
    %83 = vector.load %arg5[%c0_42, %c0_43] : memref<1x64xf32, #tpu.memory_space<vmem>>, vector<1x64xf32>
    %84 = vector.broadcast %83 : vector<1x64xf32> to vector<64x64xf32>
    %85 = arith.addf %82, %84 : vector<64x64xf32>
    %cst_44 = arith.constant 5.000000e-01 : f32
    %86 = vector.broadcast %cst_44 : f32 to vector<64x64xf32>
    %87 = arith.mulf %86, %85 : vector<64x64xf32>
    %88 = arith.mulf %85, %85 : vector<64x64xf32>
    %89 = arith.mulf %88, %85 : vector<64x64xf32>
    %cst_45 = arith.constant 4.471500e-02 : f32
    %90 = vector.broadcast %cst_45 : f32 to vector<64x64xf32>
    %91 = arith.mulf %90, %89 : vector<64x64xf32>
    %92 = arith.addf %85, %91 : vector<64x64xf32>
    %cst_46 = arith.constant 0.797884583 : f32
    %93 = vector.broadcast %cst_46 : f32 to vector<64x64xf32>
    %94 = arith.mulf %93, %92 : vector<64x64xf32>
    %95 = math.tanh %94 : vector<64x64xf32>
    %cst_47 = arith.constant 1.000000e+00 : f32
    %96 = vector.broadcast %cst_47 : f32 to vector<64x64xf32>
    %97 = arith.addf %96, %95 : vector<64x64xf32>
    %98 = arith.mulf %87, %97 : vector<64x64xf32>
    %c0_48 = arith.constant 0 : index
    %c0_49 = arith.constant 0 : index
    %99 = vector.load %arg6[%c0_48, %c0_49] : memref<64x32xf32, #tpu.memory_space<vmem>>, vector<64x32xf32>
    %cst_50 = arith.constant dense<0.000000e+00> : vector<64x32xf32>
    %100 = tpu.matmul %98, %99, %cst_50 {dimension_numbers = #tpu.dot_dimension_numbers<[1], [0], [0], [1], [0, 0, 1, 1], [], []>} : vector<64x64xf32>, vector<64x32xf32>, vector<64x32xf32> -> vector<64x32xf32>
    %c0_51 = arith.constant 0 : index
    %c0_52 = arith.constant 0 : index
    %101 = vector.load %arg7[%c0_51, %c0_52] : memref<1x32xf32, #tpu.memory_space<vmem>>, vector<1x32xf32>
    %102 = vector.broadcast %101 : vector<1x32xf32> to vector<64x32xf32>
    %103 = arith.addf %100, %102 : vector<64x32xf32>
    %104 = arith.addf %80, %103 : vector<64x32xf32>
    %c0_53 = arith.constant 0 : index
    %c0_54 = arith.constant 0 : index
    %105 = vector.load %arg10[%c0_53, %c0_54] : memref<64x32xf32, #tpu.memory_space<vmem>>, vector<64x32xf32>
    %106 = arith.mulf %104, %105 : vector<64x32xf32>
    %c0_55 = arith.constant 0 : index
    %c0_56 = arith.constant 0 : index
    %107 = vector.load %arg11[%c0_55, %c0_56] : memref<64x32xf32, #tpu.memory_space<vmem>>, vector<64x32xf32>
    %108 = arith.addf %106, %107 : vector<64x32xf32>
    %109 = vector.shape_cast %108 : vector<64x32xf32> to vector<8x8x32xf32>
    %c0_57 = arith.constant 0 : index
    %c0_58 = arith.constant 0 : index
    %c0_59 = arith.constant 0 : index
    %110 = vector.load %arg12[%c0_57, %c0_58, %c0_59] : memref<8x8x32xf32, #tpu.memory_space<vmem>>, vector<8x8x32xf32>
    tpu.vector_store %arg12[%c0_57, %c0_58, %c0_59], %109 {strides = array<i32>} : memref<8x8x32xf32, #tpu.memory_space<vmem>>, vector<8x8x32xf32>,
    return
  }
  func.func @transform_0(%arg0: i32) -> (i32, i32, i32) {
    %c0_i32 = arith.constant 0 : i32
    %c0_i32_0 = arith.constant 0 : i32
    %c0_i32_1 = arith.constant 0 : i32
    return %arg0, %c0_i32, %c0_i32_0 : i32, i32, i32
  }
  func.func @transform_1(%arg0: i32) -> (i32, i32) {
    %c0_i32 = arith.constant 0 : i32
    %c0_i32_0 = arith.constant 0 : i32
    %c0_i32_1 = arith.constant 0 : i32
    return %c0_i32, %c0_i32_0 : i32, i32
  }
  func.func @transform_2(%arg0: i32) -> (i32, i32) {
    %c0_i32 = arith.constant 0 : i32
    %c0_i32_0 = arith.constant 0 : i32
    %c0_i32_1 = arith.constant 0 : i32
    return %c0_i32, %c0_i32_0 : i32, i32
  }
  func.func @transform_3(%arg0: i32) -> (i32, i32) {
    %c0_i32 = arith.constant 0 : i32
    %c0_i32_0 = arith.constant 0 : i32
    %c0_i32_1 = arith.constant 0 : i32
    return %c0_i32, %c0_i32_0 : i32, i32
  }
  func.func @transform_4(%arg0: i32) -> (i32, i32) {
    %c0_i32 = arith.constant 0 : i32
    %c0_i32_0 = arith.constant 0 : i32
    %c0_i32_1 = arith.constant 0 : i32
    return %c0_i32, %c0_i32_0 : i32, i32
  }
  func.func @transform_5(%arg0: i32) -> (i32, i32) {
    %c0_i32 = arith.constant 0 : i32
    %c0_i32_0 = arith.constant 0 : i32
    %c0_i32_1 = arith.constant 0 : i32
    return %c0_i32, %c0_i32_0 : i32, i32
  }
  func.func @transform_6(%arg0: i32) -> (i32, i32) {
    %c0_i32 = arith.constant 0 : i32
    %c0_i32_0 = arith.constant 0 : i32
    %c0_i32_1 = arith.constant 0 : i32
    return %c0_i32, %c0_i32_0 : i32, i32
  }
  func.func @transform_7(%arg0: i32) -> (i32, i32) {
    %c0_i32 = arith.constant 0 : i32
    %c0_i32_0 = arith.constant 0 : i32
    %c0_i32_1 = arith.constant 0 : i32
    return %c0_i32, %c0_i32_0 : i32, i32
  }
  func.func @transform_8(%arg0: i32) -> (i32, i32) {
    %c0_i32 = arith.constant 0 : i32
    %c0_i32_0 = arith.constant 0 : i32
    %c0_i32_1 = arith.constant 0 : i32
    return %c0_i32, %c0_i32_0 : i32, i32
  }
  func.func @transform_9(%arg0: i32) -> (i32, i32) {
    %c0_i32 = arith.constant 0 : i32
    %c0_i32_0 = arith.constant 0 : i32
    %c0_i32_1 = arith.constant 0 : i32
    return %c0_i32, %c0_i32_0 : i32, i32
  }
  func.func @transform_10(%arg0: i32) -> (i32, i32) {
    %c0_i32 = arith.constant 0 : i32
    %c0_i32_0 = arith.constant 0 : i32
    %c0_i32_1 = arith.constant 0 : i32
    return %c0_i32, %c0_i32_0 : i32, i32
  }
  func.func @transform_11(%arg0: i32) -> (i32, i32, i32) {
    %c0_i32 = arith.constant 0 : i32
    %c0_i32_0 = arith.constant 0 : i32
    %c0_i32_1 = arith.constant 0 : i32
    return %arg0, %c0_i32, %c0_i32_0 : i32, i32, i32
  }
}

</mosaic_0001>

<llo_original>
// kernel: tpu_custom_call.1
$region0: #{tpu_custom_call.1}
  #allocation0 [shape = 'u32[]', space=smem, size = 0x4, offset = 0x4, fixed_abs, tag = 'smem constant byte address 0x4 - core index']
  #allocation1 [shape = 'u32[144,128]{1,0:T(1,128)}', space=vmem, size = 0x12000, scoped, tag = 'internal scratch']
  #allocation2 [shape = 'f32[8,8,32]{2,1,0:T(8,128)}', space=vmem, size = 0x8000, scoped, tag = 'scratch operand']
  %s0 = inlined_call_operand.vmem [shape: f32[8,8,32], index: 0, kind: input, shape index: {}]
  %s1 = inlined_call_operand.vmem [shape: f32[32,96], index: 1, kind: input, shape index: {}]
  %s2 = inlined_call_operand.vmem [shape: f32[32,32], index: 2, kind: input, shape index: {}]
  %s3 = inlined_call_operand.vmem [shape: f32[32,64], index: 3, kind: input, shape index: {}]
  %s4 = inlined_call_operand.vmem [shape: f32[1,64], index: 4, kind: input, shape index: {}]
  %s5 = inlined_call_operand.vmem [shape: f32[64,32], index: 5, kind: input, shape index: {}]
  %s6 = inlined_call_operand.vmem [shape: f32[1,32], index: 6, kind: input, shape index: {}]
  %s7 = inlined_call_operand.vmem [shape: f32[64,32], index: 7, kind: input, shape index: {}]
  %s8 = inlined_call_operand.vmem [shape: f32[64,32], index: 8, kind: input, shape index: {}]
  %s9 = inlined_call_operand.vmem [shape: f32[64,32], index: 9, kind: input, shape index: {}]
  %s10 = inlined_call_operand.vmem [shape: f32[64,32], index: 10, kind: input, shape index: {}]
  %s11 = inlined_call_operand.hbm [shape: f32[8,8,32], index: 11, kind: output, shape index: {}]
  %s12 = sld [smem:[#allocation0]]
  $region54: #{tpu_custom_call.1} parent=0
    _
  %s14 = ssub.s32 1, %s12
  %s15 = scalar_select 0, %s14, %s12
  $region1: #{tpu_custom_call.1} parent=0
    #allocation3 [shape = 'u8[32768]{0}', space=vmem, size = 0x8000, scoped, tag = 'output window, operand 0, single buffered']
    #allocation4 [shape = 's32[1]{0}', space=sflag, size = 0x4, scoped, tag = 'scoped memory for tpu_custom_call.1']
    %16 = vsyncpa [#allocation4], 0
    // Predicated region
    $region2: #{tpu_custom_call.1} parent=1 // pred_check
      _
    $region3: #{tpu_custom_call.1} parent=1 // pred_check_branch
      %18 = sbr.rel (0) target = $region5
    $region4: #{tpu_custom_call.1} parent=1 // pred_region
      _
    $region5: #{tpu_custom_call.1} parent=1 // pred_fallthru
      _
    // Predicated region
    $region6: #{tpu_custom_call.1} parent=1 // pred_check
      _
    $region7: #{tpu_custom_call.1} parent=1 // pred_check_branch
      %20 = sbr.rel (0) target = $region9
    $region8: #{tpu_custom_call.1} parent=1 // pred_region
      _
    $region9: #{tpu_custom_call.1} parent=1 // pred_fallthru
      _
    // Predicated region
    $region10: #{tpu_custom_call.1} parent=1 // pred_check
      _
    $region11: #{tpu_custom_call.1} parent=1 // pred_check_branch
      %22 = sbr.rel (0) target = $region13
    $region12: #{tpu_custom_call.1} parent=1 // pred_region
      _
    $region13: #{tpu_custom_call.1} parent=1 // pred_fallthru
      _
    // Predicated region
    $region14: #{tpu_custom_call.1} parent=1 // pred_check
      _
    $region15: #{tpu_custom_call.1} parent=1 // pred_check_branch
      %24 = sbr.rel (0) target = $region17
    $region16: #{tpu_custom_call.1} parent=1 // pred_region
      _
    $region17: #{tpu_custom_call.1} parent=1 // pred_fallthru
      _
    // Predicated region
    $region18: #{tpu_custom_call.1} parent=1 // pred_check
      _
    $region19: #{tpu_custom_call.1} parent=1 // pred_check_branch
      %26 = sbr.rel (0) target = $region21
    $region20: #{tpu_custom_call.1} parent=1 // pred_region
      _
    $region21: #{tpu_custom_call.1} parent=1 // pred_fallthru
      _
    // Predicated region
    $region22: #{tpu_custom_call.1} parent=1 // pred_check
      _
    $region23: #{tpu_custom_call.1} parent=1 // pred_check_branch
      %28 = sbr.rel (0) target = $region25
    $region24: #{tpu_custom_call.1} parent=1 // pred_region
      _
    $region25: #{tpu_custom_call.1} parent=1 // pred_fallthru
      _
    // Predicated region
    $region26: #{tpu_custom_call.1} parent=1 // pred_check
      _
    $region27: #{tpu_custom_call.1} parent=1 // pred_check_branch
      %30 = sbr.rel (0) target = $region29
    $region28: #{tpu_custom_call.1} parent=1 // pred_region
      _
    $region29: #{tpu_custom_call.1} parent=1 // pred_fallthru
      _
    // Predicated region
    $region30: #{tpu_custom_call.1} parent=1 // pred_check
      _
    $region31: #{tpu_custom_call.1} parent=1 // pred_check_branch
      %32 = sbr.rel (0) target = $region33
    $region32: #{tpu_custom_call.1} parent=1 // pred_region
      _
    $region33: #{tpu_custom_call.1} parent=1 // pred_fallthru
      _
    // Predicated region
    $region34: #{tpu_custom_call.1} parent=1 // pred_check
      _
    $region35: #{tpu_custom_call.1} parent=1 // pred_check_branch
      %34 = sbr.rel (0) target = $region37
    $region36: #{tpu_custom_call.1} parent=1 // pred_region
      _
    $region37: #{tpu_custom_call.1} parent=1 // pred_fallthru
      _
    // Predicated region
    $region38: #{tpu_custom_call.1} parent=1 // pred_check
      _
    $region39: #{tpu_custom_call.1} parent=1 // pred_check_branch
      %36 = sbr.rel (0) target = $region41
    $region40: #{tpu_custom_call.1} parent=1 // pred_region
      _
    $region41: #{tpu_custom_call.1} parent=1 // pred_fallthru
      _
    // Predicated region
    $region42: #{tpu_custom_call.1} parent=1 // pred_check
      _
    $region43: #{tpu_custom_call.1} parent=1 // pred_check_branch
      %38 = sbr.rel (0) target = $region45
    $region44: #{tpu_custom_call.1} parent=1 // pred_region
      _
    $region45: #{tpu_custom_call.1} parent=1 // pred_fallthru
      _
    %v39 = vld [vmem:[%s0] sm:$0xff]
    %v40 = vld [vmem:[%s0 + $0x8] sm:$0xff]
    %v41 = vld [vmem:[%s0 + $0x10] sm:$0xff]
    %v42 = vld [vmem:[%s0 + $0x18] sm:$0xff]
    %v43 = vld [vmem:[%s0 + $0x20] sm:$0xff]
    %v44 = vld [vmem:[%s0 + $0x28] sm:$0xff]
    %v45 = vld [vmem:[%s0 + $0x30] sm:$0xff]
    %v46 = vld [vmem:[%s0 + $0x38] sm:$0xff]
    %v47 = vld [vmem:[%s1] sm:$0xff]
    %v48 = vld [vmem:[%s1 + $0x8] sm:$0xff]
    %v49 = vld [vmem:[%s1 + $0x10] sm:$0xff]
    %v50 = vld [vmem:[%s1 + $0x18] sm:$0xff]
    %vm51 = vcmask 261120
    %v53 = vsel %vm51, %v39, 0
    %v56 = vsel %vm51, %v40, 0
    %v59 = vsel %vm51, %v41, 0
    %v62 = vsel %vm51, %v42, 0
    %v65 = vsel %vm51, %v43, 0
    %v68 = vsel %vm51, %v44, 0
    %v71 = vsel %vm51, %v45, 0
    %v74 = vsel %vm51, %v46, 0
    %76 = vmatprep.subr.mxu0 0.0
    %77 = vmatpush1.msra.mxu0 0.0
    %78 = vmatprep.subr.mxu0 0.0
    %79 = vmatpush1.msra.mxu0 0.0
    %80 = vmatprep.subr.mxu0 0.0
    %81 = vmatpush1.msra.mxu0 0.0
    %82 = vmatprep.subr.mxu0 0.0
    %83 = vmatpush1.msra.mxu0 0.0
    %84 = vmatprep.subr.mxu0 0.0
    %85 = vmatpush1.msra.mxu0 0.0
    %86 = vmatprep.subr.mxu0 0.0
    %87 = vmatpush1.msra.mxu0 0.0
    %88 = vmatprep.subr.mxu0 0.0
    %89 = vmatpush1.msra.mxu0 0.0
    %90 = vmatprep.subr.mxu0 0.0
    %91 = vmatpush1.msra.mxu0 0.0
    %92 = vmatprep.subr.mxu0 0.0
    %93 = vmatpush1.msra.mxu0 0.0
    %94 = vmatprep.subr.mxu0 0.0
    %95 = vmatpush1.msra.mxu0 0.0
    %96 = vmatprep.subr.mxu0 0.0
    %97 = vmatpush1.msra.mxu0 0.0
    %98 = vmatprep.subr.mxu0 0.0
    %99 = vmatpush1.msra.mxu0 0.0
    %100 = vmatprep.subr.mxu0 0.0
    %101 = vmatpush1.msra.mxu0 %v50
    %102 = vmatprep.subr.mxu0 0.0
    %103 = vmatpush1.msra.mxu0 %v49
    %104 = vmatprep.subr.mxu0 0.0
    %105 = vmatpush1.msra.mxu0 %v48
    %106 = vmatprep.subr.mxu0 0.0
    %107 = vmatpush1.msra.mxu0 %v47
    %108 = vmatprep.subr.mxu0 0.0
    %109 = vmatpush2.msra.mxu0 0.0
    %110 = vmatprep.subr.mxu0 0.0
    %111 = vmatpush2.msra.mxu0 0.0
    %112 = vmatprep.subr.mxu0 0.0
    %113 = vmatpush2.msra.mxu0 0.0
    %114 = vmatprep.subr.mxu0 0.0
    %115 = vmatpush2.msra.mxu0 0.0
    %116 = vmatprep.subr.mxu0 0.0
    %117 = vmatpush2.msra.mxu0 0.0
    %118 = vmatprep.subr.mxu0 0.0
    %119 = vmatpush2.msra.mxu0 0.0
    %120 = vmatprep.subr.mxu0 0.0
    %121 = vmatpush2.msra.mxu0 0.0
    %122 = vmatprep.subr.mxu0 0.0
    %123 = vmatpush2.msra.mxu0 0.0
    %124 = vmatprep.subr.mxu0 0.0
    %125 = vmatpush2.msra.mxu0 0.0
    %126 = vmatprep.subr.mxu0 0.0
    %127 = vmatpush2.msra.mxu0 0.0
    %128 = vmatprep.subr.mxu0 0.0
    %129 = vmatpush2.msra.mxu0 0.0
    %130 = vmatprep.subr.mxu0 0.0
    %131 = vmatpush2.msra.mxu0 0.0
    %132 = vmatprep.subr.mxu0 0.0
    %133 = vmatpush2.msra.mxu0 0.0
    %134 = vmatprep.subr.mxu0 0.0
    %135 = vmatpush2.msra.mxu0 0.0
    %136 = vmatprep.subr.mxu0 0.0
    %137 = vmatpush2.msra.mxu0 0.0
    %138 = vmatprep.subr.mxu0 0.0
    %139 = vmatpush2.msra.mxu0 0.0
    %140 = vmatprep.mubr.f32.mxu0 0.0
    %141 = vmatmul.mubr.f32.gmra.mxu0 %v53
    %v142 = vpop.f32.mrf.mxu0
    %v143 = vadd.f32 0.0, %v142
    %v144 = vpop.f32.mrf.mxu0
    %145 = vmatprep.mubr.f32.mxu0 0.0
    %146 = vmatmul.mubr.f32.gmra.mxu0 %v56
    %v147 = vpop.f32.mrf.mxu0
    %v148 = vadd.f32 0.0, %v147
    %v149 = vpop.f32.mrf.mxu0
    %150 = vmatprep.mubr.f32.mxu0 0.0
    %151 = vmatmul.mubr.f32.gmra.mxu0 %v59
    %v152 = vpop.f32.mrf.mxu0
    %v153 = vadd.f32 0.0, %v152
    %v154 = vpop.f32.mrf.mxu0
    %155 = vmatprep.mubr.f32.mxu0 0.0
    %156 = vmatmul.mubr.f32.gmra.mxu0 %v62
    %v157 = vpop.f32.mrf.mxu0
    %v158 = vadd.f32 0.0, %v157
    %v159 = vpop.f32.mrf.mxu0
    %160 = vmatprep.mubr.f32.mxu0 0.0
    %161 = vmatmul.mubr.f32.gmra.mxu0 %v65
    %v162 = vpop.f32.mrf.mxu0
    %v163 = vadd.f32 0.0, %v162
    %v164 = vpop.f32.mrf.mxu0
    %165 = vmatprep.mubr.f32.mxu0 0.0
    %166 = vmatmul.mubr.f32.gmra.mxu0 %v68
    %v167 = vpop.f32.mrf.mxu0
    %v168 = vadd.f32 0.0, %v167
    %v169 = vpop.f32.mrf.mxu0
    %170 = vmatprep.mubr.f32.mxu0 0.0
    %171 = vmatmul.mubr.f32.gmra.mxu0 %v71
    %v172 = vpop.f32.mrf.mxu0
    %v173 = vadd.f32 0.0, %v172
    %v174 = vpop.f32.mrf.mxu0
    %175 = vmatprep.mubr.f32.mxu0 0.0
    %176 = vmatmul.mubr.f32.gmra.mxu0 %v74
    %v177 = vpop.f32.mrf.mxu0
    %v178 = vadd.f32 0.0, %v177
    %v179 = vpop.f32.mrf.mxu0
    %180 = vdwg.mxu0
    %182 = vrot.lane.b32.xlu0 %v143, 96
    %v183 = vpop.permute.xlu0 %182
    %vm184 = vcmask 64512
    %v185 = vsel %vm184, %v143, 0
    %v187 = vsel %vm184, %v183, 0
    %189 = vmatprep.subr.mxu0 0.0
    %190 = vmatpush1.xpose.msra.mxu0 0.0
    %191 = vmatprep.subr.mxu0 0.0
    %192 = vmatpush1.xpose.msra.mxu0 0.0
    %193 = vmatprep.subr.mxu0 0.0
    %194 = vmatpush1.xpose.msra.mxu0 0.0
    %195 = vmatprep.subr.mxu0 0.0
    %196 = vmatpush1.xpose.msra.mxu0 0.0
    %197 = vmatprep.subr.mxu0 0.0
    %198 = vmatpush1.xpose.msra.mxu0 0.0
    %199 = vmatprep.subr.mxu0 0.0
    %200 = vmatpush1.xpose.msra.mxu0 0.0
    %201 = vmatprep.subr.mxu0 0.0
    %202 = vmatpush1.xpose.msra.mxu0 0.0
    %203 = vmatprep.subr.mxu0 0.0
    %204 = vmatpush1.xpose.msra.mxu0 0.0
    %205 = vmatprep.subr.mxu0 0.0
    %206 = vmatpush1.xpose.msra.mxu0 0.0
    %207 = vmatprep.subr.mxu0 0.0
    %208 = vmatpush1.xpose.msra.mxu0 0.0
    %209 = vmatprep.subr.mxu0 0.0
    %210 = vmatpush1.xpose.msra.mxu0 0.0
    %211 = vmatprep.subr.mxu0 0.0
    %212 = vmatpush1.xpose.msra.mxu0 0.0
    %213 = vmatprep.subr.mxu0 0.0
    %214 = vmatpush1.xpose.msra.mxu0 0.0
    %215 = vmatprep.subr.mxu0 0.0
    %216 = vmatpush1.xpose.msra.mxu0 0.0
    %217 = vmatprep.subr.mxu0 0.0
    %218 = vmatpush1.xpose.msra.mxu0 0.0
    %219 = vmatprep.subr.mxu0 0.0
    %220 = vmatpush1.xpose.msra.mxu0 %v187
    %221 = vmatprep.subr.mxu0 0.0
    %222 = vmatpush2.xpose.msra.mxu0 0.0
    %223 = vmatprep.subr.mxu0 0.0
    %224 = vmatpush2.xpose.msra.mxu0 0.0
    %225 = vmatprep.subr.mxu0 0.0
    %226 = vmatpush2.xpose.msra.mxu0 0.0
    %227 = vmatprep.subr.mxu0 0.0
    %228 = vmatpush2.xpose.msra.mxu0 0.0
    %229 = vmatprep.subr.mxu0 0.0
    %230 = vmatpush2.xpose.msra.mxu0 0.0
    %231 = vmatprep.subr.mxu0 0.0
    %232 = vmatpush2.xpose.msra.mxu0 0.0
    %233 = vmatprep.subr.mxu0 0.0
    %234 = vmatpush2.xpose.msra.mxu0 0.0
    %235 = vmatprep.subr.mxu0 0.0
    %236 = vmatpush2.xpose.msra.mxu0 0.0
    %237 = vmatprep.subr.mxu0 0.0
    %238 = vmatpush2.xpose.msra.mxu0 0.0
    %239 = vmatprep.subr.mxu0 0.0
    %240 = vmatpush2.xpose.msra.mxu0 0.0
    %241 = vmatprep.subr.mxu0 0.0
    %242 = vmatpush2.xpose.msra.mxu0 0.0
    %243 = vmatprep.subr.mxu0 0.0
    %244 = vmatpush2.xpose.msra.mxu0 0.0
    %245 = vmatprep.subr.mxu0 0.0
    %246 = vmatpush2.xpose.msra.mxu0 0.0
    %247 = vmatprep.subr.mxu0 0.0
    %248 = vmatpush2.xpose.msra.mxu0 0.0
    %249 = vmatprep.subr.mxu0 0.0
    %250 = vmatpush2.xpose.msra.mxu0 0.0
    %251 = vmatprep.subr.mxu0 0.0
    %252 = vmatpush2.xpose.msra.mxu0 0.0
    %253 = vmatprep.mubr.f32.mxu0 0.0
    %254 = vmatmul.mubr.f32.gmra.mxu0 %v185
    %v255 = vpop.f32.mrf.mxu0
    %v256 = vadd.f32 0.0, %v255
    %v257 = vpop.f32.mrf.mxu0
    %258 = vdwg.mxu0
    %260 = vrot.lane.b32.xlu0 %v148, 96
    %v261 = vpop.permute.xlu0 %260
    %v262 = vsel %vm184, %v148, 0
    %v264 = vsel %vm184, %v261, 0
    %266 = vmatprep.subr.mxu0 0.0
    %267 = vmatpush1.xpose.msra.mxu0 0.0
    %268 = vmatprep.subr.mxu0 0.0
    %269 = vmatpush1.xpose.msra.mxu0 0.0
    %270 = vmatprep.subr.mxu0 0.0
    %271 = vmatpush1.xpose.msra.mxu0 0.0
    %272 = vmatprep.subr.mxu0 0.0
    %273 = vmatpush1.xpose.msra.mxu0 0.0
    %274 = vmatprep.subr.mxu0 0.0
    %275 = vmatpush1.xpose.msra.mxu0 0.0
    %276 = vmatprep.subr.mxu0 0.0
    %277 = vmatpush1.xpose.msra.mxu0 0.0
    %278 = vmatprep.subr.mxu0 0.0
    %279 = vmatpush1.xpose.msra.mxu0 0.0
    %280 = vmatprep.subr.mxu0 0.0
    %281 = vmatpush1.xpose.msra.mxu0 0.0
    %282 = vmatprep.subr.mxu0 0.0
    %283 = vmatpush1.xpose.msra.mxu0 0.0
    %284 = vmatprep.subr.mxu0 0.0
    %285 = vmatpush1.xpose.msra.mxu0 0.0
    %286 = vmatprep.subr.mxu0 0.0
    %287 = vmatpush1.xpose.msra.mxu0 0.0
    %288 = vmatprep.subr.mxu0 0.0
    %289 = vmatpush1.xpose.msra.mxu0 0.0
    %290 = vmatprep.subr.mxu0 0.0
    %291 = vmatpush1.xpose.msra.mxu0 0.0
    %292 = vmatprep.subr.mxu0 0.0
    %293 = vmatpush1.xpose.msra.mxu0 0.0
    %294 = vmatprep.subr.mxu0 0.0
    %295 = vmatpush1.xpose.msra.mxu0 0.0
    %296 = vmatprep.subr.mxu0 0.0
    %297 = vmatpush1.xpose.msra.mxu0 %v264
    %298 = vmatprep.subr.mxu0 0.0
    %299 = vmatpush2.xpose.msra.mxu0 0.0
    %300 = vmatprep.subr.mxu0 0.0
    %301 = vmatpush2.xpose.msra.mxu0 0.0
    %302 = vmatprep.subr.mxu0 0.0
    %303 = vmatpush2.xpose.msra.mxu0 0.0
    %304 = vmatprep.subr.mxu0 0.0
    %305 = vmatpush2.xpose.msra.mxu0 0.0
    %306 = vmatprep.subr.mxu0 0.0
    %307 = vmatpush2.xpose.msra.mxu0 0.0
    %308 = vmatprep.subr.mxu0 0.0
    %309 = vmatpush2.xpose.msra.mxu0 0.0
    %310 = vmatprep.subr.mxu0 0.0
    %311 = vmatpush2.xpose.msra.mxu0 0.0
    %312 = vmatprep.subr.mxu0 0.0
    %313 = vmatpush2.xpose.msra.mxu0 0.0
    %314 = vmatprep.subr.mxu0 0.0
    %315 = vmatpush2.xpose.msra.mxu0 0.0
    %316 = vmatprep.subr.mxu0 0.0
    %317 = vmatpush2.xpose.msra.mxu0 0.0
    %318 = vmatprep.subr.mxu0 0.0
    %319 = vmatpush2.xpose.msra.mxu0 0.0
    %320 = vmatprep.subr.mxu0 0.0
    %321 = vmatpush2.xpose.msra.mxu0 0.0
    %322 = vmatprep.subr.mxu0 0.0
    %323 = vmatpush2.xpose.msra.mxu0 0.0
    %324 = vmatprep.subr.mxu0 0.0
    %325 = vmatpush2.xpose.msra.mxu0 0.0
    %326 = vmatprep.subr.mxu0 0.0
    %327 = vmatpush2.xpose.msra.mxu0 0.0
    %328 = vmatprep.subr.mxu0 0.0
    %329 = vmatpush2.xpose.msra.mxu0 0.0
    %330 = vmatprep.mubr.f32.mxu0 0.0
    %331 = vmatmul.mubr.f32.gmra.mxu0 %v262
    %v332 = vpop.f32.mrf.mxu0
    %v333 = vadd.f32 0.0, %v332
    %v334 = vpop.f32.mrf.mxu0
    %335 = vdwg.mxu0
    %337 = vrot.lane.b32.xlu0 %v153, 96
    %v338 = vpop.permute.xlu0 %337
    %v339 = vsel %vm184, %v153, 0
    %v341 = vsel %vm184, %v338, 0
    %343 = vmatprep.subr.mxu0 0.0
    %344 = vmatpush1.xpose.msra.mxu0 0.0
    %345 = vmatprep.subr.mxu0 0.0
    %346 = vmatpush1.xpose.msra.mxu0 0.0
    %347 = vmatprep.subr.mxu0 0.0
    %348 = vmatpush1.xpose.msra.mxu0 0.0
    %349 = vmatprep.subr.mxu0 0.0
    %350 = vmatpush1.xpose.msra.mxu0 0.0
    %351 = vmatprep.subr.mxu0 0.0
    %352 = vmatpush1.xpose.msra.mxu0 0.0
    %353 = vmatprep.subr.mxu0 0.0
    %354 = vmatpush1.xpose.msra.mxu0 0.0
    %355 = vmatprep.subr.mxu0 0.0
    %356 = vmatpush1.xpose.msra.mxu0 0.0
    %357 = vmatprep.subr.mxu0 0.0
    %358 = vmatpush1.xpose.msra.mxu0 0.0
    %359 = vmatprep.subr.mxu0 0.0
    %360 = vmatpush1.xpose.msra.mxu0 0.0
    %361 = vmatprep.subr.mxu0 0.0
    %362 = vmatpush1.xpose.msra.mxu0 0.0
    %363 = vmatprep.subr.mxu0 0.0
    %364 = vmatpush1.xpose.msra.mxu0 0.0
    %365 = vmatprep.subr.mxu0 0.0
    %366 = vmatpush1.xpose.msra.mxu0 0.0
    %367 = vmatprep.subr.mxu0 0.0
    %368 = vmatpush1.xpose.msra.mxu0 0.0
    %369 = vmatprep.subr.mxu0 0.0
    %370 = vmatpush1.xpose.msra.mxu0 0.0
    %371 = vmatprep.subr.mxu0 0.0
    %372 = vmatpush1.xpose.msra.mxu0 0.0
    %373 = vmatprep.subr.mxu0 0.0
    %374 = vmatpush1.xpose.msra.mxu0 %v341
    %375 = vmatprep.subr.mxu0 0.0
    %376 = vmatpush2.xpose.msra.mxu0 0.0
    %377 = vmatprep.subr.mxu0 0.0
    %378 = vmatpush2.xpose.msra.mxu0 0.0
    %379 = vmatprep.subr.mxu0 0.0
    %380 = vmatpush2.xpose.msra.mxu0 0.0
    %381 = vmatprep.subr.mxu0 0.0
    %382 = vmatpush2.xpose.msra.mxu0 0.0
    %383 = vmatprep.subr.mxu0 0.0
    %384 = vmatpush2.xpose.msra.mxu0 0.0
    %385 = vmatprep.subr.mxu0 0.0
    %386 = vmatpush2.xpose.msra.mxu0 0.0
    %387 = vmatprep.subr.mxu0 0.0
    %388 = vmatpush2.xpose.msra.mxu0 0.0
    %389 = vmatprep.subr.mxu0 0.0
    %390 = vmatpush2.xpose.msra.mxu0 0.0
    %391 = vmatprep.subr.mxu0 0.0
    %392 = vmatpush2.xpose.msra.mxu0 0.0
    %393 = vmatprep.subr.mxu0 0.0
    %394 = vmatpush2.xpose.msra.mxu0 0.0
    %395 = vmatprep.subr.mxu0 0.0
    %396 = vmatpush2.xpose.msra.mxu0 0.0
    %397 = vmatprep.subr.mxu0 0.0
    %398 = vmatpush2.xpose.msra.mxu0 0.0
    %399 = vmatprep.subr.mxu0 0.0
    %400 = vmatpush2.xpose.msra.mxu0 0.0
    %401 = vmatprep.subr.mxu0 0.0
    %402 = vmatpush2.xpose.msra.mxu0 0.0
    %403 = vmatprep.subr.mxu0 0.0
    %404 = vmatpush2.xpose.msra.mxu0 0.0
    %405 = vmatprep.subr.mxu0 0.0
    %406 = vmatpush2.xpose.msra.mxu0 0.0
    %407 = vmatprep.mubr.f32.mxu0 0.0
    %408 = vmatmul.mubr.f32.gmra.mxu0 %v339
    %v409 = vpop.f32.mrf.mxu0
    %v410 = vadd.f32 0.0, %v409
    %v411 = vpop.f32.mrf.mxu0
    %412 = vdwg.mxu0
    %414 = vrot.lane.b32.xlu0 %v158, 96
    %v415 = vpop.permute.xlu0 %414
    %v416 = vsel %vm184, %v158, 0
    %v418 = vsel %vm184, %v415, 0
    %420 = vmatprep.subr.mxu0 0.0
    %421 = vmatpush1.xpose.msra.mxu0 0.0
    %422 = vmatprep.subr.mxu0 0.0
    %423 = vmatpush1.xpose.msra.mxu0 0.0
    %424 = vmatprep.subr.mxu0 0.0
    %425 = vmatpush1.xpose.msra.mxu0 0.0
    %426 = vmatprep.subr.mxu0 0.0
    %427 = vmatpush1.xpose.msra.mxu0 0.0
    %428 = vmatprep.subr.mxu0 0.0
    %429 = vmatpush1.xpose.msra.mxu0 0.0
    %430 = vmatprep.subr.mxu0 0.0
    %431 = vmatpush1.xpose.msra.mxu0 0.0
    %432 = vmatprep.subr.mxu0 0.0
    %433 = vmatpush1.xpose.msra.mxu0 0.0
    %434 = vmatprep.subr.mxu0 0.0
    %435 = vmatpush1.xpose.msra.mxu0 0.0
    %436 = vmatprep.subr.mxu0 0.0
    %437 = vmatpush1.xpose.msra.mxu0 0.0
    %438 = vmatprep.subr.mxu0 0.0
    %439 = vmatpush1.xpose.msra.mxu0 0.0
    %440 = vmatprep.subr.mxu0 0.0
    %441 = vmatpush1.xpose.msra.mxu0 0.0
    %442 = vmatprep.subr.mxu0 0.0
    %443 = vmatpush1.xpose.msra.mxu0 0.0
    %444 = vmatprep.subr.mxu0 0.0
    %445 = vmatpush1.xpose.msra.mxu0 0.0
    %446 = vmatprep.subr.mxu0 0.0
    %447 = vmatpush1.xpose.msra.mxu0 0.0
    %448 = vmatprep.subr.mxu0 0.0
    %449 = vmatpush1.xpose.msra.mxu0 0.0
    %450 = vmatprep.subr.mxu0 0.0
    %451 = vmatpush1.xpose.msra.mxu0 %v418
    %452 = vmatprep.subr.mxu0 0.0
    %453 = vmatpush2.xpose.msra.mxu0 0.0
    %454 = vmatprep.subr.mxu0 0.0
    %455 = vmatpush2.xpose.msra.mxu0 0.0
    %456 = vmatprep.subr.mxu0 0.0
    %457 = vmatpush2.xpose.msra.mxu0 0.0
    %458 = vmatprep.subr.mxu0 0.0
    %459 = vmatpush2.xpose.msra.mxu0 0.0
    %460 = vmatprep.subr.mxu0 0.0
    %461 = vmatpush2.xpose.msra.mxu0 0.0
    %462 = vmatprep.subr.mxu0 0.0
    %463 = vmatpush2.xpose.msra.mxu0 0.0
    %464 = vmatprep.subr.mxu0 0.0
    %465 = vmatpush2.xpose.msra.mxu0 0.0
    %466 = vmatprep.subr.mxu0 0.0
    %467 = vmatpush2.xpose.msra.mxu0 0.0
    %468 = vmatprep.subr.mxu0 0.0
    %469 = vmatpush2.xpose.msra.mxu0 0.0
    %470 = vmatprep.subr.mxu0 0.0
    %471 = vmatpush2.xpose.msra.mxu0 0.0
    %472 = vmatprep.subr.mxu0 0.0
    %473 = vmatpush2.xpose.msra.mxu0 0.0
    %474 = vmatprep.subr.mxu0 0.0
    %475 = vmatpush2.xpose.msra.mxu0 0.0
    %476 = vmatprep.subr.mxu0 0.0
    %477 = vmatpush2.xpose.msra.mxu0 0.0
    %478 = vmatprep.subr.mxu0 0.0
    %479 = vmatpush2.xpose.msra.mxu0 0.0
    %480 = vmatprep.subr.mxu0 0.0
    %481 = vmatpush2.xpose.msra.mxu0 0.0
    %482 = vmatprep.subr.mxu0 0.0
    %483 = vmatpush2.xpose.msra.mxu0 0.0
    %484 = vmatprep.mubr.f32.mxu0 0.0
    %485 = vmatmul.mubr.f32.gmra.mxu0 %v416
    %v486 = vpop.f32.mrf.mxu0
    %v487 = vadd.f32 0.0, %v486
    %v488 = vpop.f32.mrf.mxu0
    %489 = vdwg.mxu0
    %491 = vrot.lane.b32.xlu0 %v163, 96
    %v492 = vpop.permute.xlu0 %491
    %v493 = vsel %vm184, %v163, 0
    %v495 = vsel %vm184, %v492, 0
    %497 = vmatprep.subr.mxu0 0.0
    %498 = vmatpush1.xpose.msra.mxu0 0.0
    %499 = vmatprep.subr.mxu0 0.0
    %500 = vmatpush1.xpose.msra.mxu0 0.0
    %501 = vmatprep.subr.mxu0 0.0
    %502 = vmatpush1.xpose.msra.mxu0 0.0
    %503 = vmatprep.subr.mxu0 0.0
    %504 = vmatpush1.xpose.msra.mxu0 0.0
    %505 = vmatprep.subr.mxu0 0.0
    %506 = vmatpush1.xpose.msra.mxu0 0.0
    %507 = vmatprep.subr.mxu0 0.0
    %508 = vmatpush1.xpose.msra.mxu0 0.0
    %509 = vmatprep.subr.mxu0 0.0
    %510 = vmatpush1.xpose.msra.mxu0 0.0
    %511 = vmatprep.subr.mxu0 0.0
    %512 = vmatpush1.xpose.msra.mxu0 0.0
    %513 = vmatprep.subr.mxu0 0.0
    %514 = vmatpush1.xpose.msra.mxu0 0.0
    %515 = vmatprep.subr.mxu0 0.0
    %516 = vmatpush1.xpose.msra.mxu0 0.0
    %517 = vmatprep.subr.mxu0 0.0
    %518 = vmatpush1.xpose.msra.mxu0 0.0
    %519 = vmatprep.subr.mxu0 0.0
    %520 = vmatpush1.xpose.msra.mxu0 0.0
    %521 = vmatprep.subr.mxu0 0.0
    %522 = vmatpush1.xpose.msra.mxu0 0.0
    %523 = vmatprep.subr.mxu0 0.0
    %524 = vmatpush1.xpose.msra.mxu0 0.0
    %525 = vmatprep.subr.mxu0 0.0
    %526 = vmatpush1.xpose.msra.mxu0 0.0
    %527 = vmatprep.subr.mxu0 0.0
    %528 = vmatpush1.xpose.msra.mxu0 %v495
    %529 = vmatprep.subr.mxu0 0.0
    %530 = vmatpush2.xpose.msra.mxu0 0.0
    %531 = vmatprep.subr.mxu0 0.0
    %532 = vmatpush2.xpose.msra.mxu0 0.0
    %533 = vmatprep.subr.mxu0 0.0
    %534 = vmatpush2.xpose.msra.mxu0 0.0
    %535 = vmatprep.subr.mxu0 0.0
    %536 = vmatpush2.xpose.msra.mxu0 0.0
    %537 = vmatprep.subr.mxu0 0.0
    %538 = vmatpush2.xpose.msra.mxu0 0.0
    %539 = vmatprep.subr.mxu0 0.0
    %540 = vmatpush2.xpose.msra.mxu0 0.0
    %541 = vmatprep.subr.mxu0 0.0
    %542 = vmatpush2.xpose.msra.mxu0 0.0
    %543 = vmatprep.subr.mxu0 0.0
    %544 = vmatpush2.xpose.msra.mxu0 0.0
    %545 = vmatprep.subr.mxu0 0.0
    %546 = vmatpush2.xpose.msra.mxu0 0.0
    %547 = vmatprep.subr.mxu0 0.0
    %548 = vmatpush2.xpose.msra.mxu0 0.0
    %549 = vmatprep.subr.mxu0 0.0
    %550 = vmatpush2.xpose.msra.mxu0 0.0
    %551 = vmatprep.subr.mxu0 0.0
    %552 = vmatpush2.xpose.msra.mxu0 0.0
    %553 = vmatprep.subr.mxu0 0.0
    %554 = vmatpush2.xpose.msra.mxu0 0.0
    %555 = vmatprep.subr.mxu0 0.0
    %556 = vmatpush2.xpose.msra.mxu0 0.0
    %557 = vmatprep.subr.mxu0 0.0
    %558 = vmatpush2.xpose.msra.mxu0 0.0
    %559 = vmatprep.subr.mxu0 0.0
    %560 = vmatpush2.xpose.msra.mxu0 0.0
    %561 = vmatprep.mubr.f32.mxu0 0.0
    %562 = vmatmul.mubr.f32.gmra.mxu0 %v493
    %v563 = vpop.f32.mrf.mxu0
    %v564 = vadd.f32 0.0, %v563
    %v565 = vpop.f32.mrf.mxu0
    %566 = vdwg.mxu0
    %568 = vrot.lane.b32.xlu0 %v168, 96
    %v569 = vpop.permute.xlu0 %568
    %v570 = vsel %vm184, %v168, 0
    %v572 = vsel %vm184, %v569, 0
    %574 = vmatprep.subr.mxu0 0.0
    %575 = vmatpush1.xpose.msra.mxu0 0.0
    %576 = vmatprep.subr.mxu0 0.0
    %577 = vmatpush1.xpose.msra.mxu0 0.0
    %578 = vmatprep.subr.mxu0 0.0
    %579 = vmatpush1.xpose.msra.mxu0 0.0
    %580 = vmatprep.subr.mxu0 0.0
    %581 = vmatpush1.xpose.msra.mxu0 0.0
    %582 = vmatprep.subr.mxu0 0.0
    %583 = vmatpush1.xpose.msra.mxu0 0.0
    %584 = vmatprep.subr.mxu0 0.0
    %585 = vmatpush1.xpose.msra.mxu0 0.0
    %586 = vmatprep.subr.mxu0 0.0
    %587 = vmatpush1.xpose.msra.mxu0 0.0
    %588 = vmatprep.subr.mxu0 0.0
    %589 = vmatpush1.xpose.msra.mxu0 0.0
    %590 = vmatprep.subr.mxu0 0.0
    %591 = vmatpush1.xpose.msra.mxu0 0.0
    %592 = vmatprep.subr.mxu0 0.0
    %593 = vmatpush1.xpose.msra.mxu0 0.0
    %594 = vmatprep.subr.mxu0 0.0
    %595 = vmatpush1.xpose.msra.mxu0 0.0
    %596 = vmatprep.subr.mxu0 0.0
    %597 = vmatpush1.xpose.msra.mxu0 0.0
    %598 = vmatprep.subr.mxu0 0.0
    %599 = vmatpush1.xpose.msra.mxu0 0.0
    %600 = vmatprep.subr.mxu0 0.0
    %601 = vmatpush1.xpose.msra.mxu0 0.0
    %602 = vmatprep.subr.mxu0 0.0
    %603 = vmatpush1.xpose.msra.mxu0 0.0
    %604 = vmatprep.subr.mxu0 0.0
    %605 = vmatpush1.xpose.msra.mxu0 %v572
    %606 = vmatprep.subr.mxu0 0.0
    %607 = vmatpush2.xpose.msra.mxu0 0.0
    %608 = vmatprep.subr.mxu0 0.0
    %609 = vmatpush2.xpose.msra.mxu0 0.0
    %610 = vmatprep.subr.mxu0 0.0
    %611 = vmatpush2.xpose.msra.mxu0 0.0
    %612 = vmatprep.subr.mxu0 0.0
    %613 = vmatpush2.xpose.msra.mxu0 0.0
    %614 = vmatprep.subr.mxu0 0.0
    %615 = vmatpush2.xpose.msra.mxu0 0.0
    %616 = vmatprep.subr.mxu0 0.0
    %617 = vmatpush2.xpose.msra.mxu0 0.0
    %618 = vmatprep.subr.mxu0 0.0
    %619 = vmatpush2.xpose.msra.mxu0 0.0
    %620 = vmatprep.subr.mxu0 0.0
    %621 = vmatpush2.xpose.msra.mxu0 0.0
    %622 = vmatprep.subr.mxu0 0.0
    %623 = vmatpush2.xpose.msra.mxu0 0.0
    %624 = vmatprep.subr.mxu0 0.0
    %625 = vmatpush2.xpose.msra.mxu0 0.0
    %626 = vmatprep.subr.mxu0 0.0
    %627 = vmatpush2.xpose.msra.mxu0 0.0
    %628 = vmatprep.subr.mxu0 0.0
    %629 = vmatpush2.xpose.msra.mxu0 0.0
    %630 = vmatprep.subr.mxu0 0.0
    %631 = vmatpush2.xpose.msra.mxu0 0.0
    %632 = vmatprep.subr.mxu0 0.0
    %633 = vmatpush2.xpose.msra.mxu0 0.0
    %634 = vmatprep.subr.mxu0 0.0
    %635 = vmatpush2.xpose.msra.mxu0 0.0
    %636 = vmatprep.subr.mxu0 0.0
    %637 = vmatpush2.xpose.msra.mxu0 0.0
    %638 = vmatprep.mubr.f32.mxu0 0.0
    %639 = vmatmul.mubr.f32.gmra.mxu0 %v570
    %v640 = vpop.f32.mrf.mxu0
    %v641 = vadd.f32 0.0, %v640
    %v642 = vpop.f32.mrf.mxu0
    %643 = vdwg.mxu0
    %645 = vrot.lane.b32.xlu0 %v173, 96
    %v646 = vpop.permute.xlu0 %645
    %v647 = vsel %vm184, %v173, 0
    %v649 = vsel %vm184, %v646, 0
    %651 = vmatprep.subr.mxu0 0.0
    %652 = vmatpush1.xpose.msra.mxu0 0.0
    %653 = vmatprep.subr.mxu0 0.0
    %654 = vmatpush1.xpose.msra.mxu0 0.0
    %655 = vmatprep.subr.mxu0 0.0
    %656 = vmatpush1.xpose.msra.mxu0 0.0
    %657 = vmatprep.subr.mxu0 0.0
    %658 = vmatpush1.xpose.msra.mxu0 0.0
    %659 = vmatprep.subr.mxu0 0.0
    %660 = vmatpush1.xpose.msra.mxu0 0.0
    %661 = vmatprep.subr.mxu0 0.0
    %662 = vmatpush1.xpose.msra.mxu0 0.0
    %663 = vmatprep.subr.mxu0 0.0
    %664 = vmatpush1.xpose.msra.mxu0 0.0
    %665 = vmatprep.subr.mxu0 0.0
    %666 = vmatpush1.xpose.msra.mxu0 0.0
    %667 = vmatprep.subr.mxu0 0.0
    %668 = vmatpush1.xpose.msra.mxu0 0.0
    %669 = vmatprep.subr.mxu0 0.0
    %670 = vmatpush1.xpose.msra.mxu0 0.0
    %671 = vmatprep.subr.mxu0 0.0
    %672 = vmatpush1.xpose.msra.mxu0 0.0
    %673 = vmatprep.subr.mxu0 0.0
    %674 = vmatpush1.xpose.msra.mxu0 0.0
    %675 = vmatprep.subr.mxu0 0.0
    %676 = vmatpush1.xpose.msra.mxu0 0.0
    %677 = vmatprep.subr.mxu0 0.0
    %678 = vmatpush1.xpose.msra.mxu0 0.0
    %679 = vmatprep.subr.mxu0 0.0
    %680 = vmatpush1.xpose.msra.mxu0 0.0
    %681 = vmatprep.subr.mxu0 0.0
    %682 = vmatpush1.xpose.msra.mxu0 %v649
    %683 = vmatprep.subr.mxu0 0.0
    %684 = vmatpush2.xpose.msra.mxu0 0.0
    %685 = vmatprep.subr.mxu0 0.0
    %686 = vmatpush2.xpose.msra.mxu0 0.0
    %687 = vmatprep.subr.mxu0 0.0
    %688 = vmatpush2.xpose.msra.mxu0 0.0
    %689 = vmatprep.subr.mxu0 0.0
    %690 = vmatpush2.xpose.msra.mxu0 0.0
    %691 = vmatprep.subr.mxu0 0.0
    %692 = vmatpush2.xpose.msra.mxu0 0.0
    %693 = vmatprep.subr.mxu0 0.0
    %694 = vmatpush2.xpose.msra.mxu0 0.0
    %695 = vmatprep.subr.mxu0 0.0
    %696 = vmatpush2.xpose.msra.mxu0 0.0
    %697 = vmatprep.subr.mxu0 0.0
    %698 = vmatpush2.xpose.msra.mxu0 0.0
    %699 = vmatprep.subr.mxu0 0.0
    %700 = vmatpush2.xpose.msra.mxu0 0.0
    %701 = vmatprep.subr.mxu0 0.0
    %702 = vmatpush2.xpose.msra.mxu0 0.0
    %703 = vmatprep.subr.mxu0 0.0
    %704 = vmatpush2.xpose.msra.mxu0 0.0
    %705 = vmatprep.subr.mxu0 0.0
    %706 = vmatpush2.xpose.msra.mxu0 0.0
    %707 = vmatprep.subr.mxu0 0.0
    %708 = vmatpush2.xpose.msra.mxu0 0.0
    %709 = vmatprep.subr.mxu0 0.0
    %710 = vmatpush2.xpose.msra.mxu0 0.0
    %711 = vmatprep.subr.mxu0 0.0
    %712 = vmatpush2.xpose.msra.mxu0 0.0
    %713 = vmatprep.subr.mxu0 0.0
    %714 = vmatpush2.xpose.msra.mxu0 0.0
    %715 = vmatprep.mubr.f32.mxu0 0.0
    %716 = vmatmul.mubr.f32.gmra.mxu0 %v647
    %v717 = vpop.f32.mrf.mxu0
    %v718 = vadd.f32 0.0, %v717
    %v719 = vpop.f32.mrf.mxu0
    %720 = vdwg.mxu0
    %722 = vrot.lane.b32.xlu0 %v178, 96
    %v723 = vpop.permute.xlu0 %722
    %v724 = vsel %vm184, %v178, 0
    %v726 = vsel %vm184, %v723, 0
    %728 = vmatprep.subr.mxu0 0.0
    %729 = vmatpush1.xpose.msra.mxu0 0.0
    %730 = vmatprep.subr.mxu0 0.0
    %731 = vmatpush1.xpose.msra.mxu0 0.0
    %732 = vmatprep.subr.mxu0 0.0
    %733 = vmatpush1.xpose.msra.mxu0 0.0
    %734 = vmatprep.subr.mxu0 0.0
    %735 = vmatpush1.xpose.msra.mxu0 0.0
    %736 = vmatprep.subr.mxu0 0.0
    %737 = vmatpush1.xpose.msra.mxu0 0.0
    %738 = vmatprep.subr.mxu0 0.0
    %739 = vmatpush1.xpose.msra.mxu0 0.0
    %740 = vmatprep.subr.mxu0 0.0
    %741 = vmatpush1.xpose.msra.mxu0 0.0
    %742 = vmatprep.subr.mxu0 0.0
    %743 = vmatpush1.xpose.msra.mxu0 0.0
    %744 = vmatprep.subr.mxu0 0.0
    %745 = vmatpush1.xpose.msra.mxu0 0.0
    %746 = vmatprep.subr.mxu0 0.0
    %747 = vmatpush1.xpose.msra.mxu0 0.0
    %748 = vmatprep.subr.mxu0 0.0
    %749 = vmatpush1.xpose.msra.mxu0 0.0
    %750 = vmatprep.subr.mxu0 0.0
    %751 = vmatpush1.xpose.msra.mxu0 0.0
    %752 = vmatprep.subr.mxu0 0.0
    %753 = vmatpush1.xpose.msra.mxu0 0.0
    %754 = vmatprep.subr.mxu0 0.0
    %755 = vmatpush1.xpose.msra.mxu0 0.0
    %756 = vmatprep.subr.mxu0 0.0
    %757 = vmatpush1.xpose.msra.mxu0 0.0
    %758 = vmatprep.subr.mxu0 0.0
    %759 = vmatpush1.xpose.msra.mxu0 %v726
    %760 = vmatprep.subr.mxu0 0.0
    %761 = vmatpush2.xpose.msra.mxu0 0.0
    %762 = vmatprep.subr.mxu0 0.0
    %763 = vmatpush2.xpose.msra.mxu0 0.0
    %764 = vmatprep.subr.mxu0 0.0
    %765 = vmatpush2.xpose.msra.mxu0 0.0
    %766 = vmatprep.subr.mxu0 0.0
    %767 = vmatpush2.xpose.msra.mxu0 0.0
    %768 = vmatprep.subr.mxu0 0.0
    %769 = vmatpush2.xpose.msra.mxu0 0.0
    %770 = vmatprep.subr.mxu0 0.0
    %771 = vmatpush2.xpose.msra.mxu0 0.0
    %772 = vmatprep.subr.mxu0 0.0
    %773 = vmatpush2.xpose.msra.mxu0 0.0
    %774 = vmatprep.subr.mxu0 0.0
    %775 = vmatpush2.xpose.msra.mxu0 0.0
    %776 = vmatprep.subr.mxu0 0.0
    %777 = vmatpush2.xpose.msra.mxu0 0.0
    %778 = vmatprep.subr.mxu0 0.0
    %779 = vmatpush2.xpose.msra.mxu0 0.0
    %780 = vmatprep.subr.mxu0 0.0
    %781 = vmatpush2.xpose.msra.mxu0 0.0
    %782 = vmatprep.subr.mxu0 0.0
    %783 = vmatpush2.xpose.msra.mxu0 0.0
    %784 = vmatprep.subr.mxu0 0.0
    %785 = vmatpush2.xpose.msra.mxu0 0.0
    %786 = vmatprep.subr.mxu0 0.0
    %787 = vmatpush2.xpose.msra.mxu0 0.0
    %788 = vmatprep.subr.mxu0 0.0
    %789 = vmatpush2.xpose.msra.mxu0 0.0
    %790 = vmatprep.subr.mxu0 0.0
    %791 = vmatpush2.xpose.msra.mxu0 0.0
    %792 = vmatprep.mubr.f32.mxu0 0.0
    %793 = vmatmul.mubr.f32.gmra.mxu0 %v724
    %v794 = vpop.f32.mrf.mxu0
    %v795 = vadd.f32 0.0, %v794
    %v796 = vpop.f32.mrf.mxu0
    %797 = vdwg.mxu0
    %v798 = vsel %vm184, %v256, -inf
    %799 = vmax.xlane.f32.xlu0 %v798
    %v800 = vpop.xlane.xlu0 %799
    %v801 = vsel %vm184, %v333, -inf
    %802 = vmax.xlane.f32.xlu0 %v801
    %v803 = vpop.xlane.xlu0 %802
    %v804 = vsel %vm184, %v410, -inf
    %805 = vmax.xlane.f32.xlu0 %v804
    %v806 = vpop.xlane.xlu0 %805
    %v807 = vsel %vm184, %v487, -inf
    %808 = vmax.xlane.f32.xlu0 %v807
    %v809 = vpop.xlane.xlu0 %808
    %v810 = vsel %vm184, %v564, -inf
    %811 = vmax.xlane.f32.xlu0 %v810
    %v812 = vpop.xlane.xlu0 %811
    %v813 = vsel %vm184, %v641, -inf
    %814 = vmax.xlane.f32.xlu0 %v813
    %v815 = vpop.xlane.xlu0 %814
    %v816 = vsel %vm184, %v718, -inf
    %817 = vmax.xlane.f32.xlu0 %v816
    %v818 = vpop.xlane.xlu0 %817
    %v819 = vsel %vm184, %v795, -inf
    %820 = vmax.xlane.f32.xlu0 %v819
    %v821 = vpop.xlane.xlu0 %820
    %v822 = vsub.f32 %v256, %v800
    %v823 = vsub.f32 %v333, %v803
    %v824 = vsub.f32 %v410, %v806
    %v825 = vsub.f32 %v487, %v809
    %v826 = vsub.f32 %v564, %v812
    %v827 = vsub.f32 %v641, %v815
    %v828 = vsub.f32 %v718, %v818
    %v829 = vsub.f32 %v795, %v821
    %v830 = vmul.f32 %v822, 1.442695
    %v831 = vpow.pop %v830
    %v832 = vmul.f32 %v823, 1.442695
    %v833 = vpow.pop %v832
    %v834 = vmul.f32 %v824, 1.442695
    %v835 = vpow.pop %v834
    %v836 = vmul.f32 %v825, 1.442695
    %v837 = vpow.pop %v836
    %v838 = vmul.f32 %v826, 1.442695
    %v839 = vpow.pop %v838
    %v840 = vmul.f32 %v827, 1.442695
    %v841 = vpow.pop %v840
    %v842 = vmul.f32 %v828, 1.442695
    %v843 = vpow.pop %v842
    %v844 = vmul.f32 %v829, 1.442695
    %v845 = vpow.pop %v844
    %v846 = vsel %vm184, %v831, 0.0
    %847 = vadd.xlane.f32.xlu0 %v846
    %v848 = vpop.xlane.xlu0 %847
    %v849 = vsel %vm184, %v833, 0.0
    %850 = vadd.xlane.f32.xlu0 %v849
    %v851 = vpop.xlane.xlu0 %850
    %v852 = vsel %vm184, %v835, 0.0
    %853 = vadd.xlane.f32.xlu0 %v852
    %v854 = vpop.xlane.xlu0 %853
    %v855 = vsel %vm184, %v837, 0.0
    %856 = vadd.xlane.f32.xlu0 %v855
    %v857 = vpop.xlane.xlu0 %856
    %v858 = vsel %vm184, %v839, 0.0
    %859 = vadd.xlane.f32.xlu0 %v858
    %v860 = vpop.xlane.xlu0 %859
    %v861 = vsel %vm184, %v841, 0.0
    %862 = vadd.xlane.f32.xlu0 %v861
    %v863 = vpop.xlane.xlu0 %862
    %v864 = vsel %vm184, %v843, 0.0
    %865 = vadd.xlane.f32.xlu0 %v864
    %v866 = vpop.xlane.xlu0 %865
    %v867 = vsel %vm184, %v845, 0.0
    %868 = vadd.xlane.f32.xlu0 %v867
    %v869 = vpop.xlane.xlu0 %868
    %v870 = vrcp.pop %v848
    %v871 = vrcp.pop %v851
    %v872 = vrcp.pop %v854
    %v873 = vrcp.pop %v857
    %v874 = vrcp.pop %v860
    %v875 = vrcp.pop %v863
    %v876 = vrcp.pop %v866
    %v877 = vrcp.pop %v869
    %v878 = vmul.f32 %v831, %v870
    %v879 = vmul.f32 %v833, %v871
    %v880 = vmul.f32 %v835, %v872
    %v881 = vmul.f32 %v837, %v873
    %v882 = vmul.f32 %v839, %v874
    %v883 = vmul.f32 %v841, %v875
    %v884 = vmul.f32 %v843, %v876
    %v885 = vmul.f32 %v845, %v877
    %886 = vrot.lane.b32.xlu0 %v143, 64
    %v887 = vpop.permute.xlu0 %886
    %v890 = vsel %vm184, %v878, 0
    %892 = vmatprep.subr.mxu0 0.0
    %893 = vmatpush1.msra.mxu0 0.0
    %894 = vmatprep.subr.mxu0 0.0
    %895 = vmatpush1.msra.mxu0 0.0
    %896 = vmatprep.subr.mxu0 0.0
    %897 = vmatpush1.msra.mxu0 0.0
    %898 = vmatprep.subr.mxu0 0.0
    %899 = vmatpush1.msra.mxu0 0.0
    %900 = vmatprep.subr.mxu0 0.0
    %901 = vmatpush1.msra.mxu0 0.0
    %902 = vmatprep.subr.mxu0 0.0
    %903 = vmatpush1.msra.mxu0 0.0
    %904 = vmatprep.subr.mxu0 0.0
    %905 = vmatpush1.msra.mxu0 0.0
    %906 = vmatprep.subr.mxu0 0.0
    %907 = vmatpush1.msra.mxu0 0.0
    %908 = vmatprep.subr.mxu0 0.0
    %909 = vmatpush1.msra.mxu0 0.0
    %910 = vmatprep.subr.mxu0 0.0
    %911 = vmatpush1.msra.mxu0 0.0
    %912 = vmatprep.subr.mxu0 0.0
    %913 = vmatpush1.msra.mxu0 0.0
    %914 = vmatprep.subr.mxu0 0.0
    %915 = vmatpush1.msra.mxu0 0.0
    %916 = vmatprep.subr.mxu0 0.0
    %917 = vmatpush1.msra.mxu0 0.0
    %918 = vmatprep.subr.mxu0 0.0
    %919 = vmatpush1.msra.mxu0 0.0
    %920 = vmatprep.subr.mxu0 0.0
    %921 = vmatpush1.msra.mxu0 0.0
    %922 = vmatprep.subr.mxu0 0.0
    %923 = vmatpush1.msra.mxu0 %v887
    %924 = vmatprep.subr.mxu0 0.0
    %925 = vmatpush2.msra.mxu0 0.0
    %926 = vmatprep.subr.mxu0 0.0
    %927 = vmatpush2.msra.mxu0 0.0
    %928 = vmatprep.subr.mxu0 0.0
    %929 = vmatpush2.msra.mxu0 0.0
    %930 = vmatprep.subr.mxu0 0.0
    %931 = vmatpush2.msra.mxu0 0.0
    %932 = vmatprep.subr.mxu0 0.0
    %933 = vmatpush2.msra.mxu0 0.0
    %934 = vmatprep.subr.mxu0 0.0
    %935 = vmatpush2.msra.mxu0 0.0
    %936 = vmatprep.subr.mxu0 0.0
    %937 = vmatpush2.msra.mxu0 0.0
    %938 = vmatprep.subr.mxu0 0.0
    %939 = vmatpush2.msra.mxu0 0.0
    %940 = vmatprep.subr.mxu0 0.0
    %941 = vmatpush2.msra.mxu0 0.0
    %942 = vmatprep.subr.mxu0 0.0
    %943 = vmatpush2.msra.mxu0 0.0
    %944 = vmatprep.subr.mxu0 0.0
    %945 = vmatpush2.msra.mxu0 0.0
    %946 = vmatprep.subr.mxu0 0.0
    %947 = vmatpush2.msra.mxu0 0.0
    %948 = vmatprep.subr.mxu0 0.0
    %949 = vmatpush2.msra.mxu0 0.0
    %950 = vmatprep.subr.mxu0 0.0
    %951 = vmatpush2.msra.mxu0 0.0
    %952 = vmatprep.subr.mxu0 0.0
    %953 = vmatpush2.msra.mxu0 0.0
    %954 = vmatprep.subr.mxu0 0.0
    %955 = vmatpush2.msra.mxu0 0.0
    %956 = vmatprep.mubr.f32.mxu0 0.0
    %957 = vmatmul.mubr.f32.gmra.mxu0 %v890
    %v958 = vpop.f32.mrf.mxu0
    %v959 = vadd.f32 0.0, %v958
    %v960 = vpop.f32.mrf.mxu0
    %961 = vdwg.mxu0
    %962 = vrot.lane.b32.xlu0 %v148, 64
    %v963 = vpop.permute.xlu0 %962
    %v966 = vsel %vm184, %v879, 0
    %968 = vmatprep.subr.mxu0 0.0
    %969 = vmatpush1.msra.mxu0 0.0
    %970 = vmatprep.subr.mxu0 0.0
    %971 = vmatpush1.msra.mxu0 0.0
    %972 = vmatprep.subr.mxu0 0.0
    %973 = vmatpush1.msra.mxu0 0.0
    %974 = vmatprep.subr.mxu0 0.0
    %975 = vmatpush1.msra.mxu0 0.0
    %976 = vmatprep.subr.mxu0 0.0
    %977 = vmatpush1.msra.mxu0 0.0
    %978 = vmatprep.subr.mxu0 0.0
    %979 = vmatpush1.msra.mxu0 0.0
    %980 = vmatprep.subr.mxu0 0.0
    %981 = vmatpush1.msra.mxu0 0.0
    %982 = vmatprep.subr.mxu0 0.0
    %983 = vmatpush1.msra.mxu0 0.0
    %984 = vmatprep.subr.mxu0 0.0
    %985 = vmatpush1.msra.mxu0 0.0
    %986 = vmatprep.subr.mxu0 0.0
    %987 = vmatpush1.msra.mxu0 0.0
    %988 = vmatprep.subr.mxu0 0.0
    %989 = vmatpush1.msra.mxu0 0.0
    %990 = vmatprep.subr.mxu0 0.0
    %991 = vmatpush1.msra.mxu0 0.0
    %992 = vmatprep.subr.mxu0 0.0
    %993 = vmatpush1.msra.mxu0 0.0
    %994 = vmatprep.subr.mxu0 0.0
    %995 = vmatpush1.msra.mxu0 0.0
    %996 = vmatprep.subr.mxu0 0.0
    %997 = vmatpush1.msra.mxu0 0.0
    %998 = vmatprep.subr.mxu0 0.0
    %999 = vmatpush1.msra.mxu0 %v963
    %1000 = vmatprep.subr.mxu0 0.0
    %1001 = vmatpush2.msra.mxu0 0.0
    %1002 = vmatprep.subr.mxu0 0.0
    %1003 = vmatpush2.msra.mxu0 0.0
    %1004 = vmatprep.subr.mxu0 0.0
    %1005 = vmatpush2.msra.mxu0 0.0
    %1006 = vmatprep.subr.mxu0 0.0
    %1007 = vmatpush2.msra.mxu0 0.0
    %1008 = vmatprep.subr.mxu0 0.0
    %1009 = vmatpush2.msra.mxu0 0.0
    %1010 = vmatprep.subr.mxu0 0.0
    %1011 = vmatpush2.msra.mxu0 0.0
    %1012 = vmatprep.subr.mxu0 0.0
    %1013 = vmatpush2.msra.mxu0 0.0
    %1014 = vmatprep.subr.mxu0 0.0
    %1015 = vmatpush2.msra.mxu0 0.0
    %1016 = vmatprep.subr.mxu0 0.0
    %1017 = vmatpush2.msra.mxu0 0.0
    %1018 = vmatprep.subr.mxu0 0.0
    %1019 = vmatpush2.msra.mxu0 0.0
    %1020 = vmatprep.subr.mxu0 0.0
    %1021 = vmatpush2.msra.mxu0 0.0
    %1022 = vmatprep.subr.mxu0 0.0
    %1023 = vmatpush2.msra.mxu0 0.0
    %1024 = vmatprep.subr.mxu0 0.0
    %1025 = vmatpush2.msra.mxu0 0.0
    %1026 = vmatprep.subr.mxu0 0.0
    %1027 = vmatpush2.msra.mxu0 0.0
    %1028 = vmatprep.subr.mxu0 0.0
    %1029 = vmatpush2.msra.mxu0 0.0
    %1030 = vmatprep.subr.mxu0 0.0
    %1031 = vmatpush2.msra.mxu0 0.0
    %1032 = vmatprep.mubr.f32.mxu0 0.0
    %1033 = vmatmul.mubr.f32.gmra.mxu0 %v966
    %v1034 = vpop.f32.mrf.mxu0
    %v1035 = vadd.f32 0.0, %v1034
    %v1036 = vpop.f32.mrf.mxu0
    %1037 = vdwg.mxu0
    %1038 = vrot.lane.b32.xlu0 %v153, 64
    %v1039 = vpop.permute.xlu0 %1038
    %v1042 = vsel %vm184, %v880, 0
    %1044 = vmatprep.subr.mxu0 0.0
    %1045 = vmatpush1.msra.mxu0 0.0
    %1046 = vmatprep.subr.mxu0 0.0
    %1047 = vmatpush1.msra.mxu0 0.0
    %1048 = vmatprep.subr.mxu0 0.0
    %1049 = vmatpush1.msra.mxu0 0.0
    %1050 = vmatprep.subr.mxu0 0.0
    %1051 = vmatpush1.msra.mxu0 0.0
    %1052 = vmatprep.subr.mxu0 0.0
    %1053 = vmatpush1.msra.mxu0 0.0
    %1054 = vmatprep.subr.mxu0 0.0
    %1055 = vmatpush1.msra.mxu0 0.0
    %1056 = vmatprep.subr.mxu0 0.0
    %1057 = vmatpush1.msra.mxu0 0.0
    %1058 = vmatprep.subr.mxu0 0.0
    %1059 = vmatpush1.msra.mxu0 0.0
    %1060 = vmatprep.subr.mxu0 0.0
    %1061 = vmatpush1.msra.mxu0 0.0
    %1062 = vmatprep.subr.mxu0 0.0
    %1063 = vmatpush1.msra.mxu0 0.0
    %1064 = vmatprep.subr.mxu0 0.0
    %1065 = vmatpush1.msra.mxu0 0.0
    %1066 = vmatprep.subr.mxu0 0.0
    %1067 = vmatpush1.msra.mxu0 0.0
    %1068 = vmatprep.subr.mxu0 0.0
    %1069 = vmatpush1.msra.mxu0 0.0
    %1070 = vmatprep.subr.mxu0 0.0
    %1071 = vmatpush1.msra.mxu0 0.0
    %1072 = vmatprep.subr.mxu0 0.0
    %1073 = vmatpush1.msra.mxu0 0.0
    %1074 = vmatprep.subr.mxu0 0.0
    %1075 = vmatpush1.msra.mxu0 %v1039
    %1076 = vmatprep.subr.mxu0 0.0
    %1077 = vmatpush2.msra.mxu0 0.0
    %1078 = vmatprep.subr.mxu0 0.0
    %1079 = vmatpush2.msra.mxu0 0.0
    %1080 = vmatprep.subr.mxu0 0.0
    %1081 = vmatpush2.msra.mxu0 0.0
    %1082 = vmatprep.subr.mxu0 0.0
    %1083 = vmatpush2.msra.mxu0 0.0
    %1084 = vmatprep.subr.mxu0 0.0
    %1085 = vmatpush2.msra.mxu0 0.0
    %1086 = vmatprep.subr.mxu0 0.0
    %1087 = vmatpush2.msra.mxu0 0.0
    %1088 = vmatprep.subr.mxu0 0.0
    %1089 = vmatpush2.msra.mxu0 0.0
    %1090 = vmatprep.subr.mxu0 0.0
    %1091 = vmatpush2.msra.mxu0 0.0
    %1092 = vmatprep.subr.mxu0 0.0
    %1093 = vmatpush2.msra.mxu0 0.0
    %1094 = vmatprep.subr.mxu0 0.0
    %1095 = vmatpush2.msra.mxu0 0.0
    %1096 = vmatprep.subr.mxu0 0.0
    %1097 = vmatpush2.msra.mxu0 0.0
    %1098 = vmatprep.subr.mxu0 0.0
    %1099 = vmatpush2.msra.mxu0 0.0
    %1100 = vmatprep.subr.mxu0 0.0
    %1101 = vmatpush2.msra.mxu0 0.0
    %1102 = vmatprep.subr.mxu0 0.0
    %1103 = vmatpush2.msra.mxu0 0.0
    %1104 = vmatprep.subr.mxu0 0.0
    %1105 = vmatpush2.msra.mxu0 0.0
    %1106 = vmatprep.subr.mxu0 0.0
    %1107 = vmatpush2.msra.mxu0 0.0
    %1108 = vmatprep.mubr.f32.mxu0 0.0
    %1109 = vmatmul.mubr.f32.gmra.mxu0 %v1042
    %v1110 = vpop.f32.mrf.mxu0
    %v1111 = vadd.f32 0.0, %v1110
    %v1112 = vpop.f32.mrf.mxu0
    %1113 = vdwg.mxu0
    %1114 = vrot.lane.b32.xlu0 %v158, 64
    %v1115 = vpop.permute.xlu0 %1114
    %v1118 = vsel %vm184, %v881, 0
    %1120 = vmatprep.subr.mxu0 0.0
    %1121 = vmatpush1.msra.mxu0 0.0
    %1122 = vmatprep.subr.mxu0 0.0
    %1123 = vmatpush1.msra.mxu0 0.0
    %1124 = vmatprep.subr.mxu0 0.0
    %1125 = vmatpush1.msra.mxu0 0.0
    %1126 = vmatprep.subr.mxu0 0.0
    %1127 = vmatpush1.msra.mxu0 0.0
    %1128 = vmatprep.subr.mxu0 0.0
    %1129 = vmatpush1.msra.mxu0 0.0
    %1130 = vmatprep.subr.mxu0 0.0
    %1131 = vmatpush1.msra.mxu0 0.0
    %1132 = vmatprep.subr.mxu0 0.0
    %1133 = vmatpush1.msra.mxu0 0.0
    %1134 = vmatprep.subr.mxu0 0.0
    %1135 = vmatpush1.msra.mxu0 0.0
    %1136 = vmatprep.subr.mxu0 0.0
    %1137 = vmatpush1.msra.mxu0 0.0
    %1138 = vmatprep.subr.mxu0 0.0
    %1139 = vmatpush1.msra.mxu0 0.0
    %1140 = vmatprep.subr.mxu0 0.0
    %1141 = vmatpush1.msra.mxu0 0.0
    %1142 = vmatprep.subr.mxu0 0.0
    %1143 = vmatpush1.msra.mxu0 0.0
    %1144 = vmatprep.subr.mxu0 0.0
    %1145 = vmatpush1.msra.mxu0 0.0
    %1146 = vmatprep.subr.mxu0 0.0
    %1147 = vmatpush1.msra.mxu0 0.0
    %1148 = vmatprep.subr.mxu0 0.0
    %1149 = vmatpush1.msra.mxu0 0.0
    %1150 = vmatprep.subr.mxu0 0.0
    %1151 = vmatpush1.msra.mxu0 %v1115
    %1152 = vmatprep.subr.mxu0 0.0
    %1153 = vmatpush2.msra.mxu0 0.0
    %1154 = vmatprep.subr.mxu0 0.0
    %1155 = vmatpush2.msra.mxu0 0.0
    %1156 = vmatprep.subr.mxu0 0.0
    %1157 = vmatpush2.msra.mxu0 0.0
    %1158 = vmatprep.subr.mxu0 0.0
    %1159 = vmatpush2.msra.mxu0 0.0
    %1160 = vmatprep.subr.mxu0 0.0
    %1161 = vmatpush2.msra.mxu0 0.0
    %1162 = vmatprep.subr.mxu0 0.0
    %1163 = vmatpush2.msra.mxu0 0.0
    %1164 = vmatprep.subr.mxu0 0.0
    %1165 = vmatpush2.msra.mxu0 0.0
    %1166 = vmatprep.subr.mxu0 0.0
    %1167 = vmatpush2.msra.mxu0 0.0
    %1168 = vmatprep.subr.mxu0 0.0
    %1169 = vmatpush2.msra.mxu0 0.0
    %1170 = vmatprep.subr.mxu0 0.0
    %1171 = vmatpush2.msra.mxu0 0.0
    %1172 = vmatprep.subr.mxu0 0.0
    %1173 = vmatpush2.msra.mxu0 0.0
    %1174 = vmatprep.subr.mxu0 0.0
    %1175 = vmatpush2.msra.mxu0 0.0
    %1176 = vmatprep.subr.mxu0 0.0
    %1177 = vmatpush2.msra.mxu0 0.0
    %1178 = vmatprep.subr.mxu0 0.0
    %1179 = vmatpush2.msra.mxu0 0.0
    %1180 = vmatprep.subr.mxu0 0.0
    %1181 = vmatpush2.msra.mxu0 0.0
    %1182 = vmatprep.subr.mxu0 0.0
    %1183 = vmatpush2.msra.mxu0 0.0
    %1184 = vmatprep.mubr.f32.mxu0 0.0
    %1185 = vmatmul.mubr.f32.gmra.mxu0 %v1118
    %v1186 = vpop.f32.mrf.mxu0
    %v1187 = vadd.f32 0.0, %v1186
    %v1188 = vpop.f32.mrf.mxu0
    %1189 = vdwg.mxu0
    %1190 = vrot.lane.b32.xlu0 %v163, 64
    %v1191 = vpop.permute.xlu0 %1190
    %v1194 = vsel %vm184, %v882, 0
    %1196 = vmatprep.subr.mxu0 0.0
    %1197 = vmatpush1.msra.mxu0 0.0
    %1198 = vmatprep.subr.mxu0 0.0
    %1199 = vmatpush1.msra.mxu0 0.0
    %1200 = vmatprep.subr.mxu0 0.0
    %1201 = vmatpush1.msra.mxu0 0.0
    %1202 = vmatprep.subr.mxu0 0.0
    %1203 = vmatpush1.msra.mxu0 0.0
    %1204 = vmatprep.subr.mxu0 0.0
    %1205 = vmatpush1.msra.mxu0 0.0
    %1206 = vmatprep.subr.mxu0 0.0
    %1207 = vmatpush1.msra.mxu0 0.0
    %1208 = vmatprep.subr.mxu0 0.0
    %1209 = vmatpush1.msra.mxu0 0.0
    %1210 = vmatprep.subr.mxu0 0.0
    %1211 = vmatpush1.msra.mxu0 0.0
    %1212 = vmatprep.subr.mxu0 0.0
    %1213 = vmatpush1.msra.mxu0 0.0
    %1214 = vmatprep.subr.mxu0 0.0
    %1215 = vmatpush1.msra.mxu0 0.0
    %1216 = vmatprep.subr.mxu0 0.0
    %1217 = vmatpush1.msra.mxu0 0.0
    %1218 = vmatprep.subr.mxu0 0.0
    %1219 = vmatpush1.msra.mxu0 0.0
    %1220 = vmatprep.subr.mxu0 0.0
    %1221 = vmatpush1.msra.mxu0 0.0
    %1222 = vmatprep.subr.mxu0 0.0
    %1223 = vmatpush1.msra.mxu0 0.0
    %1224 = vmatprep.subr.mxu0 0.0
    %1225 = vmatpush1.msra.mxu0 0.0
    %1226 = vmatprep.subr.mxu0 0.0
    %1227 = vmatpush1.msra.mxu0 %v1191
    %1228 = vmatprep.subr.mxu0 0.0
    %1229 = vmatpush2.msra.mxu0 0.0
    %1230 = vmatprep.subr.mxu0 0.0
    %1231 = vmatpush2.msra.mxu0 0.0
    %1232 = vmatprep.subr.mxu0 0.0
    %1233 = vmatpush2.msra.mxu0 0.0
    %1234 = vmatprep.subr.mxu0 0.0
    %1235 = vmatpush2.msra.mxu0 0.0
    %1236 = vmatprep.subr.mxu0 0.0
    %1237 = vmatpush2.msra.mxu0 0.0
    %1238 = vmatprep.subr.mxu0 0.0
    %1239 = vmatpush2.msra.mxu0 0.0
    %1240 = vmatprep.subr.mxu0 0.0
    %1241 = vmatpush2.msra.mxu0 0.0
    %1242 = vmatprep.subr.mxu0 0.0
    %1243 = vmatpush2.msra.mxu0 0.0
    %1244 = vmatprep.subr.mxu0 0.0
    %1245 = vmatpush2.msra.mxu0 0.0
    %1246 = vmatprep.subr.mxu0 0.0
    %1247 = vmatpush2.msra.mxu0 0.0
    %1248 = vmatprep.subr.mxu0 0.0
    %1249 = vmatpush2.msra.mxu0 0.0
    %1250 = vmatprep.subr.mxu0 0.0
    %1251 = vmatpush2.msra.mxu0 0.0
    %1252 = vmatprep.subr.mxu0 0.0
    %1253 = vmatpush2.msra.mxu0 0.0
    %1254 = vmatprep.subr.mxu0 0.0
    %1255 = vmatpush2.msra.mxu0 0.0
    %1256 = vmatprep.subr.mxu0 0.0
    %1257 = vmatpush2.msra.mxu0 0.0
    %1258 = vmatprep.subr.mxu0 0.0
    %1259 = vmatpush2.msra.mxu0 0.0
    %1260 = vmatprep.mubr.f32.mxu0 0.0
    %1261 = vmatmul.mubr.f32.gmra.mxu0 %v1194
    %v1262 = vpop.f32.mrf.mxu0
    %v1263 = vadd.f32 0.0, %v1262
    %v1264 = vpop.f32.mrf.mxu0
    %1265 = vdwg.mxu0
    %1266 = vrot.lane.b32.xlu0 %v168, 64
    %v1267 = vpop.permute.xlu0 %1266
    %v1270 = vsel %vm184, %v883, 0
    %1272 = vmatprep.subr.mxu0 0.0
    %1273 = vmatpush1.msra.mxu0 0.0
    %1274 = vmatprep.subr.mxu0 0.0
    %1275 = vmatpush1.msra.mxu0 0.0
    %1276 = vmatprep.subr.mxu0 0.0
    %1277 = vmatpush1.msra.mxu0 0.0
    %1278 = vmatprep.subr.mxu0 0.0
    %1279 = vmatpush1.msra.mxu0 0.0
    %1280 = vmatprep.subr.mxu0 0.0
    %1281 = vmatpush1.msra.mxu0 0.0
    %1282 = vmatprep.subr.mxu0 0.0
    %1283 = vmatpush1.msra.mxu0 0.0
    %1284 = vmatprep.subr.mxu0 0.0
    %1285 = vmatpush1.msra.mxu0 0.0
    %1286 = vmatprep.subr.mxu0 0.0
    %1287 = vmatpush1.msra.mxu0 0.0
    %1288 = vmatprep.subr.mxu0 0.0
    %1289 = vmatpush1.msra.mxu0 0.0
    %1290 = vmatprep.subr.mxu0 0.0
    %1291 = vmatpush1.msra.mxu0 0.0
    %1292 = vmatprep.subr.mxu0 0.0
    %1293 = vmatpush1.msra.mxu0 0.0
    %1294 = vmatprep.subr.mxu0 0.0
    %1295 = vmatpush1.msra.mxu0 0.0
    %1296 = vmatprep.subr.mxu0 0.0
    %1297 = vmatpush1.msra.mxu0 0.0
    %1298 = vmatprep.subr.mxu0 0.0
    %1299 = vmatpush1.msra.mxu0 0.0
    %1300 = vmatprep.subr.mxu0 0.0
    %1301 = vmatpush1.msra.mxu0 0.0
    %1302 = vmatprep.subr.mxu0 0.0
    %1303 = vmatpush1.msra.mxu0 %v1267
    %1304 = vmatprep.subr.mxu0 0.0
    %1305 = vmatpush2.msra.mxu0 0.0
    %1306 = vmatprep.subr.mxu0 0.0
    %1307 = vmatpush2.msra.mxu0 0.0
    %1308 = vmatprep.subr.mxu0 0.0
    %1309 = vmatpush2.msra.mxu0 0.0
    %1310 = vmatprep.subr.mxu0 0.0
    %1311 = vmatpush2.msra.mxu0 0.0
    %1312 = vmatprep.subr.mxu0 0.0
    %1313 = vmatpush2.msra.mxu0 0.0
    %1314 = vmatprep.subr.mxu0 0.0
    %1315 = vmatpush2.msra.mxu0 0.0
    %1316 = vmatprep.subr.mxu0 0.0
    %1317 = vmatpush2.msra.mxu0 0.0
    %1318 = vmatprep.subr.mxu0 0.0
    %1319 = vmatpush2.msra.mxu0 0.0
    %1320 = vmatprep.subr.mxu0 0.0
    %1321 = vmatpush2.msra.mxu0 0.0
    %1322 = vmatprep.subr.mxu0 0.0
    %1323 = vmatpush2.msra.mxu0 0.0
    %1324 = vmatprep.subr.mxu0 0.0
    %1325 = vmatpush2.msra.mxu0 0.0
    %1326 = vmatprep.subr.mxu0 0.0
    %1327 = vmatpush2.msra.mxu0 0.0
    %1328 = vmatprep.subr.mxu0 0.0
    %1329 = vmatpush2.msra.mxu0 0.0
    %1330 = vmatprep.subr.mxu0 0.0
    %1331 = vmatpush2.msra.mxu0 0.0
    %1332 = vmatprep.subr.mxu0 0.0
    %1333 = vmatpush2.msra.mxu0 0.0
    %1334 = vmatprep.subr.mxu0 0.0
    %1335 = vmatpush2.msra.mxu0 0.0
    %1336 = vmatprep.mubr.f32.mxu0 0.0
    %1337 = vmatmul.mubr.f32.gmra.mxu0 %v1270
    %v1338 = vpop.f32.mrf.mxu0
    %v1339 = vadd.f32 0.0, %v1338
    %v1340 = vpop.f32.mrf.mxu0
    %1341 = vdwg.mxu0
    %1342 = vrot.lane.b32.xlu0 %v173, 64
    %v1343 = vpop.permute.xlu0 %1342
    %v1346 = vsel %vm184, %v884, 0
    %1348 = vmatprep.subr.mxu0 0.0
    %1349 = vmatpush1.msra.mxu0 0.0
    %1350 = vmatprep.subr.mxu0 0.0
    %1351 = vmatpush1.msra.mxu0 0.0
    %1352 = vmatprep.subr.mxu0 0.0
    %1353 = vmatpush1.msra.mxu0 0.0
    %1354 = vmatprep.subr.mxu0 0.0
    %1355 = vmatpush1.msra.mxu0 0.0
    %1356 = vmatprep.subr.mxu0 0.0
    %1357 = vmatpush1.msra.mxu0 0.0
    %1358 = vmatprep.subr.mxu0 0.0
    %1359 = vmatpush1.msra.mxu0 0.0
    %1360 = vmatprep.subr.mxu0 0.0
    %1361 = vmatpush1.msra.mxu0 0.0
    %1362 = vmatprep.subr.mxu0 0.0
    %1363 = vmatpush1.msra.mxu0 0.0
    %1364 = vmatprep.subr.mxu0 0.0
    %1365 = vmatpush1.msra.mxu0 0.0
    %1366 = vmatprep.subr.mxu0 0.0
    %1367 = vmatpush1.msra.mxu0 0.0
    %1368 = vmatprep.subr.mxu0 0.0
    %1369 = vmatpush1.msra.mxu0 0.0
    %1370 = vmatprep.subr.mxu0 0.0
    %1371 = vmatpush1.msra.mxu0 0.0
    %1372 = vmatprep.subr.mxu0 0.0
    %1373 = vmatpush1.msra.mxu0 0.0
    %1374 = vmatprep.subr.mxu0 0.0
    %1375 = vmatpush1.msra.mxu0 0.0
    %1376 = vmatprep.subr.mxu0 0.0
    %1377 = vmatpush1.msra.mxu0 0.0
    %1378 = vmatprep.subr.mxu0 0.0
    %1379 = vmatpush1.msra.mxu0 %v1343
    %1380 = vmatprep.subr.mxu0 0.0
    %1381 = vmatpush2.msra.mxu0 0.0
    %1382 = vmatprep.subr.mxu0 0.0
    %1383 = vmatpush2.msra.mxu0 0.0
    %1384 = vmatprep.subr.mxu0 0.0
    %1385 = vmatpush2.msra.mxu0 0.0
    %1386 = vmatprep.subr.mxu0 0.0
    %1387 = vmatpush2.msra.mxu0 0.0
    %1388 = vmatprep.subr.mxu0 0.0
    %1389 = vmatpush2.msra.mxu0 0.0
    %1390 = vmatprep.subr.mxu0 0.0
    %1391 = vmatpush2.msra.mxu0 0.0
    %1392 = vmatprep.subr.mxu0 0.0
    %1393 = vmatpush2.msra.mxu0 0.0
    %1394 = vmatprep.subr.mxu0 0.0
    %1395 = vmatpush2.msra.mxu0 0.0
    %1396 = vmatprep.subr.mxu0 0.0
    %1397 = vmatpush2.msra.mxu0 0.0
    %1398 = vmatprep.subr.mxu0 0.0
    %1399 = vmatpush2.msra.mxu0 0.0
    %1400 = vmatprep.subr.mxu0 0.0
    %1401 = vmatpush2.msra.mxu0 0.0
    %1402 = vmatprep.subr.mxu0 0.0
    %1403 = vmatpush2.msra.mxu0 0.0
    %1404 = vmatprep.subr.mxu0 0.0
    %1405 = vmatpush2.msra.mxu0 0.0
    %1406 = vmatprep.subr.mxu0 0.0
    %1407 = vmatpush2.msra.mxu0 0.0
    %1408 = vmatprep.subr.mxu0 0.0
    %1409 = vmatpush2.msra.mxu0 0.0
    %1410 = vmatprep.subr.mxu0 0.0
    %1411 = vmatpush2.msra.mxu0 0.0
    %1412 = vmatprep.mubr.f32.mxu0 0.0
    %1413 = vmatmul.mubr.f32.gmra.mxu0 %v1346
    %v1414 = vpop.f32.mrf.mxu0
    %v1415 = vadd.f32 0.0, %v1414
    %v1416 = vpop.f32.mrf.mxu0
    %1417 = vdwg.mxu0
    %1418 = vrot.lane.b32.xlu0 %v178, 64
    %v1419 = vpop.permute.xlu0 %1418
    %v1422 = vsel %vm184, %v885, 0
    %1424 = vmatprep.subr.mxu0 0.0
    %1425 = vmatpush1.msra.mxu0 0.0
    %1426 = vmatprep.subr.mxu0 0.0
    %1427 = vmatpush1.msra.mxu0 0.0
    %1428 = vmatprep.subr.mxu0 0.0
    %1429 = vmatpush1.msra.mxu0 0.0
    %1430 = vmatprep.subr.mxu0 0.0
    %1431 = vmatpush1.msra.mxu0 0.0
    %1432 = vmatprep.subr.mxu0 0.0
    %1433 = vmatpush1.msra.mxu0 0.0
    %1434 = vmatprep.subr.mxu0 0.0
    %1435 = vmatpush1.msra.mxu0 0.0
    %1436 = vmatprep.subr.mxu0 0.0
    %1437 = vmatpush1.msra.mxu0 0.0
    %1438 = vmatprep.subr.mxu0 0.0
    %1439 = vmatpush1.msra.mxu0 0.0
    %1440 = vmatprep.subr.mxu0 0.0
    %1441 = vmatpush1.msra.mxu0 0.0
    %1442 = vmatprep.subr.mxu0 0.0
    %1443 = vmatpush1.msra.mxu0 0.0
    %1444 = vmatprep.subr.mxu0 0.0
    %1445 = vmatpush1.msra.mxu0 0.0
    %1446 = vmatprep.subr.mxu0 0.0
    %1447 = vmatpush1.msra.mxu0 0.0
    %1448 = vmatprep.subr.mxu0 0.0
    %1449 = vmatpush1.msra.mxu0 0.0
    %1450 = vmatprep.subr.mxu0 0.0
    %1451 = vmatpush1.msra.mxu0 0.0
    %1452 = vmatprep.subr.mxu0 0.0
    %1453 = vmatpush1.msra.mxu0 0.0
    %1454 = vmatprep.subr.mxu0 0.0
    %1455 = vmatpush1.msra.mxu0 %v1419
    %1456 = vmatprep.subr.mxu0 0.0
    %1457 = vmatpush2.msra.mxu0 0.0
    %1458 = vmatprep.subr.mxu0 0.0
    %1459 = vmatpush2.msra.mxu0 0.0
    %1460 = vmatprep.subr.mxu0 0.0
    %1461 = vmatpush2.msra.mxu0 0.0
    %1462 = vmatprep.subr.mxu0 0.0
    %1463 = vmatpush2.msra.mxu0 0.0
    %1464 = vmatprep.subr.mxu0 0.0
    %1465 = vmatpush2.msra.mxu0 0.0
    %1466 = vmatprep.subr.mxu0 0.0
    %1467 = vmatpush2.msra.mxu0 0.0
    %1468 = vmatprep.subr.mxu0 0.0
    %1469 = vmatpush2.msra.mxu0 0.0
    %1470 = vmatprep.subr.mxu0 0.0
    %1471 = vmatpush2.msra.mxu0 0.0
    %1472 = vmatprep.subr.mxu0 0.0
    %1473 = vmatpush2.msra.mxu0 0.0
    %1474 = vmatprep.subr.mxu0 0.0
    %1475 = vmatpush2.msra.mxu0 0.0
    %1476 = vmatprep.subr.mxu0 0.0
    %1477 = vmatpush2.msra.mxu0 0.0
    %1478 = vmatprep.subr.mxu0 0.0
    %1479 = vmatpush2.msra.mxu0 0.0
    %1480 = vmatprep.subr.mxu0 0.0
    %1481 = vmatpush2.msra.mxu0 0.0
    %1482 = vmatprep.subr.mxu0 0.0
    %1483 = vmatpush2.msra.mxu0 0.0
    %1484 = vmatprep.subr.mxu0 0.0
    %1485 = vmatpush2.msra.mxu0 0.0
    %1486 = vmatprep.subr.mxu0 0.0
    %1487 = vmatpush2.msra.mxu0 0.0
    %1488 = vmatprep.mubr.f32.mxu0 0.0
    %1489 = vmatmul.mubr.f32.gmra.mxu0 %v1422
    %v1490 = vpop.f32.mrf.mxu0
    %v1491 = vadd.f32 0.0, %v1490
    %v1492 = vpop.f32.mrf.mxu0
    %1493 = vdwg.mxu0
    %1494 = vst.msk [vmem:[#allocation2] sm:$0xff] %vm184, %v959
    %1495 = vst.msk [vmem:[#allocation2 + $0x8] sm:$0xff] %vm184, %v1035
    %1496 = vst.msk [vmem:[#allocation2 + $0x10] sm:$0xff] %vm184, %v1111
    %1497 = vst.msk [vmem:[#allocation2 + $0x18] sm:$0xff] %vm184, %v1187
    %1498 = vst.msk [vmem:[#allocation2 + $0x20] sm:$0xff] %vm184, %v1263
    %1499 = vst.msk [vmem:[#allocation2 + $0x28] sm:$0xff] %vm184, %v1339
    %1500 = vst.msk [vmem:[#allocation2 + $0x30] sm:$0xff] %vm184, %v1415
    %1501 = vst.msk [vmem:[#allocation2 + $0x38] sm:$0xff] %vm184, %v1491
    %1502 = vrot.lane.b32.xlu0 %v143, 120
    %v1503 = vpop.permute.xlu0 %1502
    %1504 = vrot.lane.b32.xlu0 %v143, 88
    %v1505 = vpop.permute.xlu0 %1504
    %v1506 = vsel %vm184, %v1503, 0
    %v1508 = vsel %vm184, %v1505, 0
    %1510 = vmatprep.subr.mxu0 0.0
    %1511 = vmatpush1.xpose.msra.mxu0 0.0
    %1512 = vmatprep.subr.mxu0 0.0
    %1513 = vmatpush1.xpose.msra.mxu0 0.0
    %1514 = vmatprep.subr.mxu0 0.0
    %1515 = vmatpush1.xpose.msra.mxu0 0.0
    %1516 = vmatprep.subr.mxu0 0.0
    %1517 = vmatpush1.xpose.msra.mxu0 0.0
    %1518 = vmatprep.subr.mxu0 0.0
    %1519 = vmatpush1.xpose.msra.mxu0 0.0
    %1520 = vmatprep.subr.mxu0 0.0
    %1521 = vmatpush1.xpose.msra.mxu0 0.0
    %1522 = vmatprep.subr.mxu0 0.0
    %1523 = vmatpush1.xpose.msra.mxu0 0.0
    %1524 = vmatprep.subr.mxu0 0.0
    %1525 = vmatpush1.xpose.msra.mxu0 0.0
    %1526 = vmatprep.subr.mxu0 0.0
    %1527 = vmatpush1.xpose.msra.mxu0 0.0
    %1528 = vmatprep.subr.mxu0 0.0
    %1529 = vmatpush1.xpose.msra.mxu0 0.0
    %1530 = vmatprep.subr.mxu0 0.0
    %1531 = vmatpush1.xpose.msra.mxu0 0.0
    %1532 = vmatprep.subr.mxu0 0.0
    %1533 = vmatpush1.xpose.msra.mxu0 0.0
    %1534 = vmatprep.subr.mxu0 0.0
    %1535 = vmatpush1.xpose.msra.mxu0 0.0
    %1536 = vmatprep.subr.mxu0 0.0
    %1537 = vmatpush1.xpose.msra.mxu0 0.0
    %1538 = vmatprep.subr.mxu0 0.0
    %1539 = vmatpush1.xpose.msra.mxu0 0.0
    %1540 = vmatprep.subr.mxu0 0.0
    %1541 = vmatpush1.xpose.msra.mxu0 %v1508
    %1542 = vmatprep.subr.mxu0 0.0
    %1543 = vmatpush2.xpose.msra.mxu0 0.0
    %1544 = vmatprep.subr.mxu0 0.0
    %1545 = vmatpush2.xpose.msra.mxu0 0.0
    %1546 = vmatprep.subr.mxu0 0.0
    %1547 = vmatpush2.xpose.msra.mxu0 0.0
    %1548 = vmatprep.subr.mxu0 0.0
    %1549 = vmatpush2.xpose.msra.mxu0 0.0
    %1550 = vmatprep.subr.mxu0 0.0
    %1551 = vmatpush2.xpose.msra.mxu0 0.0
    %1552 = vmatprep.subr.mxu0 0.0
    %1553 = vmatpush2.xpose.msra.mxu0 0.0
    %1554 = vmatprep.subr.mxu0 0.0
    %1555 = vmatpush2.xpose.msra.mxu0 0.0
    %1556 = vmatprep.subr.mxu0 0.0
    %1557 = vmatpush2.xpose.msra.mxu0 0.0
    %1558 = vmatprep.subr.mxu0 0.0
    %1559 = vmatpush2.xpose.msra.mxu0 0.0
    %1560 = vmatprep.subr.mxu0 0.0
    %1561 = vmatpush2.xpose.msra.mxu0 0.0
    %1562 = vmatprep.subr.mxu0 0.0
    %1563 = vmatpush2.xpose.msra.mxu0 0.0
    %1564 = vmatprep.subr.mxu0 0.0
    %1565 = vmatpush2.xpose.msra.mxu0 0.0
    %1566 = vmatprep.subr.mxu0 0.0
    %1567 = vmatpush2.xpose.msra.mxu0 0.0
    %1568 = vmatprep.subr.mxu0 0.0
    %1569 = vmatpush2.xpose.msra.mxu0 0.0
    %1570 = vmatprep.subr.mxu0 0.0
    %1571 = vmatpush2.xpose.msra.mxu0 0.0
    %1572 = vmatprep.subr.mxu0 0.0
    %1573 = vmatpush2.xpose.msra.mxu0 0.0
    %1574 = vmatprep.mubr.f32.mxu0 0.0
    %1575 = vmatmul.mubr.f32.gmra.mxu0 %v1506
    %v1576 = vpop.f32.mrf.mxu0
    %v1577 = vadd.f32 0.0, %v1576
    %v1578 = vpop.f32.mrf.mxu0
    %1579 = vdwg.mxu0
    %1580 = vrot.lane.b32.xlu0 %v148, 120
    %v1581 = vpop.permute.xlu0 %1580
    %1582 = vrot.lane.b32.xlu0 %v148, 88
    %v1583 = vpop.permute.xlu0 %1582
    %v1584 = vsel %vm184, %v1581, 0
    %v1586 = vsel %vm184, %v1583, 0
    %1588 = vmatprep.subr.mxu0 0.0
    %1589 = vmatpush1.xpose.msra.mxu0 0.0
    %1590 = vmatprep.subr.mxu0 0.0
    %1591 = vmatpush1.xpose.msra.mxu0 0.0
    %1592 = vmatprep.subr.mxu0 0.0
    %1593 = vmatpush1.xpose.msra.mxu0 0.0
    %1594 = vmatprep.subr.mxu0 0.0
    %1595 = vmatpush1.xpose.msra.mxu0 0.0
    %1596 = vmatprep.subr.mxu0 0.0
    %1597 = vmatpush1.xpose.msra.mxu0 0.0
    %1598 = vmatprep.subr.mxu0 0.0
    %1599 = vmatpush1.xpose.msra.mxu0 0.0
    %1600 = vmatprep.subr.mxu0 0.0
    %1601 = vmatpush1.xpose.msra.mxu0 0.0
    %1602 = vmatprep.subr.mxu0 0.0
    %1603 = vmatpush1.xpose.msra.mxu0 0.0
    %1604 = vmatprep.subr.mxu0 0.0
    %1605 = vmatpush1.xpose.msra.mxu0 0.0
    %1606 = vmatprep.subr.mxu0 0.0
    %1607 = vmatpush1.xpose.msra.mxu0 0.0
    %1608 = vmatprep.subr.mxu0 0.0
    %1609 = vmatpush1.xpose.msra.mxu0 0.0
    %1610 = vmatprep.subr.mxu0 0.0
    %1611 = vmatpush1.xpose.msra.mxu0 0.0
    %1612 = vmatprep.subr.mxu0 0.0
    %1613 = vmatpush1.xpose.msra.mxu0 0.0
    %1614 = vmatprep.subr.mxu0 0.0
    %1615 = vmatpush1.xpose.msra.mxu0 0.0
    %1616 = vmatprep.subr.mxu0 0.0
    %1617 = vmatpush1.xpose.msra.mxu0 0.0
    %1618 = vmatprep.subr.mxu0 0.0
    %1619 = vmatpush1.xpose.msra.mxu0 %v1586
    %1620 = vmatprep.subr.mxu0 0.0
    %1621 = vmatpush2.xpose.msra.mxu0 0.0
    %1622 = vmatprep.subr.mxu0 0.0
    %1623 = vmatpush2.xpose.msra.mxu0 0.0
    %1624 = vmatprep.subr.mxu0 0.0
    %1625 = vmatpush2.xpose.msra.mxu0 0.0
    %1626 = vmatprep.subr.mxu0 0.0
    %1627 = vmatpush2.xpose.msra.mxu0 0.0
    %1628 = vmatprep.subr.mxu0 0.0
    %1629 = vmatpush2.xpose.msra.mxu0 0.0
    %1630 = vmatprep.subr.mxu0 0.0
    %1631 = vmatpush2.xpose.msra.mxu0 0.0
    %1632 = vmatprep.subr.mxu0 0.0
    %1633 = vmatpush2.xpose.msra.mxu0 0.0
    %1634 = vmatprep.subr.mxu0 0.0
    %1635 = vmatpush2.xpose.msra.mxu0 0.0
    %1636 = vmatprep.subr.mxu0 0.0
    %1637 = vmatpush2.xpose.msra.mxu0 0.0
    %1638 = vmatprep.subr.mxu0 0.0
    %1639 = vmatpush2.xpose.msra.mxu0 0.0
    %1640 = vmatprep.subr.mxu0 0.0
    %1641 = vmatpush2.xpose.msra.mxu0 0.0
    %1642 = vmatprep.subr.mxu0 0.0
    %1643 = vmatpush2.xpose.msra.mxu0 0.0
    %1644 = vmatprep.subr.mxu0 0.0
    %1645 = vmatpush2.xpose.msra.mxu0 0.0
    %1646 = vmatprep.subr.mxu0 0.0
    %1647 = vmatpush2.xpose.msra.mxu0 0.0
    %1648 = vmatprep.subr.mxu0 0.0
    %1649 = vmatpush2.xpose.msra.mxu0 0.0
    %1650 = vmatprep.subr.mxu0 0.0
    %1651 = vmatpush2.xpose.msra.mxu0 0.0
    %1652 = vmatprep.mubr.f32.mxu0 0.0
    %1653 = vmatmul.mubr.f32.gmra.mxu0 %v1584
    %v1654 = vpop.f32.mrf.mxu0
    %v1655 = vadd.f32 0.0, %v1654
    %v1656 = vpop.f32.mrf.mxu0
    %1657 = vdwg.mxu0
    %1658 = vrot.lane.b32.xlu0 %v153, 120
    %v1659 = vpop.permute.xlu0 %1658
    %1660 = vrot.lane.b32.xlu0 %v153, 88
    %v1661 = vpop.permute.xlu0 %1660
    %v1662 = vsel %vm184, %v1659, 0
    %v1664 = vsel %vm184, %v1661, 0
    %1666 = vmatprep.subr.mxu0 0.0
    %1667 = vmatpush1.xpose.msra.mxu0 0.0
    %1668 = vmatprep.subr.mxu0 0.0
    %1669 = vmatpush1.xpose.msra.mxu0 0.0
    %1670 = vmatprep.subr.mxu0 0.0
    %1671 = vmatpush1.xpose.msra.mxu0 0.0
    %1672 = vmatprep.subr.mxu0 0.0
    %1673 = vmatpush1.xpose.msra.mxu0 0.0
    %1674 = vmatprep.subr.mxu0 0.0
    %1675 = vmatpush1.xpose.msra.mxu0 0.0
    %1676 = vmatprep.subr.mxu0 0.0
    %1677 = vmatpush1.xpose.msra.mxu0 0.0
    %1678 = vmatprep.subr.mxu0 0.0
    %1679 = vmatpush1.xpose.msra.mxu0 0.0
    %1680 = vmatprep.subr.mxu0 0.0
    %1681 = vmatpush1.xpose.msra.mxu0 0.0
    %1682 = vmatprep.subr.mxu0 0.0
    %1683 = vmatpush1.xpose.msra.mxu0 0.0
    %1684 = vmatprep.subr.mxu0 0.0
    %1685 = vmatpush1.xpose.msra.mxu0 0.0
    %1686 = vmatprep.subr.mxu0 0.0
    %1687 = vmatpush1.xpose.msra.mxu0 0.0
    %1688 = vmatprep.subr.mxu0 0.0
    %1689 = vmatpush1.xpose.msra.mxu0 0.0
    %1690 = vmatprep.subr.mxu0 0.0
    %1691 = vmatpush1.xpose.msra.mxu0 0.0
    %1692 = vmatprep.subr.mxu0 0.0
    %1693 = vmatpush1.xpose.msra.mxu0 0.0
    %1694 = vmatprep.subr.mxu0 0.0
    %1695 = vmatpush1.xpose.msra.mxu0 0.0
    %1696 = vmatprep.subr.mxu0 0.0
    %1697 = vmatpush1.xpose.msra.mxu0 %v1664
    %1698 = vmatprep.subr.mxu0 0.0
    %1699 = vmatpush2.xpose.msra.mxu0 0.0
    %1700 = vmatprep.subr.mxu0 0.0
    %1701 = vmatpush2.xpose.msra.mxu0 0.0
    %1702 = vmatprep.subr.mxu0 0.0
    %1703 = vmatpush2.xpose.msra.mxu0 0.0
    %1704 = vmatprep.subr.mxu0 0.0
    %1705 = vmatpush2.xpose.msra.mxu0 0.0
    %1706 = vmatprep.subr.mxu0 0.0
    %1707 = vmatpush2.xpose.msra.mxu0 0.0
    %1708 = vmatprep.subr.mxu0 0.0
    %1709 = vmatpush2.xpose.msra.mxu0 0.0
    %1710 = vmatprep.subr.mxu0 0.0
    %1711 = vmatpush2.xpose.msra.mxu0 0.0
    %1712 = vmatprep.subr.mxu0 0.0
    %1713 = vmatpush2.xpose.msra.mxu0 0.0
    %1714 = vmatprep.subr.mxu0 0.0
    %1715 = vmatpush2.xpose.msra.mxu0 0.0
    %1716 = vmatprep.subr.mxu0 0.0
    %1717 = vmatpush2.xpose.msra.mxu0 0.0
    %1718 = vmatprep.subr.mxu0 0.0
    %1719 = vmatpush2.xpose.msra.mxu0 0.0
    %1720 = vmatprep.subr.mxu0 0.0
    %1721 = vmatpush2.xpose.msra.mxu0 0.0
    %1722 = vmatprep.subr.mxu0 0.0
    %1723 = vmatpush2.xpose.msra.mxu0 0.0
    %1724 = vmatprep.subr.mxu0 0.0
    %1725 = vmatpush2.xpose.msra.mxu0 0.0
    %1726 = vmatprep.subr.mxu0 0.0
    %1727 = vmatpush2.xpose.msra.mxu0 0.0
    %1728 = vmatprep.subr.mxu0 0.0
    %1729 = vmatpush2.xpose.msra.mxu0 0.0
    %1730 = vmatprep.mubr.f32.mxu0 0.0
    %1731 = vmatmul.mubr.f32.gmra.mxu0 %v1662
    %v1732 = vpop.f32.mrf.mxu0
    %v1733 = vadd.f32 0.0, %v1732
    %v1734 = vpop.f32.mrf.mxu0
    %1735 = vdwg.mxu0
    %1736 = vrot.lane.b32.xlu0 %v158, 120
    %v1737 = vpop.permute.xlu0 %1736
    %1738 = vrot.lane.b32.xlu0 %v158, 88
    %v1739 = vpop.permute.xlu0 %1738
    %v1740 = vsel %vm184, %v1737, 0
    %v1742 = vsel %vm184, %v1739, 0
    %1744 = vmatprep.subr.mxu0 0.0
    %1745 = vmatpush1.xpose.msra.mxu0 0.0
    %1746 = vmatprep.subr.mxu0 0.0
    %1747 = vmatpush1.xpose.msra.mxu0 0.0
    %1748 = vmatprep.subr.mxu0 0.0
    %1749 = vmatpush1.xpose.msra.mxu0 0.0
    %1750 = vmatprep.subr.mxu0 0.0
    %1751 = vmatpush1.xpose.msra.mxu0 0.0
    %1752 = vmatprep.subr.mxu0 0.0
    %1753 = vmatpush1.xpose.msra.mxu0 0.0
    %1754 = vmatprep.subr.mxu0 0.0
    %1755 = vmatpush1.xpose.msra.mxu0 0.0
    %1756 = vmatprep.subr.mxu0 0.0
    %1757 = vmatpush1.xpose.msra.mxu0 0.0
    %1758 = vmatprep.subr.mxu0 0.0
    %1759 = vmatpush1.xpose.msra.mxu0 0.0
    %1760 = vmatprep.subr.mxu0 0.0
    %1761 = vmatpush1.xpose.msra.mxu0 0.0
    %1762 = vmatprep.subr.mxu0 0.0
    %1763 = vmatpush1.xpose.msra.mxu0 0.0
    %1764 = vmatprep.subr.mxu0 0.0
    %1765 = vmatpush1.xpose.msra.mxu0 0.0
    %1766 = vmatprep.subr.mxu0 0.0
    %1767 = vmatpush1.xpose.msra.mxu0 0.0
    %1768 = vmatprep.subr.mxu0 0.0
    %1769 = vmatpush1.xpose.msra.mxu0 0.0
    %1770 = vmatprep.subr.mxu0 0.0
    %1771 = vmatpush1.xpose.msra.mxu0 0.0
    %1772 = vmatprep.subr.mxu0 0.0
    %1773 = vmatpush1.xpose.msra.mxu0 0.0
    %1774 = vmatprep.subr.mxu0 0.0
    %1775 = vmatpush1.xpose.msra.mxu0 %v1742
    %1776 = vmatprep.subr.mxu0 0.0
    %1777 = vmatpush2.xpose.msra.mxu0 0.0
    %1778 = vmatprep.subr.mxu0 0.0
    %1779 = vmatpush2.xpose.msra.mxu0 0.0
    %1780 = vmatprep.subr.mxu0 0.0
    %1781 = vmatpush2.xpose.msra.mxu0 0.0
    %1782 = vmatprep.subr.mxu0 0.0
    %1783 = vmatpush2.xpose.msra.mxu0 0.0
    %1784 = vmatprep.subr.mxu0 0.0
    %1785 = vmatpush2.xpose.msra.mxu0 0.0
    %1786 = vmatprep.subr.mxu0 0.0
    %1787 = vmatpush2.xpose.msra.mxu0 0.0
    %1788 = vmatprep.subr.mxu0 0.0
    %1789 = vmatpush2.xpose.msra.mxu0 0.0
    %1790 = vmatprep.subr.mxu0 0.0
    %1791 = vmatpush2.xpose.msra.mxu0 0.0
    %1792 = vmatprep.subr.mxu0 0.0
    %1793 = vmatpush2.xpose.msra.mxu0 0.0
    %1794 = vmatprep.subr.mxu0 0.0
    %1795 = vmatpush2.xpose.msra.mxu0 0.0
    %1796 = vmatprep.subr.mxu0 0.0
    %1797 = vmatpush2.xpose.msra.mxu0 0.0
    %1798 = vmatprep.subr.mxu0 0.0
    %1799 = vmatpush2.xpose.msra.mxu0 0.0
    %1800 = vmatprep.subr.mxu0 0.0
    %1801 = vmatpush2.xpose.msra.mxu0 0.0
    %1802 = vmatprep.subr.mxu0 0.0
    %1803 = vmatpush2.xpose.msra.mxu0 0.0
    %1804 = vmatprep.subr.mxu0 0.0
    %1805 = vmatpush2.xpose.msra.mxu0 0.0
    %1806 = vmatprep.subr.mxu0 0.0
    %1807 = vmatpush2.xpose.msra.mxu0 0.0
    %1808 = vmatprep.mubr.f32.mxu0 0.0
    %1809 = vmatmul.mubr.f32.gmra.mxu0 %v1740
    %v1810 = vpop.f32.mrf.mxu0
    %v1811 = vadd.f32 0.0, %v1810
    %v1812 = vpop.f32.mrf.mxu0
    %1813 = vdwg.mxu0
    %1814 = vrot.lane.b32.xlu0 %v163, 120
    %v1815 = vpop.permute.xlu0 %1814
    %1816 = vrot.lane.b32.xlu0 %v163, 88
    %v1817 = vpop.permute.xlu0 %1816
    %v1818 = vsel %vm184, %v1815, 0
    %v1820 = vsel %vm184, %v1817, 0
    %1822 = vmatprep.subr.mxu0 0.0
    %1823 = vmatpush1.xpose.msra.mxu0 0.0
    %1824 = vmatprep.subr.mxu0 0.0
    %1825 = vmatpush1.xpose.msra.mxu0 0.0
    %1826 = vmatprep.subr.mxu0 0.0
    %1827 = vmatpush1.xpose.msra.mxu0 0.0
    %1828 = vmatprep.subr.mxu0 0.0
    %1829 = vmatpush1.xpose.msra.mxu0 0.0
    %1830 = vmatprep.subr.mxu0 0.0
    %1831 = vmatpush1.xpose.msra.mxu0 0.0
    %1832 = vmatprep.subr.mxu0 0.0
    %1833 = vmatpush1.xpose.msra.mxu0 0.0
    %1834 = vmatprep.subr.mxu0 0.0
    %1835 = vmatpush1.xpose.msra.mxu0 0.0
    %1836 = vmatprep.subr.mxu0 0.0
    %1837 = vmatpush1.xpose.msra.mxu0 0.0
    %1838 = vmatprep.subr.mxu0 0.0
    %1839 = vmatpush1.xpose.msra.mxu0 0.0
    %1840 = vmatprep.subr.mxu0 0.0
    %1841 = vmatpush1.xpose.msra.mxu0 0.0
    %1842 = vmatprep.subr.mxu0 0.0
    %1843 = vmatpush1.xpose.msra.mxu0 0.0
    %1844 = vmatprep.subr.mxu0 0.0
    %1845 = vmatpush1.xpose.msra.mxu0 0.0
    %1846 = vmatprep.subr.mxu0 0.0
    %1847 = vmatpush1.xpose.msra.mxu0 0.0
    %1848 = vmatprep.subr.mxu0 0.0
    %1849 = vmatpush1.xpose.msra.mxu0 0.0
    %1850 = vmatprep.subr.mxu0 0.0
    %1851 = vmatpush1.xpose.msra.mxu0 0.0
    %1852 = vmatprep.subr.mxu0 0.0
    %1853 = vmatpush1.xpose.msra.mxu0 %v1820
    %1854 = vmatprep.subr.mxu0 0.0
    %1855 = vmatpush2.xpose.msra.mxu0 0.0
    %1856 = vmatprep.subr.mxu0 0.0
    %1857 = vmatpush2.xpose.msra.mxu0 0.0
    %1858 = vmatprep.subr.mxu0 0.0
    %1859 = vmatpush2.xpose.msra.mxu0 0.0
    %1860 = vmatprep.subr.mxu0 0.0
    %1861 = vmatpush2.xpose.msra.mxu0 0.0
    %1862 = vmatprep.subr.mxu0 0.0
    %1863 = vmatpush2.xpose.msra.mxu0 0.0
    %1864 = vmatprep.subr.mxu0 0.0
    %1865 = vmatpush2.xpose.msra.mxu0 0.0
    %1866 = vmatprep.subr.mxu0 0.0
    %1867 = vmatpush2.xpose.msra.mxu0 0.0
    %1868 = vmatprep.subr.mxu0 0.0
    %1869 = vmatpush2.xpose.msra.mxu0 0.0
    %1870 = vmatprep.subr.mxu0 0.0
    %1871 = vmatpush2.xpose.msra.mxu0 0.0
    %1872 = vmatprep.subr.mxu0 0.0
    %1873 = vmatpush2.xpose.msra.mxu0 0.0
    %1874 = vmatprep.subr.mxu0 0.0
    %1875 = vmatpush2.xpose.msra.mxu0 0.0
    %1876 = vmatprep.subr.mxu0 0.0
    %1877 = vmatpush2.xpose.msra.mxu0 0.0
    %1878 = vmatprep.subr.mxu0 0.0
    %1879 = vmatpush2.xpose.msra.mxu0 0.0
    %1880 = vmatprep.subr.mxu0 0.0
    %1881 = vmatpush2.xpose.msra.mxu0 0.0
    %1882 = vmatprep.subr.mxu0 0.0
    %1883 = vmatpush2.xpose.msra.mxu0 0.0
    %1884 = vmatprep.subr.mxu0 0.0
    %1885 = vmatpush2.xpose.msra.mxu0 0.0
    %1886 = vmatprep.mubr.f32.mxu0 0.0
    %1887 = vmatmul.mubr.f32.gmra.mxu0 %v1818
    %v1888 = vpop.f32.mrf.mxu0
    %v1889 = vadd.f32 0.0, %v1888
    %v1890 = vpop.f32.mrf.mxu0
    %1891 = vdwg.mxu0
    %1892 = vrot.lane.b32.xlu0 %v168, 120
    %v1893 = vpop.permute.xlu0 %1892
    %1894 = vrot.lane.b32.xlu0 %v168, 88
    %v1895 = vpop.permute.xlu0 %1894
    %v1896 = vsel %vm184, %v1893, 0
    %v1898 = vsel %vm184, %v1895, 0
    %1900 = vmatprep.subr.mxu0 0.0
    %1901 = vmatpush1.xpose.msra.mxu0 0.0
    %1902 = vmatprep.subr.mxu0 0.0
    %1903 = vmatpush1.xpose.msra.mxu0 0.0
    %1904 = vmatprep.subr.mxu0 0.0
    %1905 = vmatpush1.xpose.msra.mxu0 0.0
    %1906 = vmatprep.subr.mxu0 0.0
    %1907 = vmatpush1.xpose.msra.mxu0 0.0
    %1908 = vmatprep.subr.mxu0 0.0
    %1909 = vmatpush1.xpose.msra.mxu0 0.0
    %1910 = vmatprep.subr.mxu0 0.0
    %1911 = vmatpush1.xpose.msra.mxu0 0.0
    %1912 = vmatprep.subr.mxu0 0.0
    %1913 = vmatpush1.xpose.msra.mxu0 0.0
    %1914 = vmatprep.subr.mxu0 0.0
    %1915 = vmatpush1.xpose.msra.mxu0 0.0
    %1916 = vmatprep.subr.mxu0 0.0
    %1917 = vmatpush1.xpose.msra.mxu0 0.0
    %1918 = vmatprep.subr.mxu0 0.0
    %1919 = vmatpush1.xpose.msra.mxu0 0.0
    %1920 = vmatprep.subr.mxu0 0.0
    %1921 = vmatpush1.xpose.msra.mxu0 0.0
    %1922 = vmatprep.subr.mxu0 0.0
    %1923 = vmatpush1.xpose.msra.mxu0 0.0
    %1924 = vmatprep.subr.mxu0 0.0
    %1925 = vmatpush1.xpose.msra.mxu0 0.0
    %1926 = vmatprep.subr.mxu0 0.0
    %1927 = vmatpush1.xpose.msra.mxu0 0.0
    %1928 = vmatprep.subr.mxu0 0.0
    %1929 = vmatpush1.xpose.msra.mxu0 0.0
    %1930 = vmatprep.subr.mxu0 0.0
    %1931 = vmatpush1.xpose.msra.mxu0 %v1898
    %1932 = vmatprep.subr.mxu0 0.0
    %1933 = vmatpush2.xpose.msra.mxu0 0.0
    %1934 = vmatprep.subr.mxu0 0.0
    %1935 = vmatpush2.xpose.msra.mxu0 0.0
    %1936 = vmatprep.subr.mxu0 0.0
    %1937 = vmatpush2.xpose.msra.mxu0 0.0
    %1938 = vmatprep.subr.mxu0 0.0
    %1939 = vmatpush2.xpose.msra.mxu0 0.0
    %1940 = vmatprep.subr.mxu0 0.0
    %1941 = vmatpush2.xpose.msra.mxu0 0.0
    %1942 = vmatprep.subr.mxu0 0.0
    %1943 = vmatpush2.xpose.msra.mxu0 0.0
    %1944 = vmatprep.subr.mxu0 0.0
    %1945 = vmatpush2.xpose.msra.mxu0 0.0
    %1946 = vmatprep.subr.mxu0 0.0
    %1947 = vmatpush2.xpose.msra.mxu0 0.0
    %1948 = vmatprep.subr.mxu0 0.0
    %1949 = vmatpush2.xpose.msra.mxu0 0.0
    %1950 = vmatprep.subr.mxu0 0.0
    %1951 = vmatpush2.xpose.msra.mxu0 0.0
    %1952 = vmatprep.subr.mxu0 0.0
    %1953 = vmatpush2.xpose.msra.mxu0 0.0
    %1954 = vmatprep.subr.mxu0 0.0
    %1955 = vmatpush2.xpose.msra.mxu0 0.0
    %1956 = vmatprep.subr.mxu0 0.0
    %1957 = vmatpush2.xpose.msra.mxu0 0.0
    %1958 = vmatprep.subr.mxu0 0.0
    %1959 = vmatpush2.xpose.msra.mxu0 0.0
    %1960 = vmatprep.subr.mxu0 0.0
    %1961 = vmatpush2.xpose.msra.mxu0 0.0
    %1962 = vmatprep.subr.mxu0 0.0
    %1963 = vmatpush2.xpose.msra.mxu0 0.0
    %1964 = vmatprep.mubr.f32.mxu0 0.0
    %1965 = vmatmul.mubr.f32.gmra.mxu0 %v1896
    %v1966 = vpop.f32.mrf.mxu0
    %v1967 = vadd.f32 0.0, %v1966
    %v1968 = vpop.f32.mrf.mxu0
    %1969 = vdwg.mxu0
    %1970 = vrot.lane.b32.xlu0 %v173, 120
    %v1971 = vpop.permute.xlu0 %1970
    %1972 = vrot.lane.b32.xlu0 %v173, 88
    %v1973 = vpop.permute.xlu0 %1972
    %v1974 = vsel %vm184, %v1971, 0
    %v1976 = vsel %vm184, %v1973, 0
    %1978 = vmatprep.subr.mxu0 0.0
    %1979 = vmatpush1.xpose.msra.mxu0 0.0
    %1980 = vmatprep.subr.mxu0 0.0
    %1981 = vmatpush1.xpose.msra.mxu0 0.0
    %1982 = vmatprep.subr.mxu0 0.0
    %1983 = vmatpush1.xpose.msra.mxu0 0.0
    %1984 = vmatprep.subr.mxu0 0.0
    %1985 = vmatpush1.xpose.msra.mxu0 0.0
    %1986 = vmatprep.subr.mxu0 0.0
    %1987 = vmatpush1.xpose.msra.mxu0 0.0
    %1988 = vmatprep.subr.mxu0 0.0
    %1989 = vmatpush1.xpose.msra.mxu0 0.0
    %1990 = vmatprep.subr.mxu0 0.0
    %1991 = vmatpush1.xpose.msra.mxu0 0.0
    %1992 = vmatprep.subr.mxu0 0.0
    %1993 = vmatpush1.xpose.msra.mxu0 0.0
    %1994 = vmatprep.subr.mxu0 0.0
    %1995 = vmatpush1.xpose.msra.mxu0 0.0
    %1996 = vmatprep.subr.mxu0 0.0
    %1997 = vmatpush1.xpose.msra.mxu0 0.0
    %1998 = vmatprep.subr.mxu0 0.0
    %1999 = vmatpush1.xpose.msra.mxu0 0.0
    %2000 = vmatprep.subr.mxu0 0.0
    %2001 = vmatpush1.xpose.msra.mxu0 0.0
    %2002 = vmatprep.subr.mxu0 0.0
    %2003 = vmatpush1.xpose.msra.mxu0 0.0
    %2004 = vmatprep.subr.mxu0 0.0
    %2005 = vmatpush1.xpose.msra.mxu0 0.0
    %2006 = vmatprep.subr.mxu0 0.0
    %2007 = vmatpush1.xpose.msra.mxu0 0.0
    %2008 = vmatprep.subr.mxu0 0.0
    %2009 = vmatpush1.xpose.msra.mxu0 %v1976
    %2010 = vmatprep.subr.mxu0 0.0
    %2011 = vmatpush2.xpose.msra.mxu0 0.0
    %2012 = vmatprep.subr.mxu0 0.0
    %2013 = vmatpush2.xpose.msra.mxu0 0.0
    %2014 = vmatprep.subr.mxu0 0.0
    %2015 = vmatpush2.xpose.msra.mxu0 0.0
    %2016 = vmatprep.subr.mxu0 0.0
    %2017 = vmatpush2.xpose.msra.mxu0 0.0
    %2018 = vmatprep.subr.mxu0 0.0
    %2019 = vmatpush2.xpose.msra.mxu0 0.0
    %2020 = vmatprep.subr.mxu0 0.0
    %2021 = vmatpush2.xpose.msra.mxu0 0.0
    %2022 = vmatprep.subr.mxu0 0.0
    %2023 = vmatpush2.xpose.msra.mxu0 0.0
    %2024 = vmatprep.subr.mxu0 0.0
    %2025 = vmatpush2.xpose.msra.mxu0 0.0
    %2026 = vmatprep.subr.mxu0 0.0
    %2027 = vmatpush2.xpose.msra.mxu0 0.0
    %2028 = vmatprep.subr.mxu0 0.0
    %2029 = vmatpush2.xpose.msra.mxu0 0.0
    %2030 = vmatprep.subr.mxu0 0.0
    %2031 = vmatpush2.xpose.msra.mxu0 0.0
    %2032 = vmatprep.subr.mxu0 0.0
    %2033 = vmatpush2.xpose.msra.mxu0 0.0
    %2034 = vmatprep.subr.mxu0 0.0
    %2035 = vmatpush2.xpose.msra.mxu0 0.0
    %2036 = vmatprep.subr.mxu0 0.0
    %2037 = vmatpush2.xpose.msra.mxu0 0.0
    %2038 = vmatprep.subr.mxu0 0.0
    %2039 = vmatpush2.xpose.msra.mxu0 0.0
    %2040 = vmatprep.subr.mxu0 0.0
    %2041 = vmatpush2.xpose.msra.mxu0 0.0
    %2042 = vmatprep.mubr.f32.mxu0 0.0
    %2043 = vmatmul.mubr.f32.gmra.mxu0 %v1974
    %v2044 = vpop.f32.mrf.mxu0
    %v2045 = vadd.f32 0.0, %v2044
    %v2046 = vpop.f32.mrf.mxu0
    %2047 = vdwg.mxu0
    %2048 = vrot.lane.b32.xlu0 %v178, 120
    %v2049 = vpop.permute.xlu0 %2048
    %2050 = vrot.lane.b32.xlu0 %v178, 88
    %v2051 = vpop.permute.xlu0 %2050
    %v2052 = vsel %vm184, %v2049, 0
    %v2054 = vsel %vm184, %v2051, 0
    %2056 = vmatprep.subr.mxu0 0.0
    %2057 = vmatpush1.xpose.msra.mxu0 0.0
    %2058 = vmatprep.subr.mxu0 0.0
    %2059 = vmatpush1.xpose.msra.mxu0 0.0
    %2060 = vmatprep.subr.mxu0 0.0
    %2061 = vmatpush1.xpose.msra.mxu0 0.0
    %2062 = vmatprep.subr.mxu0 0.0
    %2063 = vmatpush1.xpose.msra.mxu0 0.0
    %2064 = vmatprep.subr.mxu0 0.0
    %2065 = vmatpush1.xpose.msra.mxu0 0.0
    %2066 = vmatprep.subr.mxu0 0.0
    %2067 = vmatpush1.xpose.msra.mxu0 0.0
    %2068 = vmatprep.subr.mxu0 0.0
    %2069 = vmatpush1.xpose.msra.mxu0 0.0
    %2070 = vmatprep.subr.mxu0 0.0
    %2071 = vmatpush1.xpose.msra.mxu0 0.0
    %2072 = vmatprep.subr.mxu0 0.0
    %2073 = vmatpush1.xpose.msra.mxu0 0.0
    %2074 = vmatprep.subr.mxu0 0.0
    %2075 = vmatpush1.xpose.msra.mxu0 0.0
    %2076 = vmatprep.subr.mxu0 0.0
    %2077 = vmatpush1.xpose.msra.mxu0 0.0
    %2078 = vmatprep.subr.mxu0 0.0
    %2079 = vmatpush1.xpose.msra.mxu0 0.0
    %2080 = vmatprep.subr.mxu0 0.0
    %2081 = vmatpush1.xpose.msra.mxu0 0.0
    %2082 = vmatprep.subr.mxu0 0.0
    %2083 = vmatpush1.xpose.msra.mxu0 0.0
    %2084 = vmatprep.subr.mxu0 0.0
    %2085 = vmatpush1.xpose.msra.mxu0 0.0
    %2086 = vmatprep.subr.mxu0 0.0
    %2087 = vmatpush1.xpose.msra.mxu0 %v2054
    %2088 = vmatprep.subr.mxu0 0.0
    %2089 = vmatpush2.xpose.msra.mxu0 0.0
    %2090 = vmatprep.subr.mxu0 0.0
    %2091 = vmatpush2.xpose.msra.mxu0 0.0
    %2092 = vmatprep.subr.mxu0 0.0
    %2093 = vmatpush2.xpose.msra.mxu0 0.0
    %2094 = vmatprep.subr.mxu0 0.0
    %2095 = vmatpush2.xpose.msra.mxu0 0.0
    %2096 = vmatprep.subr.mxu0 0.0
    %2097 = vmatpush2.xpose.msra.mxu0 0.0
    %2098 = vmatprep.subr.mxu0 0.0
    %2099 = vmatpush2.xpose.msra.mxu0 0.0
    %2100 = vmatprep.subr.mxu0 0.0
    %2101 = vmatpush2.xpose.msra.mxu0 0.0
    %2102 = vmatprep.subr.mxu0 0.0
    %2103 = vmatpush2.xpose.msra.mxu0 0.0
    %2104 = vmatprep.subr.mxu0 0.0
    %2105 = vmatpush2.xpose.msra.mxu0 0.0
    %2106 = vmatprep.subr.mxu0 0.0
    %2107 = vmatpush2.xpose.msra.mxu0 0.0
    %2108 = vmatprep.subr.mxu0 0.0
    %2109 = vmatpush2.xpose.msra.mxu0 0.0
    %2110 = vmatprep.subr.mxu0 0.0
    %2111 = vmatpush2.xpose.msra.mxu0 0.0
    %2112 = vmatprep.subr.mxu0 0.0
    %2113 = vmatpush2.xpose.msra.mxu0 0.0
    %2114 = vmatprep.subr.mxu0 0.0
    %2115 = vmatpush2.xpose.msra.mxu0 0.0
    %2116 = vmatprep.subr.mxu0 0.0
    %2117 = vmatpush2.xpose.msra.mxu0 0.0
    %2118 = vmatprep.subr.mxu0 0.0
    %2119 = vmatpush2.xpose.msra.mxu0 0.0
    %2120 = vmatprep.mubr.f32.mxu0 0.0
    %2121 = vmatmul.mubr.f32.gmra.mxu0 %v2052
    %v2122 = vpop.f32.mrf.mxu0
    %v2123 = vadd.f32 0.0, %v2122
    %v2124 = vpop.f32.mrf.mxu0
    %2125 = vdwg.mxu0
    %v2126 = vsel %vm184, %v1577, -inf
    %2127 = vmax.xlane.f32.xlu0 %v2126
    %v2128 = vpop.xlane.xlu0 %2127
    %v2129 = vsel %vm184, %v1655, -inf
    %2130 = vmax.xlane.f32.xlu0 %v2129
    %v2131 = vpop.xlane.xlu0 %2130
    %v2132 = vsel %vm184, %v1733, -inf
    %2133 = vmax.xlane.f32.xlu0 %v2132
    %v2134 = vpop.xlane.xlu0 %2133
    %v2135 = vsel %vm184, %v1811, -inf
    %2136 = vmax.xlane.f32.xlu0 %v2135
    %v2137 = vpop.xlane.xlu0 %2136
    %v2138 = vsel %vm184, %v1889, -inf
    %2139 = vmax.xlane.f32.xlu0 %v2138
    %v2140 = vpop.xlane.xlu0 %2139
    %v2141 = vsel %vm184, %v1967, -inf
    %2142 = vmax.xlane.f32.xlu0 %v2141
    %v2143 = vpop.xlane.xlu0 %2142
    %v2144 = vsel %vm184, %v2045, -inf
    %2145 = vmax.xlane.f32.xlu0 %v2144
    %v2146 = vpop.xlane.xlu0 %2145
    %v2147 = vsel %vm184, %v2123, -inf
    %2148 = vmax.xlane.f32.xlu0 %v2147
    %v2149 = vpop.xlane.xlu0 %2148
    %v2150 = vsub.f32 %v1577, %v2128
    %v2151 = vsub.f32 %v1655, %v2131
    %v2152 = vsub.f32 %v1733, %v2134
    %v2153 = vsub.f32 %v1811, %v2137
    %v2154 = vsub.f32 %v1889, %v2140
    %v2155 = vsub.f32 %v1967, %v2143
    %v2156 = vsub.f32 %v2045, %v2146
    %v2157 = vsub.f32 %v2123, %v2149
    %v2158 = vmul.f32 %v2150, 1.442695
    %v2159 = vpow.pop %v2158
    %v2160 = vmul.f32 %v2151, 1.442695
    %v2161 = vpow.pop %v2160
    %v2162 = vmul.f32 %v2152, 1.442695
    %v2163 = vpow.pop %v2162
    %v2164 = vmul.f32 %v2153, 1.442695
    %v2165 = vpow.pop %v2164
    %v2166 = vmul.f32 %v2154, 1.442695
    %v2167 = vpow.pop %v2166
    %v2168 = vmul.f32 %v2155, 1.442695
    %v2169 = vpow.pop %v2168
    %v2170 = vmul.f32 %v2156, 1.442695
    %v2171 = vpow.pop %v2170
    %v2172 = vmul.f32 %v2157, 1.442695
    %v2173 = vpow.pop %v2172
    %v2174 = vsel %vm184, %v2159, 0.0
    %2175 = vadd.xlane.f32.xlu0 %v2174
    %v2176 = vpop.xlane.xlu0 %2175
    %v2177 = vsel %vm184, %v2161, 0.0
    %2178 = vadd.xlane.f32.xlu0 %v2177
    %v2179 = vpop.xlane.xlu0 %2178
    %v2180 = vsel %vm184, %v2163, 0.0
    %2181 = vadd.xlane.f32.xlu0 %v2180
    %v2182 = vpop.xlane.xlu0 %2181
    %v2183 = vsel %vm184, %v2165, 0.0
    %2184 = vadd.xlane.f32.xlu0 %v2183
    %v2185 = vpop.xlane.xlu0 %2184
    %v2186 = vsel %vm184, %v2167, 0.0
    %2187 = vadd.xlane.f32.xlu0 %v2186
    %v2188 = vpop.xlane.xlu0 %2187
    %v2189 = vsel %vm184, %v2169, 0.0
    %2190 = vadd.xlane.f32.xlu0 %v2189
    %v2191 = vpop.xlane.xlu0 %2190
    %v2192 = vsel %vm184, %v2171, 0.0
    %2193 = vadd.xlane.f32.xlu0 %v2192
    %v2194 = vpop.xlane.xlu0 %2193
    %v2195 = vsel %vm184, %v2173, 0.0
    %2196 = vadd.xlane.f32.xlu0 %v2195
    %v2197 = vpop.xlane.xlu0 %2196
    %v2198 = vrcp.pop %v2176
    %v2199 = vrcp.pop %v2179
    %v2200 = vrcp.pop %v2182
    %v2201 = vrcp.pop %v2185
    %v2202 = vrcp.pop %v2188
    %v2203 = vrcp.pop %v2191
    %v2204 = vrcp.pop %v2194
    %v2205 = vrcp.pop %v2197
    %v2206 = vmul.f32 %v2159, %v2198
    %v2207 = vmul.f32 %v2161, %v2199
    %v2208 = vmul.f32 %v2163, %v2200
    %v2209 = vmul.f32 %v2165, %v2201
    %v2210 = vmul.f32 %v2167, %v2202
    %v2211 = vmul.f32 %v2169, %v2203
    %v2212 = vmul.f32 %v2171, %v2204
    %v2213 = vmul.f32 %v2173, %v2205
    %2214 = vrot.lane.b32.xlu0 %v143, 56
    %v2215 = vpop.permute.xlu0 %2214
    %v2218 = vsel %vm184, %v2206, 0
    %2220 = vmatprep.subr.mxu0 0.0
    %2221 = vmatpush1.msra.mxu0 0.0
    %2222 = vmatprep.subr.mxu0 0.0
    %2223 = vmatpush1.msra.mxu0 0.0
    %2224 = vmatprep.subr.mxu0 0.0
    %2225 = vmatpush1.msra.mxu0 0.0
    %2226 = vmatprep.subr.mxu0 0.0
    %2227 = vmatpush1.msra.mxu0 0.0
    %2228 = vmatprep.subr.mxu0 0.0
    %2229 = vmatpush1.msra.mxu0 0.0
    %2230 = vmatprep.subr.mxu0 0.0
    %2231 = vmatpush1.msra.mxu0 0.0
    %2232 = vmatprep.subr.mxu0 0.0
    %2233 = vmatpush1.msra.mxu0 0.0
    %2234 = vmatprep.subr.mxu0 0.0
    %2235 = vmatpush1.msra.mxu0 0.0
    %2236 = vmatprep.subr.mxu0 0.0
    %2237 = vmatpush1.msra.mxu0 0.0
    %2238 = vmatprep.subr.mxu0 0.0
    %2239 = vmatpush1.msra.mxu0 0.0
    %2240 = vmatprep.subr.mxu0 0.0
    %2241 = vmatpush1.msra.mxu0 0.0
    %2242 = vmatprep.subr.mxu0 0.0
    %2243 = vmatpush1.msra.mxu0 0.0
    %2244 = vmatprep.subr.mxu0 0.0
    %2245 = vmatpush1.msra.mxu0 0.0
    %2246 = vmatprep.subr.mxu0 0.0
    %2247 = vmatpush1.msra.mxu0 0.0
    %2248 = vmatprep.subr.mxu0 0.0
    %2249 = vmatpush1.msra.mxu0 0.0
    %2250 = vmatprep.subr.mxu0 0.0
    %2251 = vmatpush1.msra.mxu0 %v2215
    %2252 = vmatprep.subr.mxu0 0.0
    %2253 = vmatpush2.msra.mxu0 0.0
    %2254 = vmatprep.subr.mxu0 0.0
    %2255 = vmatpush2.msra.mxu0 0.0
    %2256 = vmatprep.subr.mxu0 0.0
    %2257 = vmatpush2.msra.mxu0 0.0
    %2258 = vmatprep.subr.mxu0 0.0
    %2259 = vmatpush2.msra.mxu0 0.0
    %2260 = vmatprep.subr.mxu0 0.0
    %2261 = vmatpush2.msra.mxu0 0.0
    %2262 = vmatprep.subr.mxu0 0.0
    %2263 = vmatpush2.msra.mxu0 0.0
    %2264 = vmatprep.subr.mxu0 0.0
    %2265 = vmatpush2.msra.mxu0 0.0
    %2266 = vmatprep.subr.mxu0 0.0
    %2267 = vmatpush2.msra.mxu0 0.0
    %2268 = vmatprep.subr.mxu0 0.0
    %2269 = vmatpush2.msra.mxu0 0.0
    %2270 = vmatprep.subr.mxu0 0.0
    %2271 = vmatpush2.msra.mxu0 0.0
    %2272 = vmatprep.subr.mxu0 0.0
    %2273 = vmatpush2.msra.mxu0 0.0
    %2274 = vmatprep.subr.mxu0 0.0
    %2275 = vmatpush2.msra.mxu0 0.0
    %2276 = vmatprep.subr.mxu0 0.0
    %2277 = vmatpush2.msra.mxu0 0.0
    %2278 = vmatprep.subr.mxu0 0.0
    %2279 = vmatpush2.msra.mxu0 0.0
    %2280 = vmatprep.subr.mxu0 0.0
    %2281 = vmatpush2.msra.mxu0 0.0
    %2282 = vmatprep.subr.mxu0 0.0
    %2283 = vmatpush2.msra.mxu0 0.0
    %2284 = vmatprep.mubr.f32.mxu0 0.0
    %2285 = vmatmul.mubr.f32.gmra.mxu0 %v2218
    %v2286 = vpop.f32.mrf.mxu0
    %v2287 = vadd.f32 0.0, %v2286
    %v2288 = vpop.f32.mrf.mxu0
    %2289 = vdwg.mxu0
    %2290 = vrot.lane.b32.xlu0 %v148, 56
    %v2291 = vpop.permute.xlu0 %2290
    %v2294 = vsel %vm184, %v2207, 0
    %2296 = vmatprep.subr.mxu0 0.0
    %2297 = vmatpush1.msra.mxu0 0.0
    %2298 = vmatprep.subr.mxu0 0.0
    %2299 = vmatpush1.msra.mxu0 0.0
    %2300 = vmatprep.subr.mxu0 0.0
    %2301 = vmatpush1.msra.mxu0 0.0
    %2302 = vmatprep.subr.mxu0 0.0
    %2303 = vmatpush1.msra.mxu0 0.0
    %2304 = vmatprep.subr.mxu0 0.0
    %2305 = vmatpush1.msra.mxu0 0.0
    %2306 = vmatprep.subr.mxu0 0.0
    %2307 = vmatpush1.msra.mxu0 0.0
    %2308 = vmatprep.subr.mxu0 0.0
    %2309 = vmatpush1.msra.mxu0 0.0
    %2310 = vmatprep.subr.mxu0 0.0
    %2311 = vmatpush1.msra.mxu0 0.0
    %2312 = vmatprep.subr.mxu0 0.0
    %2313 = vmatpush1.msra.mxu0 0.0
    %2314 = vmatprep.subr.mxu0 0.0
    %2315 = vmatpush1.msra.mxu0 0.0
    %2316 = vmatprep.subr.mxu0 0.0
    %2317 = vmatpush1.msra.mxu0 0.0
    %2318 = vmatprep.subr.mxu0 0.0
    %2319 = vmatpush1.msra.mxu0 0.0
    %2320 = vmatprep.subr.mxu0 0.0
    %2321 = vmatpush1.msra.mxu0 0.0
    %2322 = vmatprep.subr.mxu0 0.0
    %2323 = vmatpush1.msra.mxu0 0.0
    %2324 = vmatprep.subr.mxu0 0.0
    %2325 = vmatpush1.msra.mxu0 0.0
    %2326 = vmatprep.subr.mxu0 0.0
    %2327 = vmatpush1.msra.mxu0 %v2291
    %2328 = vmatprep.subr.mxu0 0.0
    %2329 = vmatpush2.msra.mxu0 0.0
    %2330 = vmatprep.subr.mxu0 0.0
    %2331 = vmatpush2.msra.mxu0 0.0
    %2332 = vmatprep.subr.mxu0 0.0
    %2333 = vmatpush2.msra.mxu0 0.0
    %2334 = vmatprep.subr.mxu0 0.0
    %2335 = vmatpush2.msra.mxu0 0.0
    %2336 = vmatprep.subr.mxu0 0.0
    %2337 = vmatpush2.msra.mxu0 0.0
    %2338 = vmatprep.subr.mxu0 0.0
    %2339 = vmatpush2.msra.mxu0 0.0
    %2340 = vmatprep.subr.mxu0 0.0
    %2341 = vmatpush2.msra.mxu0 0.0
    %2342 = vmatprep.subr.mxu0 0.0
    %2343 = vmatpush2.msra.mxu0 0.0
    %2344 = vmatprep.subr.mxu0 0.0
    %2345 = vmatpush2.msra.mxu0 0.0
    %2346 = vmatprep.subr.mxu0 0.0
    %2347 = vmatpush2.msra.mxu0 0.0
    %2348 = vmatprep.subr.mxu0 0.0
    %2349 = vmatpush2.msra.mxu0 0.0
    %2350 = vmatprep.subr.mxu0 0.0
    %2351 = vmatpush2.msra.mxu0 0.0
    %2352 = vmatprep.subr.mxu0 0.0
    %2353 = vmatpush2.msra.mxu0 0.0
    %2354 = vmatprep.subr.mxu0 0.0
    %2355 = vmatpush2.msra.mxu0 0.0
    %2356 = vmatprep.subr.mxu0 0.0
    %2357 = vmatpush2.msra.mxu0 0.0
    %2358 = vmatprep.subr.mxu0 0.0
    %2359 = vmatpush2.msra.mxu0 0.0
    %2360 = vmatprep.mubr.f32.mxu0 0.0
    %2361 = vmatmul.mubr.f32.gmra.mxu0 %v2294
    %v2362 = vpop.f32.mrf.mxu0
    %v2363 = vadd.f32 0.0, %v2362
    %v2364 = vpop.f32.mrf.mxu0
    %2365 = vdwg.mxu0
    %2366 = vrot.lane.b32.xlu0 %v153, 56
    %v2367 = vpop.permute.xlu0 %2366
    %v2370 = vsel %vm184, %v2208, 0
    %2372 = vmatprep.subr.mxu0 0.0
    %2373 = vmatpush1.msra.mxu0 0.0
    %2374 = vmatprep.subr.mxu0 0.0
    %2375 = vmatpush1.msra.mxu0 0.0
    %2376 = vmatprep.subr.mxu0 0.0
    %2377 = vmatpush1.msra.mxu0 0.0
    %2378 = vmatprep.subr.mxu0 0.0
    %2379 = vmatpush1.msra.mxu0 0.0
    %2380 = vmatprep.subr.mxu0 0.0
    %2381 = vmatpush1.msra.mxu0 0.0
    %2382 = vmatprep.subr.mxu0 0.0
    %2383 = vmatpush1.msra.mxu0 0.0
    %2384 = vmatprep.subr.mxu0 0.0
    %2385 = vmatpush1.msra.mxu0 0.0
    %2386 = vmatprep.subr.mxu0 0.0
    %2387 = vmatpush1.msra.mxu0 0.0
    %2388 = vmatprep.subr.mxu0 0.0
    %2389 = vmatpush1.msra.mxu0 0.0
    %2390 = vmatprep.subr.mxu0 0.0
    %2391 = vmatpush1.msra.mxu0 0.0
    %2392 = vmatprep.subr.mxu0 0.0
    %2393 = vmatpush1.msra.mxu0 0.0
    %2394 = vmatprep.subr.mxu0 0.0
    %2395 = vmatpush1.msra.mxu0 0.0
    %2396 = vmatprep.subr.mxu0 0.0
    %2397 = vmatpush1.msra.mxu0 0.0
    %2398 = vmatprep.subr.mxu0 0.0
    %2399 = vmatpush1.msra.mxu0 0.0
    %2400 = vmatprep.subr.mxu0 0.0
    %2401 = vmatpush1.msra.mxu0 0.0
    %2402 = vmatprep.subr.mxu0 0.0
    %2403 = vmatpush1.msra.mxu0 %v2367
    %2404 = vmatprep.subr.mxu0 0.0
    %2405 = vmatpush2.msra.mxu0 0.0
    %2406 = vmatprep.subr.mxu0 0.0
    %2407 = vmatpush2.msra.mxu0 0.0
    %2408 = vmatprep.subr.mxu0 0.0
    %2409 = vmatpush2.msra.mxu0 0.0
    %2410 = vmatprep.subr.mxu0 0.0
    %2411 = vmatpush2.msra.mxu0 0.0
    %2412 = vmatprep.subr.mxu0 0.0
    %2413 = vmatpush2.msra.mxu0 0.0
    %2414 = vmatprep.subr.mxu0 0.0
    %2415 = vmatpush2.msra.mxu0 0.0
    %2416 = vmatprep.subr.mxu0 0.0
    %2417 = vmatpush2.msra.mxu0 0.0
    %2418 = vmatprep.subr.mxu0 0.0
    %2419 = vmatpush2.msra.mxu0 0.0
    %2420 = vmatprep.subr.mxu0 0.0
    %2421 = vmatpush2.msra.mxu0 0.0
    %2422 = vmatprep.subr.mxu0 0.0
    %2423 = vmatpush2.msra.mxu0 0.0
    %2424 = vmatprep.subr.mxu0 0.0
    %2425 = vmatpush2.msra.mxu0 0.0
    %2426 = vmatprep.subr.mxu0 0.0
    %2427 = vmatpush2.msra.mxu0 0.0
    %2428 = vmatprep.subr.mxu0 0.0
    %2429 = vmatpush2.msra.mxu0 0.0
    %2430 = vmatprep.subr.mxu0 0.0
    %2431 = vmatpush2.msra.mxu0 0.0
    %2432 = vmatprep.subr.mxu0 0.0
    %2433 = vmatpush2.msra.mxu0 0.0
    %2434 = vmatprep.subr.mxu0 0.0
    %2435 = vmatpush2.msra.mxu0 0.0
    %2436 = vmatprep.mubr.f32.mxu0 0.0
    %2437 = vmatmul.mubr.f32.gmra.mxu0 %v2370
    %v2438 = vpop.f32.mrf.mxu0
    %v2439 = vadd.f32 0.0, %v2438
    %v2440 = vpop.f32.mrf.mxu0
    %2441 = vdwg.mxu0
    %2442 = vrot.lane.b32.xlu0 %v158, 56
    %v2443 = vpop.permute.xlu0 %2442
    %v2446 = vsel %vm184, %v2209, 0
    %2448 = vmatprep.subr.mxu0 0.0
    %2449 = vmatpush1.msra.mxu0 0.0
    %2450 = vmatprep.subr.mxu0 0.0
    %2451 = vmatpush1.msra.mxu0 0.0
    %2452 = vmatprep.subr.mxu0 0.0
    %2453 = vmatpush1.msra.mxu0 0.0
    %2454 = vmatprep.subr.mxu0 0.0
    %2455 = vmatpush1.msra.mxu0 0.0
    %2456 = vmatprep.subr.mxu0 0.0
    %2457 = vmatpush1.msra.mxu0 0.0
    %2458 = vmatprep.subr.mxu0 0.0
    %2459 = vmatpush1.msra.mxu0 0.0
    %2460 = vmatprep.subr.mxu0 0.0
    %2461 = vmatpush1.msra.mxu0 0.0
    %2462 = vmatprep.subr.mxu0 0.0
    %2463 = vmatpush1.msra.mxu0 0.0
    %2464 = vmatprep.subr.mxu0 0.0
    %2465 = vmatpush1.msra.mxu0 0.0
    %2466 = vmatprep.subr.mxu0 0.0
    %2467 = vmatpush1.msra.mxu0 0.0
    %2468 = vmatprep.subr.mxu0 0.0
    %2469 = vmatpush1.msra.mxu0 0.0
    %2470 = vmatprep.subr.mxu0 0.0
    %2471 = vmatpush1.msra.mxu0 0.0
    %2472 = vmatprep.subr.mxu0 0.0
    %2473 = vmatpush1.msra.mxu0 0.0
    %2474 = vmatprep.subr.mxu0 0.0
    %2475 = vmatpush1.msra.mxu0 0.0
    %2476 = vmatprep.subr.mxu0 0.0
    %2477 = vmatpush1.msra.mxu0 0.0
    %2478 = vmatprep.subr.mxu0 0.0
    %2479 = vmatpush1.msra.mxu0 %v2443
    %2480 = vmatprep.subr.mxu0 0.0
    %2481 = vmatpush2.msra.mxu0 0.0
    %2482 = vmatprep.subr.mxu0 0.0
    %2483 = vmatpush2.msra.mxu0 0.0
    %2484 = vmatprep.subr.mxu0 0.0
    %2485 = vmatpush2.msra.mxu0 0.0
    %2486 = vmatprep.subr.mxu0 0.0
    %2487 = vmatpush2.msra.mxu0 0.0
    %2488 = vmatprep.subr.mxu0 0.0
    %2489 = vmatpush2.msra.mxu0 0.0
    %2490 = vmatprep.subr.mxu0 0.0
    %2491 = vmatpush2.msra.mxu0 0.0
    %2492 = vmatprep.subr.mxu0 0.0
    %2493 = vmatpush2.msra.mxu0 0.0
    %2494 = vmatprep.subr.mxu0 0.0
    %2495 = vmatpush2.msra.mxu0 0.0
    %2496 = vmatprep.subr.mxu0 0.0
    %2497 = vmatpush2.msra.mxu0 0.0
    %2498 = vmatprep.subr.mxu0 0.0
    %2499 = vmatpush2.msra.mxu0 0.0
    %2500 = vmatprep.subr.mxu0 0.0
    %2501 = vmatpush2.msra.mxu0 0.0
    %2502 = vmatprep.subr.mxu0 0.0
    %2503 = vmatpush2.msra.mxu0 0.0
    %2504 = vmatprep.subr.mxu0 0.0
    %2505 = vmatpush2.msra.mxu0 0.0
    %2506 = vmatprep.subr.mxu0 0.0
    %2507 = vmatpush2.msra.mxu0 0.0
    %2508 = vmatprep.subr.mxu0 0.0
    %2509 = vmatpush2.msra.mxu0 0.0
    %2510 = vmatprep.subr.mxu0 0.0
    %2511 = vmatpush2.msra.mxu0 0.0
    %2512 = vmatprep.mubr.f32.mxu0 0.0
    %2513 = vmatmul.mubr.f32.gmra.mxu0 %v2446
    %v2514 = vpop.f32.mrf.mxu0
    %v2515 = vadd.f32 0.0, %v2514
    %v2516 = vpop.f32.mrf.mxu0
    %2517 = vdwg.mxu0
    %2518 = vrot.lane.b32.xlu0 %v163, 56
    %v2519 = vpop.permute.xlu0 %2518
    %v2522 = vsel %vm184, %v2210, 0
    %2524 = vmatprep.subr.mxu0 0.0
    %2525 = vmatpush1.msra.mxu0 0.0
    %2526 = vmatprep.subr.mxu0 0.0
    %2527 = vmatpush1.msra.mxu0 0.0
    %2528 = vmatprep.subr.mxu0 0.0
    %2529 = vmatpush1.msra.mxu0 0.0
    %2530 = vmatprep.subr.mxu0 0.0
    %2531 = vmatpush1.msra.mxu0 0.0
    %2532 = vmatprep.subr.mxu0 0.0
    %2533 = vmatpush1.msra.mxu0 0.0
    %2534 = vmatprep.subr.mxu0 0.0
    %2535 = vmatpush1.msra.mxu0 0.0
    %2536 = vmatprep.subr.mxu0 0.0
    %2537 = vmatpush1.msra.mxu0 0.0
    %2538 = vmatprep.subr.mxu0 0.0
    %2539 = vmatpush1.msra.mxu0 0.0
    %2540 = vmatprep.subr.mxu0 0.0
    %2541 = vmatpush1.msra.mxu0 0.0
    %2542 = vmatprep.subr.mxu0 0.0
    %2543 = vmatpush1.msra.mxu0 0.0
    %2544 = vmatprep.subr.mxu0 0.0
    %2545 = vmatpush1.msra.mxu0 0.0
    %2546 = vmatprep.subr.mxu0 0.0
    %2547 = vmatpush1.msra.mxu0 0.0
    %2548 = vmatprep.subr.mxu0 0.0
    %2549 = vmatpush1.msra.mxu0 0.0
    %2550 = vmatprep.subr.mxu0 0.0
    %2551 = vmatpush1.msra.mxu0 0.0
    %2552 = vmatprep.subr.mxu0 0.0
    %2553 = vmatpush1.msra.mxu0 0.0
    %2554 = vmatprep.subr.mxu0 0.0
    %2555 = vmatpush1.msra.mxu0 %v2519
    %2556 = vmatprep.subr.mxu0 0.0
    %2557 = vmatpush2.msra.mxu0 0.0
    %2558 = vmatprep.subr.mxu0 0.0
    %2559 = vmatpush2.msra.mxu0 0.0
    %2560 = vmatprep.subr.mxu0 0.0
    %2561 = vmatpush2.msra.mxu0 0.0
    %2562 = vmatprep.subr.mxu0 0.0
    %2563 = vmatpush2.msra.mxu0 0.0
    %2564 = vmatprep.subr.mxu0 0.0
    %2565 = vmatpush2.msra.mxu0 0.0
    %2566 = vmatprep.subr.mxu0 0.0
    %2567 = vmatpush2.msra.mxu0 0.0
    %2568 = vmatprep.subr.mxu0 0.0
    %2569 = vmatpush2.msra.mxu0 0.0
    %2570 = vmatprep.subr.mxu0 0.0
    %2571 = vmatpush2.msra.mxu0 0.0
    %2572 = vmatprep.subr.mxu0 0.0
    %2573 = vmatpush2.msra.mxu0 0.0
    %2574 = vmatprep.subr.mxu0 0.0
    %2575 = vmatpush2.msra.mxu0 0.0
    %2576 = vmatprep.subr.mxu0 0.0
    %2577 = vmatpush2.msra.mxu0 0.0
    %2578 = vmatprep.subr.mxu0 0.0
    %2579 = vmatpush2.msra.mxu0 0.0
    %2580 = vmatprep.subr.mxu0 0.0
    %2581 = vmatpush2.msra.mxu0 0.0
    %2582 = vmatprep.subr.mxu0 0.0
    %2583 = vmatpush2.msra.mxu0 0.0
    %2584 = vmatprep.subr.mxu0 0.0
    %2585 = vmatpush2.msra.mxu0 0.0
    %2586 = vmatprep.subr.mxu0 0.0
    %2587 = vmatpush2.msra.mxu0 0.0
    %2588 = vmatprep.mubr.f32.mxu0 0.0
    %2589 = vmatmul.mubr.f32.gmra.mxu0 %v2522
    %v2590 = vpop.f32.mrf.mxu0
    %v2591 = vadd.f32 0.0, %v2590
    %v2592 = vpop.f32.mrf.mxu0
    %2593 = vdwg.mxu0
    %2594 = vrot.lane.b32.xlu0 %v168, 56
    %v2595 = vpop.permute.xlu0 %2594
    %v2598 = vsel %vm184, %v2211, 0
    %2600 = vmatprep.subr.mxu0 0.0
    %2601 = vmatpush1.msra.mxu0 0.0
    %2602 = vmatprep.subr.mxu0 0.0
    %2603 = vmatpush1.msra.mxu0 0.0
    %2604 = vmatprep.subr.mxu0 0.0
    %2605 = vmatpush1.msra.mxu0 0.0
    %2606 = vmatprep.subr.mxu0 0.0
    %2607 = vmatpush1.msra.mxu0 0.0
    %2608 = vmatprep.subr.mxu0 0.0
    %2609 = vmatpush1.msra.mxu0 0.0
    %2610 = vmatprep.subr.mxu0 0.0
    %2611 = vmatpush1.msra.mxu0 0.0
    %2612 = vmatprep.subr.mxu0 0.0
    %2613 = vmatpush1.msra.mxu0 0.0
    %2614 = vmatprep.subr.mxu0 0.0
    %2615 = vmatpush1.msra.mxu0 0.0
    %2616 = vmatprep.subr.mxu0 0.0
    %2617 = vmatpush1.msra.mxu0 0.0
    %2618 = vmatprep.subr.mxu0 0.0
    %2619 = vmatpush1.msra.mxu0 0.0
    %2620 = vmatprep.subr.mxu0 0.0
    %2621 = vmatpush1.msra.mxu0 0.0
    %2622 = vmatprep.subr.mxu0 0.0
    %2623 = vmatpush1.msra.mxu0 0.0
    %2624 = vmatprep.subr.mxu0 0.0
    %2625 = vmatpush1.msra.mxu0 0.0
    %2626 = vmatprep.subr.mxu0 0.0
    %2627 = vmatpush1.msra.mxu0 0.0
    %2628 = vmatprep.subr.mxu0 0.0
    %2629 = vmatpush1.msra.mxu0 0.0
    %2630 = vmatprep.subr.mxu0 0.0
    %2631 = vmatpush1.msra.mxu0 %v2595
    %2632 = vmatprep.subr.mxu0 0.0
    %2633 = vmatpush2.msra.mxu0 0.0
    %2634 = vmatprep.subr.mxu0 0.0
    %2635 = vmatpush2.msra.mxu0 0.0
    %2636 = vmatprep.subr.mxu0 0.0
    %2637 = vmatpush2.msra.mxu0 0.0
    %2638 = vmatprep.subr.mxu0 0.0
    %2639 = vmatpush2.msra.mxu0 0.0
    %2640 = vmatprep.subr.mxu0 0.0
    %2641 = vmatpush2.msra.mxu0 0.0
    %2642 = vmatprep.subr.mxu0 0.0
    %2643 = vmatpush2.msra.mxu0 0.0
    %2644 = vmatprep.subr.mxu0 0.0
    %2645 = vmatpush2.msra.mxu0 0.0
    %2646 = vmatprep.subr.mxu0 0.0
    %2647 = vmatpush2.msra.mxu0 0.0
    %2648 = vmatprep.subr.mxu0 0.0
    %2649 = vmatpush2.msra.mxu0 0.0
    %2650 = vmatprep.subr.mxu0 0.0
    %2651 = vmatpush2.msra.mxu0 0.0
    %2652 = vmatprep.subr.mxu0 0.0
    %2653 = vmatpush2.msra.mxu0 0.0
    %2654 = vmatprep.subr.mxu0 0.0
    %2655 = vmatpush2.msra.mxu0 0.0
    %2656 = vmatprep.subr.mxu0 0.0
    %2657 = vmatpush2.msra.mxu0 0.0
    %2658 = vmatprep.subr.mxu0 0.0
    %2659 = vmatpush2.msra.mxu0 0.0
    %2660 = vmatprep.subr.mxu0 0.0
    %2661 = vmatpush2.msra.mxu0 0.0
    %2662 = vmatprep.subr.mxu0 0.0
    %2663 = vmatpush2.msra.mxu0 0.0
    %2664 = vmatprep.mubr.f32.mxu0 0.0
    %2665 = vmatmul.mubr.f32.gmra.mxu0 %v2598
    %v2666 = vpop.f32.mrf.mxu0
    %v2667 = vadd.f32 0.0, %v2666
    %v2668 = vpop.f32.mrf.mxu0
    %2669 = vdwg.mxu0
    %2670 = vrot.lane.b32.xlu0 %v173, 56
    %v2671 = vpop.permute.xlu0 %2670
    %v2674 = vsel %vm184, %v2212, 0
    %2676 = vmatprep.subr.mxu0 0.0
    %2677 = vmatpush1.msra.mxu0 0.0
    %2678 = vmatprep.subr.mxu0 0.0
    %2679 = vmatpush1.msra.mxu0 0.0
    %2680 = vmatprep.subr.mxu0 0.0
    %2681 = vmatpush1.msra.mxu0 0.0
    %2682 = vmatprep.subr.mxu0 0.0
    %2683 = vmatpush1.msra.mxu0 0.0
    %2684 = vmatprep.subr.mxu0 0.0
    %2685 = vmatpush1.msra.mxu0 0.0
    %2686 = vmatprep.subr.mxu0 0.0
    %2687 = vmatpush1.msra.mxu0 0.0
    %2688 = vmatprep.subr.mxu0 0.0
    %2689 = vmatpush1.msra.mxu0 0.0
    %2690 = vmatprep.subr.mxu0 0.0
    %2691 = vmatpush1.msra.mxu0 0.0
    %2692 = vmatprep.subr.mxu0 0.0
    %2693 = vmatpush1.msra.mxu0 0.0
    %2694 = vmatprep.subr.mxu0 0.0
    %2695 = vmatpush1.msra.mxu0 0.0
    %2696 = vmatprep.subr.mxu0 0.0
    %2697 = vmatpush1.msra.mxu0 0.0
    %2698 = vmatprep.subr.mxu0 0.0
    %2699 = vmatpush1.msra.mxu0 0.0
    %2700 = vmatprep.subr.mxu0 0.0
    %2701 = vmatpush1.msra.mxu0 0.0
    %2702 = vmatprep.subr.mxu0 0.0
    %2703 = vmatpush1.msra.mxu0 0.0
    %2704 = vmatprep.subr.mxu0 0.0
    %2705 = vmatpush1.msra.mxu0 0.0
    %2706 = vmatprep.subr.mxu0 0.0
    %2707 = vmatpush1.msra.mxu0 %v2671
    %2708 = vmatprep.subr.mxu0 0.0
    %2709 = vmatpush2.msra.mxu0 0.0
    %2710 = vmatprep.subr.mxu0 0.0
    %2711 = vmatpush2.msra.mxu0 0.0
    %2712 = vmatprep.subr.mxu0 0.0
    %2713 = vmatpush2.msra.mxu0 0.0
    %2714 = vmatprep.subr.mxu0 0.0
    %2715 = vmatpush2.msra.mxu0 0.0
    %2716 = vmatprep.subr.mxu0 0.0
    %2717 = vmatpush2.msra.mxu0 0.0
    %2718 = vmatprep.subr.mxu0 0.0
    %2719 = vmatpush2.msra.mxu0 0.0
    %2720 = vmatprep.subr.mxu0 0.0
    %2721 = vmatpush2.msra.mxu0 0.0
    %2722 = vmatprep.subr.mxu0 0.0
    %2723 = vmatpush2.msra.mxu0 0.0
    %2724 = vmatprep.subr.mxu0 0.0
    %2725 = vmatpush2.msra.mxu0 0.0
    %2726 = vmatprep.subr.mxu0 0.0
    %2727 = vmatpush2.msra.mxu0 0.0
    %2728 = vmatprep.subr.mxu0 0.0
    %2729 = vmatpush2.msra.mxu0 0.0
    %2730 = vmatprep.subr.mxu0 0.0
    %2731 = vmatpush2.msra.mxu0 0.0
    %2732 = vmatprep.subr.mxu0 0.0
    %2733 = vmatpush2.msra.mxu0 0.0
    %2734 = vmatprep.subr.mxu0 0.0
    %2735 = vmatpush2.msra.mxu0 0.0
    %2736 = vmatprep.subr.mxu0 0.0
    %2737 = vmatpush2.msra.mxu0 0.0
    %2738 = vmatprep.subr.mxu0 0.0
    %2739 = vmatpush2.msra.mxu0 0.0
    %2740 = vmatprep.mubr.f32.mxu0 0.0
    %2741 = vmatmul.mubr.f32.gmra.mxu0 %v2674
    %v2742 = vpop.f32.mrf.mxu0
    %v2743 = vadd.f32 0.0, %v2742
    %v2744 = vpop.f32.mrf.mxu0
    %2745 = vdwg.mxu0
    %2746 = vrot.lane.b32.xlu0 %v178, 56
    %v2747 = vpop.permute.xlu0 %2746
    %v2750 = vsel %vm184, %v2213, 0
    %2752 = vmatprep.subr.mxu0 0.0
    %2753 = vmatpush1.msra.mxu0 0.0
    %2754 = vmatprep.subr.mxu0 0.0
    %2755 = vmatpush1.msra.mxu0 0.0
    %2756 = vmatprep.subr.mxu0 0.0
    %2757 = vmatpush1.msra.mxu0 0.0
    %2758 = vmatprep.subr.mxu0 0.0
    %2759 = vmatpush1.msra.mxu0 0.0
    %2760 = vmatprep.subr.mxu0 0.0
    %2761 = vmatpush1.msra.mxu0 0.0
    %2762 = vmatprep.subr.mxu0 0.0
    %2763 = vmatpush1.msra.mxu0 0.0
    %2764 = vmatprep.subr.mxu0 0.0
    %2765 = vmatpush1.msra.mxu0 0.0
    %2766 = vmatprep.subr.mxu0 0.0
    %2767 = vmatpush1.msra.mxu0 0.0
    %2768 = vmatprep.subr.mxu0 0.0
    %2769 = vmatpush1.msra.mxu0 0.0
    %2770 = vmatprep.subr.mxu0 0.0
    %2771 = vmatpush1.msra.mxu0 0.0
    %2772 = vmatprep.subr.mxu0 0.0
    %2773 = vmatpush1.msra.mxu0 0.0
    %2774 = vmatprep.subr.mxu0 0.0
    %2775 = vmatpush1.msra.mxu0 0.0
    %2776 = vmatprep.subr.mxu0 0.0
    %2777 = vmatpush1.msra.mxu0 0.0
    %2778 = vmatprep.subr.mxu0 0.0
    %2779 = vmatpush1.msra.mxu0 0.0
    %2780 = vmatprep.subr.mxu0 0.0
    %2781 = vmatpush1.msra.mxu0 0.0
    %2782 = vmatprep.subr.mxu0 0.0
    %2783 = vmatpush1.msra.mxu0 %v2747
    %2784 = vmatprep.subr.mxu0 0.0
    %2785 = vmatpush2.msra.mxu0 0.0
    %2786 = vmatprep.subr.mxu0 0.0
    %2787 = vmatpush2.msra.mxu0 0.0
    %2788 = vmatprep.subr.mxu0 0.0
    %2789 = vmatpush2.msra.mxu0 0.0
    %2790 = vmatprep.subr.mxu0 0.0
    %2791 = vmatpush2.msra.mxu0 0.0
    %2792 = vmatprep.subr.mxu0 0.0
    %2793 = vmatpush2.msra.mxu0 0.0
    %2794 = vmatprep.subr.mxu0 0.0
    %2795 = vmatpush2.msra.mxu0 0.0
    %2796 = vmatprep.subr.mxu0 0.0
    %2797 = vmatpush2.msra.mxu0 0.0
    %2798 = vmatprep.subr.mxu0 0.0
    %2799 = vmatpush2.msra.mxu0 0.0
    %2800 = vmatprep.subr.mxu0 0.0
    %2801 = vmatpush2.msra.mxu0 0.0
    %2802 = vmatprep.subr.mxu0 0.0
    %2803 = vmatpush2.msra.mxu0 0.0
    %2804 = vmatprep.subr.mxu0 0.0
    %2805 = vmatpush2.msra.mxu0 0.0
    %2806 = vmatprep.subr.mxu0 0.0
    %2807 = vmatpush2.msra.mxu0 0.0
    %2808 = vmatprep.subr.mxu0 0.0
    %2809 = vmatpush2.msra.mxu0 0.0
    %2810 = vmatprep.subr.mxu0 0.0
    %2811 = vmatpush2.msra.mxu0 0.0
    %2812 = vmatprep.subr.mxu0 0.0
    %2813 = vmatpush2.msra.mxu0 0.0
    %2814 = vmatprep.subr.mxu0 0.0
    %2815 = vmatpush2.msra.mxu0 0.0
    %2816 = vmatprep.mubr.f32.mxu0 0.0
    %2817 = vmatmul.mubr.f32.gmra.mxu0 %v2750
    %v2818 = vpop.f32.mrf.mxu0
    %v2819 = vadd.f32 0.0, %v2818
    %v2820 = vpop.f32.mrf.mxu0
    %2821 = vdwg.mxu0
    %2830 = vrot.lane.b32.xlu0 %v2287, 8
    %v2831 = vpop.permute.xlu0 %2830
    %2832 = vrot.lane.b32.xlu0 %v2363, 8
    %v2833 = vpop.permute.xlu0 %2832
    %2834 = vrot.lane.b32.xlu0 %v2439, 8
    %v2835 = vpop.permute.xlu0 %2834
    %2836 = vrot.lane.b32.xlu0 %v2515, 8
    %v2837 = vpop.permute.xlu0 %2836
    %2838 = vrot.lane.b32.xlu0 %v2591, 8
    %v2839 = vpop.permute.xlu0 %2838
    %2840 = vrot.lane.b32.xlu0 %v2667, 8
    %v2841 = vpop.permute.xlu0 %2840
    %2842 = vrot.lane.b32.xlu0 %v2743, 8
    %v2843 = vpop.permute.xlu0 %2842
    %2844 = vrot.lane.b32.xlu0 %v2819, 8
    %v2845 = vpop.permute.xlu0 %2844
    %vm2854 = vcmask 130112
    %2855 = vst.msk [vmem:[#allocation2] sm:$0xff] %vm2854, %v2831
    %2856 = vst.msk [vmem:[#allocation2 + $0x8] sm:$0xff] %vm2854, %v2833
    %2857 = vst.msk [vmem:[#allocation2 + $0x10] sm:$0xff] %vm2854, %v2835
    %2858 = vst.msk [vmem:[#allocation2 + $0x18] sm:$0xff] %vm2854, %v2837
    %2859 = vst.msk [vmem:[#allocation2 + $0x20] sm:$0xff] %vm2854, %v2839
    %2860 = vst.msk [vmem:[#allocation2 + $0x28] sm:$0xff] %vm2854, %v2841
    %2861 = vst.msk [vmem:[#allocation2 + $0x30] sm:$0xff] %vm2854, %v2843
    %2862 = vst.msk [vmem:[#allocation2 + $0x38] sm:$0xff] %vm2854, %v2845
    %2863 = vrot.lane.b32.xlu0 %v143, 112
    %v2864 = vpop.permute.xlu0 %2863
    %2865 = vrot.lane.b32.xlu0 %v143, 80
    %v2866 = vpop.permute.xlu0 %2865
    %v2867 = vsel %vm184, %v2864, 0
    %v2869 = vsel %vm184, %v2866, 0
    %2871 = vmatprep.subr.mxu0 0.0
    %2872 = vmatpush1.xpose.msra.mxu0 0.0
    %2873 = vmatprep.subr.mxu0 0.0
    %2874 = vmatpush1.xpose.msra.mxu0 0.0
    %2875 = vmatprep.subr.mxu0 0.0
    %2876 = vmatpush1.xpose.msra.mxu0 0.0
    %2877 = vmatprep.subr.mxu0 0.0
    %2878 = vmatpush1.xpose.msra.mxu0 0.0
    %2879 = vmatprep.subr.mxu0 0.0
    %2880 = vmatpush1.xpose.msra.mxu0 0.0
    %2881 = vmatprep.subr.mxu0 0.0
    %2882 = vmatpush1.xpose.msra.mxu0 0.0
    %2883 = vmatprep.subr.mxu0 0.0
    %2884 = vmatpush1.xpose.msra.mxu0 0.0
    %2885 = vmatprep.subr.mxu0 0.0
    %2886 = vmatpush1.xpose.msra.mxu0 0.0
    %2887 = vmatprep.subr.mxu0 0.0
    %2888 = vmatpush1.xpose.msra.mxu0 0.0
    %2889 = vmatprep.subr.mxu0 0.0
    %2890 = vmatpush1.xpose.msra.mxu0 0.0
    %2891 = vmatprep.subr.mxu0 0.0
    %2892 = vmatpush1.xpose.msra.mxu0 0.0
    %2893 = vmatprep.subr.mxu0 0.0
    %2894 = vmatpush1.xpose.msra.mxu0 0.0
    %2895 = vmatprep.subr.mxu0 0.0
    %2896 = vmatpush1.xpose.msra.mxu0 0.0
    %2897 = vmatprep.subr.mxu0 0.0
    %2898 = vmatpush1.xpose.msra.mxu0 0.0
    %2899 = vmatprep.subr.mxu0 0.0
    %2900 = vmatpush1.xpose.msra.mxu0 0.0
    %2901 = vmatprep.subr.mxu0 0.0
    %2902 = vmatpush1.xpose.msra.mxu0 %v2869
    %2903 = vmatprep.subr.mxu0 0.0
    %2904 = vmatpush2.xpose.msra.mxu0 0.0
    %2905 = vmatprep.subr.mxu0 0.0
    %2906 = vmatpush2.xpose.msra.mxu0 0.0
    %2907 = vmatprep.subr.mxu0 0.0
    %2908 = vmatpush2.xpose.msra.mxu0 0.0
    %2909 = vmatprep.subr.mxu0 0.0
    %2910 = vmatpush2.xpose.msra.mxu0 0.0
    %2911 = vmatprep.subr.mxu0 0.0
    %2912 = vmatpush2.xpose.msra.mxu0 0.0
    %2913 = vmatprep.subr.mxu0 0.0
    %2914 = vmatpush2.xpose.msra.mxu0 0.0
    %2915 = vmatprep.subr.mxu0 0.0
    %2916 = vmatpush2.xpose.msra.mxu0 0.0
    %2917 = vmatprep.subr.mxu0 0.0
    %2918 = vmatpush2.xpose.msra.mxu0 0.0
    %2919 = vmatprep.subr.mxu0 0.0
    %2920 = vmatpush2.xpose.msra.mxu0 0.0
    %2921 = vmatprep.subr.mxu0 0.0
    %2922 = vmatpush2.xpose.msra.mxu0 0.0
    %2923 = vmatprep.subr.mxu0 0.0
    %2924 = vmatpush2.xpose.msra.mxu0 0.0
    %2925 = vmatprep.subr.mxu0 0.0
    %2926 = vmatpush2.xpose.msra.mxu0 0.0
    %2927 = vmatprep.subr.mxu0 0.0
    %2928 = vmatpush2.xpose.msra.mxu0 0.0
    %2929 = vmatprep.subr.mxu0 0.0
    %2930 = vmatpush2.xpose.msra.mxu0 0.0
    %2931 = vmatprep.subr.mxu0 0.0
    %2932 = vmatpush2.xpose.msra.mxu0 0.0
    %2933 = vmatprep.subr.mxu0 0.0
    %2934 = vmatpush2.xpose.msra.mxu0 0.0
    %2935 = vmatprep.mubr.f32.mxu0 0.0
    %2936 = vmatmul.mubr.f32.gmra.mxu0 %v2867
    %v2937 = vpop.f32.mrf.mxu0
    %v2938 = vadd.f32 0.0, %v2937
    %v2939 = vpop.f32.mrf.mxu0
    %2940 = vdwg.mxu0
    %2941 = vrot.lane.b32.xlu0 %v148, 112
    %v2942 = vpop.permute.xlu0 %2941
    %2943 = vrot.lane.b32.xlu0 %v148, 80
    %v2944 = vpop.permute.xlu0 %2943
    %v2945 = vsel %vm184, %v2942, 0
    %v2947 = vsel %vm184, %v2944, 0
    %2949 = vmatprep.subr.mxu0 0.0
    %2950 = vmatpush1.xpose.msra.mxu0 0.0
    %2951 = vmatprep.subr.mxu0 0.0
    %2952 = vmatpush1.xpose.msra.mxu0 0.0
    %2953 = vmatprep.subr.mxu0 0.0
    %2954 = vmatpush1.xpose.msra.mxu0 0.0
    %2955 = vmatprep.subr.mxu0 0.0
    %2956 = vmatpush1.xpose.msra.mxu0 0.0
    %2957 = vmatprep.subr.mxu0 0.0
    %2958 = vmatpush1.xpose.msra.mxu0 0.0
    %2959 = vmatprep.subr.mxu0 0.0
    %2960 = vmatpush1.xpose.msra.mxu0 0.0
    %2961 = vmatprep.subr.mxu0 0.0
    %2962 = vmatpush1.xpose.msra.mxu0 0.0
    %2963 = vmatprep.subr.mxu0 0.0
    %2964 = vmatpush1.xpose.msra.mxu0 0.0
    %2965 = vmatprep.subr.mxu0 0.0
    %2966 = vmatpush1.xpose.msra.mxu0 0.0
    %2967 = vmatprep.subr.mxu0 0.0
    %2968 = vmatpush1.xpose.msra.mxu0 0.0
    %2969 = vmatprep.subr.mxu0 0.0
    %2970 = vmatpush1.xpose.msra.mxu0 0.0
    %2971 = vmatprep.subr.mxu0 0.0
    %2972 = vmatpush1.xpose.msra.mxu0 0.0
    %2973 = vmatprep.subr.mxu0 0.0
    %2974 = vmatpush1.xpose.msra.mxu0 0.0
    %2975 = vmatprep.subr.mxu0 0.0
    %2976 = vmatpush1.xpose.msra.mxu0 0.0
    %2977 = vmatprep.subr.mxu0 0.0
    %2978 = vmatpush1.xpose.msra.mxu0 0.0
    %2979 = vmatprep.subr.mxu0 0.0
    %2980 = vmatpush1.xpose.msra.mxu0 %v2947
    %2981 = vmatprep.subr.mxu0 0.0
    %2982 = vmatpush2.xpose.msra.mxu0 0.0
    %2983 = vmatprep.subr.mxu0 0.0
    %2984 = vmatpush2.xpose.msra.mxu0 0.0
    %2985 = vmatprep.subr.mxu0 0.0
    %2986 = vmatpush2.xpose.msra.mxu0 0.0
    %2987 = vmatprep.subr.mxu0 0.0
    %2988 = vmatpush2.xpose.msra.mxu0 0.0
    %2989 = vmatprep.subr.mxu0 0.0
    %2990 = vmatpush2.xpose.msra.mxu0 0.0
    %2991 = vmatprep.subr.mxu0 0.0
    %2992 = vmatpush2.xpose.msra.mxu0 0.0
    %2993 = vmatprep.subr.mxu0 0.0
    %2994 = vmatpush2.xpose.msra.mxu0 0.0
    %2995 = vmatprep.subr.mxu0 0.0
    %2996 = vmatpush2.xpose.msra.mxu0 0.0
    %2997 = vmatprep.subr.mxu0 0.0
    %2998 = vmatpush2.xpose.msra.mxu0 0.0
    %2999 = vmatprep.subr.mxu0 0.0
    %3000 = vmatpush2.xpose.msra.mxu0 0.0
    %3001 = vmatprep.subr.mxu0 0.0
    %3002 = vmatpush2.xpose.msra.mxu0 0.0
    %3003 = vmatprep.subr.mxu0 0.0
    %3004 = vmatpush2.xpose.msra.mxu0 0.0
    %3005 = vmatprep.subr.mxu0 0.0
    %3006 = vmatpush2.xpose.msra.mxu0 0.0
    %3007 = vmatprep.subr.mxu0 0.0
    %3008 = vmatpush2.xpose.msra.mxu0 0.0
    %3009 = vmatprep.subr.mxu0 0.0
    %3010 = vmatpush2.xpose.msra.mxu0 0.0
    %3011 = vmatprep.subr.mxu0 0.0
    %3012 = vmatpush2.xpose.msra.mxu0 0.0
    %3013 = vmatprep.mubr.f32.mxu0 0.0
    %3014 = vmatmul.mubr.f32.gmra.mxu0 %v2945
    %v3015 = vpop.f32.mrf.mxu0
    %v3016 = vadd.f32 0.0, %v3015
    %v3017 = vpop.f32.mrf.mxu0
    %3018 = vdwg.mxu0
    %3019 = vrot.lane.b32.xlu0 %v153, 112
    %v3020 = vpop.permute.xlu0 %3019
    %3021 = vrot.lane.b32.xlu0 %v153, 80
    %v3022 = vpop.permute.xlu0 %3021
    %v3023 = vsel %vm184, %v3020, 0
    %v3025 = vsel %vm184, %v3022, 0
    %3027 = vmatprep.subr.mxu0 0.0
    %3028 = vmatpush1.xpose.msra.mxu0 0.0
    %3029 = vmatprep.subr.mxu0 0.0
    %3030 = vmatpush1.xpose.msra.mxu0 0.0
    %3031 = vmatprep.subr.mxu0 0.0
    %3032 = vmatpush1.xpose.msra.mxu0 0.0
    %3033 = vmatprep.subr.mxu0 0.0
    %3034 = vmatpush1.xpose.msra.mxu0 0.0
    %3035 = vmatprep.subr.mxu0 0.0
    %3036 = vmatpush1.xpose.msra.mxu0 0.0
    %3037 = vmatprep.subr.mxu0 0.0
    %3038 = vmatpush1.xpose.msra.mxu0 0.0
    %3039 = vmatprep.subr.mxu0 0.0
    %3040 = vmatpush1.xpose.msra.mxu0 0.0
    %3041 = vmatprep.subr.mxu0 0.0
    %3042 = vmatpush1.xpose.msra.mxu0 0.0
    %3043 = vmatprep.subr.mxu0 0.0
    %3044 = vmatpush1.xpose.msra.mxu0 0.0
    %3045 = vmatprep.subr.mxu0 0.0
    %3046 = vmatpush1.xpose.msra.mxu0 0.0
    %3047 = vmatprep.subr.mxu0 0.0
    %3048 = vmatpush1.xpose.msra.mxu0 0.0
    %3049 = vmatprep.subr.mxu0 0.0
    %3050 = vmatpush1.xpose.msra.mxu0 0.0
    %3051 = vmatprep.subr.mxu0 0.0
    %3052 = vmatpush1.xpose.msra.mxu0 0.0
    %3053 = vmatprep.subr.mxu0 0.0
    %3054 = vmatpush1.xpose.msra.mxu0 0.0
    %3055 = vmatprep.subr.mxu0 0.0
    %3056 = vmatpush1.xpose.msra.mxu0 0.0
    %3057 = vmatprep.subr.mxu0 0.0
    %3058 = vmatpush1.xpose.msra.mxu0 %v3025
    %3059 = vmatprep.subr.mxu0 0.0
    %3060 = vmatpush2.xpose.msra.mxu0 0.0
    %3061 = vmatprep.subr.mxu0 0.0
    %3062 = vmatpush2.xpose.msra.mxu0 0.0
    %3063 = vmatprep.subr.mxu0 0.0
    %3064 = vmatpush2.xpose.msra.mxu0 0.0
    %3065 = vmatprep.subr.mxu0 0.0
    %3066 = vmatpush2.xpose.msra.mxu0 0.0
    %3067 = vmatprep.subr.mxu0 0.0
    %3068 = vmatpush2.xpose.msra.mxu0 0.0
    %3069 = vmatprep.subr.mxu0 0.0
    %3070 = vmatpush2.xpose.msra.mxu0 0.0
    %3071 = vmatprep.subr.mxu0 0.0
    %3072 = vmatpush2.xpose.msra.mxu0 0.0
    %3073 = vmatprep.subr.mxu0 0.0
    %3074 = vmatpush2.xpose.msra.mxu0 0.0
    %3075 = vmatprep.subr.mxu0 0.0
    %3076 = vmatpush2.xpose.msra.mxu0 0.0
    %3077 = vmatprep.subr.mxu0 0.0
    %3078 = vmatpush2.xpose.msra.mxu0 0.0
    %3079 = vmatprep.subr.mxu0 0.0
    %3080 = vmatpush2.xpose.msra.mxu0 0.0
    %3081 = vmatprep.subr.mxu0 0.0
    %3082 = vmatpush2.xpose.msra.mxu0 0.0
    %3083 = vmatprep.subr.mxu0 0.0
    %3084 = vmatpush2.xpose.msra.mxu0 0.0
    %3085 = vmatprep.subr.mxu0 0.0
    %3086 = vmatpush2.xpose.msra.mxu0 0.0
    %3087 = vmatprep.subr.mxu0 0.0
    %3088 = vmatpush2.xpose.msra.mxu0 0.0
    %3089 = vmatprep.subr.mxu0 0.0
    %3090 = vmatpush2.xpose.msra.mxu0 0.0
    %3091 = vmatprep.mubr.f32.mxu0 0.0
    %3092 = vmatmul.mubr.f32.gmra.mxu0 %v3023
    %v3093 = vpop.f32.mrf.mxu0
    %v3094 = vadd.f32 0.0, %v3093
    %v3095 = vpop.f32.mrf.mxu0
    %3096 = vdwg.mxu0
    %3097 = vrot.lane.b32.xlu0 %v158, 112
    %v3098 = vpop.permute.xlu0 %3097
    %3099 = vrot.lane.b32.xlu0 %v158, 80
    %v3100 = vpop.permute.xlu0 %3099
    %v3101 = vsel %vm184, %v3098, 0
    %v3103 = vsel %vm184, %v3100, 0
    %3105 = vmatprep.subr.mxu0 0.0
    %3106 = vmatpush1.xpose.msra.mxu0 0.0
    %3107 = vmatprep.subr.mxu0 0.0
    %3108 = vmatpush1.xpose.msra.mxu0 0.0
    %3109 = vmatprep.subr.mxu0 0.0
    %3110 = vmatpush1.xpose.msra.mxu0 0.0
    %3111 = vmatprep.subr.mxu0 0.0
    %3112 = vmatpush1.xpose.msra.mxu0 0.0
    %3113 = vmatprep.subr.mxu0 0.0
    %3114 = vmatpush1.xpose.msra.mxu0 0.0
    %3115 = vmatprep.subr.mxu0 0.0
    %3116 = vmatpush1.xpose.msra.mxu0 0.0
    %3117 = vmatprep.subr.mxu0 0.0
    %3118 = vmatpush1.xpose.msra.mxu0 0.0
    %3119 = vmatprep.subr.mxu0 0.0
    %3120 = vmatpush1.xpose.msra.mxu0 0.0
    %3121 = vmatprep.subr.mxu0 0.0
    %3122 = vmatpush1.xpose.msra.mxu0 0.0
    %3123 = vmatprep.subr.mxu0 0.0
    %3124 = vmatpush1.xpose.msra.mxu0 0.0
    %3125 = vmatprep.subr.mxu0 0.0
    %3126 = vmatpush1.xpose.msra.mxu0 0.0
    %3127 = vmatprep.subr.mxu0 0.0
    %3128 = vmatpush1.xpose.msra.mxu0 0.0
    %3129 = vmatprep.subr.mxu0 0.0
    %3130 = vmatpush1.xpose.msra.mxu0 0.0
    %3131 = vmatprep.subr.mxu0 0.0
    %3132 = vmatpush1.xpose.msra.mxu0 0.0
    %3133 = vmatprep.subr.mxu0 0.0
    %3134 = vmatpush1.xpose.msra.mxu0 0.0
    %3135 = vmatprep.subr.mxu0 0.0
    %3136 = vmatpush1.xpose.msra.mxu0 %v3103
    %3137 = vmatprep.subr.mxu0 0.0
    %3138 = vmatpush2.xpose.msra.mxu0 0.0
    %3139 = vmatprep.subr.mxu0 0.0
    %3140 = vmatpush2.xpose.msra.mxu0 0.0
    %3141 = vmatprep.subr.mxu0 0.0
    %3142 = vmatpush2.xpose.msra.mxu0 0.0
    %3143 = vmatprep.subr.mxu0 0.0
    %3144 = vmatpush2.xpose.msra.mxu0 0.0
    %3145 = vmatprep.subr.mxu0 0.0
    %3146 = vmatpush2.xpose.msra.mxu0 0.0
    %3147 = vmatprep.subr.mxu0 0.0
    %3148 = vmatpush2.xpose.msra.mxu0 0.0
    %3149 = vmatprep.subr.mxu0 0.0
    %3150 = vmatpush2.xpose.msra.mxu0 0.0
    %3151 = vmatprep.subr.mxu0 0.0
    %3152 = vmatpush2.xpose.msra.mxu0 0.0
    %3153 = vmatprep.subr.mxu0 0.0
    %3154 = vmatpush2.xpose.msra.mxu0 0.0
    %3155 = vmatprep.subr.mxu0 0.0
    %3156 = vmatpush2.xpose.msra.mxu0 0.0
    %3157 = vmatprep.subr.mxu0 0.0
    %3158 = vmatpush2.xpose.msra.mxu0 0.0
    %3159 = vmatprep.subr.mxu0 0.0
    %3160 = vmatpush2.xpose.msra.mxu0 0.0
    %3161 = vmatprep.subr.mxu0 0.0
    %3162 = vmatpush2.xpose.msra.mxu0 0.0
    %3163 = vmatprep.subr.mxu0 0.0
    %3164 = vmatpush2.xpose.msra.mxu0 0.0
    %3165 = vmatprep.subr.mxu0 0.0
    %3166 = vmatpush2.xpose.msra.mxu0 0.0
    %3167 = vmatprep.subr.mxu0 0.0
    %3168 = vmatpush2.xpose.msra.mxu0 0.0
    %3169 = vmatprep.mubr.f32.mxu0 0.0
    %3170 = vmatmul.mubr.f32.gmra.mxu0 %v3101
    %v3171 = vpop.f32.mrf.mxu0
    %v3172 = vadd.f32 0.0, %v3171
    %v3173 = vpop.f32.mrf.mxu0
    %3174 = vdwg.mxu0
    %3175 = vrot.lane.b32.xlu0 %v163, 112
    %v3176 = vpop.permute.xlu0 %3175
    %3177 = vrot.lane.b32.xlu0 %v163, 80
    %v3178 = vpop.permute.xlu0 %3177
    %v3179 = vsel %vm184, %v3176, 0
    %v3181 = vsel %vm184, %v3178, 0
    %3183 = vmatprep.subr.mxu0 0.0
    %3184 = vmatpush1.xpose.msra.mxu0 0.0
    %3185 = vmatprep.subr.mxu0 0.0
    %3186 = vmatpush1.xpose.msra.mxu0 0.0
    %3187 = vmatprep.subr.mxu0 0.0
    %3188 = vmatpush1.xpose.msra.mxu0 0.0
    %3189 = vmatprep.subr.mxu0 0.0
    %3190 = vmatpush1.xpose.msra.mxu0 0.0
    %3191 = vmatprep.subr.mxu0 0.0
    %3192 = vmatpush1.xpose.msra.mxu0 0.0
    %3193 = vmatprep.subr.mxu0 0.0
    %3194 = vmatpush1.xpose.msra.mxu0 0.0
    %3195 = vmatprep.subr.mxu0 0.0
    %3196 = vmatpush1.xpose.msra.mxu0 0.0
    %3197 = vmatprep.subr.mxu0 0.0
    %3198 = vmatpush1.xpose.msra.mxu0 0.0
    %3199 = vmatprep.subr.mxu0 0.0
    %3200 = vmatpush1.xpose.msra.mxu0 0.0
    %3201 = vmatprep.subr.mxu0 0.0
    %3202 = vmatpush1.xpose.msra.mxu0 0.0
    %3203 = vmatprep.subr.mxu0 0.0
    %3204 = vmatpush1.xpose.msra.mxu0 0.0
    %3205 = vmatprep.subr.mxu0 0.0
    %3206 = vmatpush1.xpose.msra.mxu0 0.0
    %3207 = vmatprep.subr.mxu0 0.0
    %3208 = vmatpush1.xpose.msra.mxu0 0.0
    %3209 = vmatprep.subr.mxu0 0.0
    %3210 = vmatpush1.xpose.msra.mxu0 0.0
    %3211 = vmatprep.subr.mxu0 0.0
    %3212 = vmatpush1.xpose.msra.mxu0 0.0
    %3213 = vmatprep.subr.mxu0 0.0
    %3214 = vmatpush1.xpose.msra.mxu0 %v3181
    %3215 = vmatprep.subr.mxu0 0.0
    %3216 = vmatpush2.xpose.msra.mxu0 0.0
    %3217 = vmatprep.subr.mxu0 0.0
    %3218 = vmatpush2.xpose.msra.mxu0 0.0
    %3219 = vmatprep.subr.mxu0 0.0
    %3220 = vmatpush2.xpose.msra.mxu0 0.0
    %3221 = vmatprep.subr.mxu0 0.0
    %3222 = vmatpush2.xpose.msra.mxu0 0.0
    %3223 = vmatprep.subr.mxu0 0.0
    %3224 = vmatpush2.xpose.msra.mxu0 0.0
    %3225 = vmatprep.subr.mxu0 0.0
    %3226 = vmatpush2.xpose.msra.mxu0 0.0
    %3227 = vmatprep.subr.mxu0 0.0
    %3228 = vmatpush2.xpose.msra.mxu0 0.0
    %3229 = vmatprep.subr.mxu0 0.0
    %3230 = vmatpush2.xpose.msra.mxu0 0.0
    %3231 = vmatprep.subr.mxu0 0.0
    %3232 = vmatpush2.xpose.msra.mxu0 0.0
    %3233 = vmatprep.subr.mxu0 0.0
    %3234 = vmatpush2.xpose.msra.mxu0 0.0
    %3235 = vmatprep.subr.mxu0 0.0
    %3236 = vmatpush2.xpose.msra.mxu0 0.0
    %3237 = vmatprep.subr.mxu0 0.0
    %3238 = vmatpush2.xpose.msra.mxu0 0.0
    %3239 = vmatprep.subr.mxu0 0.0
    %3240 = vmatpush2.xpose.msra.mxu0 0.0
    %3241 = vmatprep.subr.mxu0 0.0
    %3242 = vmatpush2.xpose.msra.mxu0 0.0
    %3243 = vmatprep.subr.mxu0 0.0
    %3244 = vmatpush2.xpose.msra.mxu0 0.0
    %3245 = vmatprep.subr.mxu0 0.0
    %3246 = vmatpush2.xpose.msra.mxu0 0.0
    %3247 = vmatprep.mubr.f32.mxu0 0.0
    %3248 = vmatmul.mubr.f32.gmra.mxu0 %v3179
    %v3249 = vpop.f32.mrf.mxu0
    %v3250 = vadd.f32 0.0, %v3249
    %v3251 = vpop.f32.mrf.mxu0
    %3252 = vdwg.mxu0
    %3253 = vrot.lane.b32.xlu0 %v168, 112
    %v3254 = vpop.permute.xlu0 %3253
    %3255 = vrot.lane.b32.xlu0 %v168, 80
    %v3256 = vpop.permute.xlu0 %3255
    %v3257 = vsel %vm184, %v3254, 0
    %v3259 = vsel %vm184, %v3256, 0
    %3261 = vmatprep.subr.mxu0 0.0
    %3262 = vmatpush1.xpose.msra.mxu0 0.0
    %3263 = vmatprep.subr.mxu0 0.0
    %3264 = vmatpush1.xpose.msra.mxu0 0.0
    %3265 = vmatprep.subr.mxu0 0.0
    %3266 = vmatpush1.xpose.msra.mxu0 0.0
    %3267 = vmatprep.subr.mxu0 0.0
    %3268 = vmatpush1.xpose.msra.mxu0 0.0
    %3269 = vmatprep.subr.mxu0 0.0
    %3270 = vmatpush1.xpose.msra.mxu0 0.0
    %3271 = vmatprep.subr.mxu0 0.0
    %3272 = vmatpush1.xpose.msra.mxu0 0.0
    %3273 = vmatprep.subr.mxu0 0.0
    %3274 = vmatpush1.xpose.msra.mxu0 0.0
    %3275 = vmatprep.subr.mxu0 0.0
    %3276 = vmatpush1.xpose.msra.mxu0 0.0
    %3277 = vmatprep.subr.mxu0 0.0
    %3278 = vmatpush1.xpose.msra.mxu0 0.0
    %3279 = vmatprep.subr.mxu0 0.0
    %3280 = vmatpush1.xpose.msra.mxu0 0.0
    %3281 = vmatprep.subr.mxu0 0.0
    %3282 = vmatpush1.xpose.msra.mxu0 0.0
    %3283 = vmatprep.subr.mxu0 0.0
    %3284 = vmatpush1.xpose.msra.mxu0 0.0
    %3285 = vmatprep.subr.mxu0 0.0
    %3286 = vmatpush1.xpose.msra.mxu0 0.0
    %3287 = vmatprep.subr.mxu0 0.0
    %3288 = vmatpush1.xpose.msra.mxu0 0.0
    %3289 = vmatprep.subr.mxu0 0.0
    %3290 = vmatpush1.xpose.msra.mxu0 0.0
    %3291 = vmatprep.subr.mxu0 0.0
    %3292 = vmatpush1.xpose.msra.mxu0 %v3259
    %3293 = vmatprep.subr.mxu0 0.0
    %3294 = vmatpush2.xpose.msra.mxu0 0.0
    %3295 = vmatprep.subr.mxu0 0.0
    %3296 = vmatpush2.xpose.msra.mxu0 0.0
    %3297 = vmatprep.subr.mxu0 0.0
    %3298 = vmatpush2.xpose.msra.mxu0 0.0
    %3299 = vmatprep.subr.mxu0 0.0
    %3300 = vmatpush2.xpose.msra.mxu0 0.0
    %3301 = vmatprep.subr.mxu0 0.0
    %3302 = vmatpush2.xpose.msra.mxu0 0.0
    %3303 = vmatprep.subr.mxu0 0.0
    %3304 = vmatpush2.xpose.msra.mxu0 0.0
    %3305 = vmatprep.subr.mxu0 0.0
    %3306 = vmatpush2.xpose.msra.mxu0 0.0
    %3307 = vmatprep.subr.mxu0 0.0
    %3308 = vmatpush2.xpose.msra.mxu0 0.0
    %3309 = vmatprep.subr.mxu0 0.0
    %3310 = vmatpush2.xpose.msra.mxu0 0.0
    %3311 = vmatprep.subr.mxu0 0.0
    %3312 = vmatpush2.xpose.msra.mxu0 0.0
    %3313 = vmatprep.subr.mxu0 0.0
    %3314 = vmatpush2.xpose.msra.mxu0 0.0
    %3315 = vmatprep.subr.mxu0 0.0
    %3316 = vmatpush2.xpose.msra.mxu0 0.0
    %3317 = vmatprep.subr.mxu0 0.0
    %3318 = vmatpush2.xpose.msra.mxu0 0.0
    %3319 = vmatprep.subr.mxu0 0.0
    %3320 = vmatpush2.xpose.msra.mxu0 0.0
    %3321 = vmatprep.subr.mxu0 0.0
    %3322 = vmatpush2.xpose.msra.mxu0 0.0
    %3323 = vmatprep.subr.mxu0 0.0
    %3324 = vmatpush2.xpose.msra.mxu0 0.0
    %3325 = vmatprep.mubr.f32.mxu0 0.0
    %3326 = vmatmul.mubr.f32.gmra.mxu0 %v3257
    %v3327 = vpop.f32.mrf.mxu0
    %v3328 = vadd.f32 0.0, %v3327
    %v3329 = vpop.f32.mrf.mxu0
    %3330 = vdwg.mxu0
    %3331 = vrot.lane.b32.xlu0 %v173, 112
    %v3332 = vpop.permute.xlu0 %3331
    %3333 = vrot.lane.b32.xlu0 %v173, 80
    %v3334 = vpop.permute.xlu0 %3333
    %v3335 = vsel %vm184, %v3332, 0
    %v3337 = vsel %vm184, %v3334, 0
    %3339 = vmatprep.subr.mxu0 0.0
    %3340 = vmatpush1.xpose.msra.mxu0 0.0
    %3341 = vmatprep.subr.mxu0 0.0
    %3342 = vmatpush1.xpose.msra.mxu0 0.0
    %3343 = vmatprep.subr.mxu0 0.0
    %3344 = vmatpush1.xpose.msra.mxu0 0.0
    %3345 = vmatprep.subr.mxu0 0.0
    %3346 = vmatpush1.xpose.msra.mxu0 0.0
    %3347 = vmatprep.subr.mxu0 0.0
    %3348 = vmatpush1.xpose.msra.mxu0 0.0
    %3349 = vmatprep.subr.mxu0 0.0
    %3350 = vmatpush1.xpose.msra.mxu0 0.0
    %3351 = vmatprep.subr.mxu0 0.0
    %3352 = vmatpush1.xpose.msra.mxu0 0.0
    %3353 = vmatprep.subr.mxu0 0.0
    %3354 = vmatpush1.xpose.msra.mxu0 0.0
    %3355 = vmatprep.subr.mxu0 0.0
    %3356 = vmatpush1.xpose.msra.mxu0 0.0
    %3357 = vmatprep.subr.mxu0 0.0
    %3358 = vmatpush1.xpose.msra.mxu0 0.0
    %3359 = vmatprep.subr.mxu0 0.0
    %3360 = vmatpush1.xpose.msra.mxu0 0.0
    %3361 = vmatprep.subr.mxu0 0.0
    %3362 = vmatpush1.xpose.msra.mxu0 0.0
    %3363 = vmatprep.subr.mxu0 0.0
    %3364 = vmatpush1.xpose.msra.mxu0 0.0
    %3365 = vmatprep.subr.mxu0 0.0
    %3366 = vmatpush1.xpose.msra.mxu0 0.0
    %3367 = vmatprep.subr.mxu0 0.0
    %3368 = vmatpush1.xpose.msra.mxu0 0.0
    %3369 = vmatprep.subr.mxu0 0.0
    %3370 = vmatpush1.xpose.msra.mxu0 %v3337
    %3371 = vmatprep.subr.mxu0 0.0
    %3372 = vmatpush2.xpose.msra.mxu0 0.0
    %3373 = vmatprep.subr.mxu0 0.0
    %3374 = vmatpush2.xpose.msra.mxu0 0.0
    %3375 = vmatprep.subr.mxu0 0.0
    %3376 = vmatpush2.xpose.msra.mxu0 0.0
    %3377 = vmatprep.subr.mxu0 0.0
    %3378 = vmatpush2.xpose.msra.mxu0 0.0
    %3379 = vmatprep.subr.mxu0 0.0
    %3380 = vmatpush2.xpose.msra.mxu0 0.0
    %3381 = vmatprep.subr.mxu0 0.0
    %3382 = vmatpush2.xpose.msra.mxu0 0.0
    %3383 = vmatprep.subr.mxu0 0.0
    %3384 = vmatpush2.xpose.msra.mxu0 0.0
    %3385 = vmatprep.subr.mxu0 0.0
    %3386 = vmatpush2.xpose.msra.mxu0 0.0
    %3387 = vmatprep.subr.mxu0 0.0
    %3388 = vmatpush2.xpose.msra.mxu0 0.0
    %3389 = vmatprep.subr.mxu0 0.0
    %3390 = vmatpush2.xpose.msra.mxu0 0.0
    %3391 = vmatprep.subr.mxu0 0.0
    %3392 = vmatpush2.xpose.msra.mxu0 0.0
    %3393 = vmatprep.subr.mxu0 0.0
    %3394 = vmatpush2.xpose.msra.mxu0 0.0
    %3395 = vmatprep.subr.mxu0 0.0
    %3396 = vmatpush2.xpose.msra.mxu0 0.0
    %3397 = vmatprep.subr.mxu0 0.0
    %3398 = vmatpush2.xpose.msra.mxu0 0.0
    %3399 = vmatprep.subr.mxu0 0.0
    %3400 = vmatpush2.xpose.msra.mxu0 0.0
    %3401 = vmatprep.subr.mxu0 0.0
    %3402 = vmatpush2.xpose.msra.mxu0 0.0
    %3403 = vmatprep.mubr.f32.mxu0 0.0
    %3404 = vmatmul.mubr.f32.gmra.mxu0 %v3335
    %v3405 = vpop.f32.mrf.mxu0
    %v3406 = vadd.f32 0.0, %v3405
    %v3407 = vpop.f32.mrf.mxu0
    %3408 = vdwg.mxu0
    %3409 = vrot.lane.b32.xlu0 %v178, 112
    %v3410 = vpop.permute.xlu0 %3409
    %3411 = vrot.lane.b32.xlu0 %v178, 80
    %v3412 = vpop.permute.xlu0 %3411
    %v3413 = vsel %vm184, %v3410, 0
    %v3415 = vsel %vm184, %v3412, 0
    %3417 = vmatprep.subr.mxu0 0.0
    %3418 = vmatpush1.xpose.msra.mxu0 0.0
    %3419 = vmatprep.subr.mxu0 0.0
    %3420 = vmatpush1.xpose.msra.mxu0 0.0
    %3421 = vmatprep.subr.mxu0 0.0
    %3422 = vmatpush1.xpose.msra.mxu0 0.0
    %3423 = vmatprep.subr.mxu0 0.0
    %3424 = vmatpush1.xpose.msra.mxu0 0.0
    %3425 = vmatprep.subr.mxu0 0.0
    %3426 = vmatpush1.xpose.msra.mxu0 0.0
    %3427 = vmatprep.subr.mxu0 0.0
    %3428 = vmatpush1.xpose.msra.mxu0 0.0
    %3429 = vmatprep.subr.mxu0 0.0
    %3430 = vmatpush1.xpose.msra.mxu0 0.0
    %3431 = vmatprep.subr.mxu0 0.0
    %3432 = vmatpush1.xpose.msra.mxu0 0.0
    %3433 = vmatprep.subr.mxu0 0.0
    %3434 = vmatpush1.xpose.msra.mxu0 0.0
    %3435 = vmatprep.subr.mxu0 0.0
    %3436 = vmatpush1.xpose.msra.mxu0 0.0
    %3437 = vmatprep.subr.mxu0 0.0
    %3438 = vmatpush1.xpose.msra.mxu0 0.0
    %3439 = vmatprep.subr.mxu0 0.0
    %3440 = vmatpush1.xpose.msra.mxu0 0.0
    %3441 = vmatprep.subr.mxu0 0.0
    %3442 = vmatpush1.xpose.msra.mxu0 0.0
    %3443 = vmatprep.subr.mxu0 0.0
    %3444 = vmatpush1.xpose.msra.mxu0 0.0
    %3445 = vmatprep.subr.mxu0 0.0
    %3446 = vmatpush1.xpose.msra.mxu0 0.0
    %3447 = vmatprep.subr.mxu0 0.0
    %3448 = vmatpush1.xpose.msra.mxu0 %v3415
    %3449 = vmatprep.subr.mxu0 0.0
    %3450 = vmatpush2.xpose.msra.mxu0 0.0
    %3451 = vmatprep.subr.mxu0 0.0
    %3452 = vmatpush2.xpose.msra.mxu0 0.0
    %3453 = vmatprep.subr.mxu0 0.0
    %3454 = vmatpush2.xpose.msra.mxu0 0.0
    %3455 = vmatprep.subr.mxu0 0.0
    %3456 = vmatpush2.xpose.msra.mxu0 0.0
    %3457 = vmatprep.subr.mxu0 0.0
    %3458 = vmatpush2.xpose.msra.mxu0 0.0
    %3459 = vmatprep.subr.mxu0 0.0
    %3460 = vmatpush2.xpose.msra.mxu0 0.0
    %3461 = vmatprep.subr.mxu0 0.0
    %3462 = vmatpush2.xpose.msra.mxu0 0.0
    %3463 = vmatprep.subr.mxu0 0.0
    %3464 = vmatpush2.xpose.msra.mxu0 0.0
    %3465 = vmatprep.subr.mxu0 0.0
    %3466 = vmatpush2.xpose.msra.mxu0 0.0
    %3467 = vmatprep.subr.mxu0 0.0
    %3468 = vmatpush2.xpose.msra.mxu0 0.0
    %3469 = vmatprep.subr.mxu0 0.0
    %3470 = vmatpush2.xpose.msra.mxu0 0.0
    %3471 = vmatprep.subr.mxu0 0.0
    %3472 = vmatpush2.xpose.msra.mxu0 0.0
    %3473 = vmatprep.subr.mxu0 0.0
    %3474 = vmatpush2.xpose.msra.mxu0 0.0
    %3475 = vmatprep.subr.mxu0 0.0
    %3476 = vmatpush2.xpose.msra.mxu0 0.0
    %3477 = vmatprep.subr.mxu0 0.0
    %3478 = vmatpush2.xpose.msra.mxu0 0.0
    %3479 = vmatprep.subr.mxu0 0.0
    %3480 = vmatpush2.xpose.msra.mxu0 0.0
    %3481 = vmatprep.mubr.f32.mxu0 0.0
    %3482 = vmatmul.mubr.f32.gmra.mxu0 %v3413
    %v3483 = vpop.f32.mrf.mxu0
    %v3484 = vadd.f32 0.0, %v3483
    %v3485 = vpop.f32.mrf.mxu0
    %3486 = vdwg.mxu0
    %v3487 = vsel %vm184, %v2938, -inf
    %3488 = vmax.xlane.f32.xlu0 %v3487
    %v3489 = vpop.xlane.xlu0 %3488
    %v3490 = vsel %vm184, %v3016, -inf
    %3491 = vmax.xlane.f32.xlu0 %v3490
    %v3492 = vpop.xlane.xlu0 %3491
    %v3493 = vsel %vm184, %v3094, -inf
    %3494 = vmax.xlane.f32.xlu0 %v3493
    %v3495 = vpop.xlane.xlu0 %3494
    %v3496 = vsel %vm184, %v3172, -inf
    %3497 = vmax.xlane.f32.xlu0 %v3496
    %v3498 = vpop.xlane.xlu0 %3497
    %v3499 = vsel %vm184, %v3250, -inf
    %3500 = vmax.xlane.f32.xlu0 %v3499
    %v3501 = vpop.xlane.xlu0 %3500
    %v3502 = vsel %vm184, %v3328, -inf
    %3503 = vmax.xlane.f32.xlu0 %v3502
    %v3504 = vpop.xlane.xlu0 %3503
    %v3505 = vsel %vm184, %v3406, -inf
    %3506 = vmax.xlane.f32.xlu0 %v3505
    %v3507 = vpop.xlane.xlu0 %3506
    %v3508 = vsel %vm184, %v3484, -inf
    %3509 = vmax.xlane.f32.xlu0 %v3508
    %v3510 = vpop.xlane.xlu0 %3509
    %v3511 = vsub.f32 %v2938, %v3489
    %v3512 = vsub.f32 %v3016, %v3492
    %v3513 = vsub.f32 %v3094, %v3495
    %v3514 = vsub.f32 %v3172, %v3498
    %v3515 = vsub.f32 %v3250, %v3501
    %v3516 = vsub.f32 %v3328, %v3504
    %v3517 = vsub.f32 %v3406, %v3507
    %v3518 = vsub.f32 %v3484, %v3510
    %v3519 = vmul.f32 %v3511, 1.442695
    %v3520 = vpow.pop %v3519
    %v3521 = vmul.f32 %v3512, 1.442695
    %v3522 = vpow.pop %v3521
    %v3523 = vmul.f32 %v3513, 1.442695
    %v3524 = vpow.pop %v3523
    %v3525 = vmul.f32 %v3514, 1.442695
    %v3526 = vpow.pop %v3525
    %v3527 = vmul.f32 %v3515, 1.442695
    %v3528 = vpow.pop %v3527
    %v3529 = vmul.f32 %v3516, 1.442695
    %v3530 = vpow.pop %v3529
    %v3531 = vmul.f32 %v3517, 1.442695
    %v3532 = vpow.pop %v3531
    %v3533 = vmul.f32 %v3518, 1.442695
    %v3534 = vpow.pop %v3533
    %v3535 = vsel %vm184, %v3520, 0.0
    %3536 = vadd.xlane.f32.xlu0 %v3535
    %v3537 = vpop.xlane.xlu0 %3536
    %v3538 = vsel %vm184, %v3522, 0.0
    %3539 = vadd.xlane.f32.xlu0 %v3538
    %v3540 = vpop.xlane.xlu0 %3539
    %v3541 = vsel %vm184, %v3524, 0.0
    %3542 = vadd.xlane.f32.xlu0 %v3541
    %v3543 = vpop.xlane.xlu0 %3542
    %v3544 = vsel %vm184, %v3526, 0.0
    %3545 = vadd.xlane.f32.xlu0 %v3544
    %v3546 = vpop.xlane.xlu0 %3545
    %v3547 = vsel %vm184, %v3528, 0.0
    %3548 = vadd.xlane.f32.xlu0 %v3547
    %v3549 = vpop.xlane.xlu0 %3548
    %v3550 = vsel %vm184, %v3530, 0.0
    %3551 = vadd.xlane.f32.xlu0 %v3550
    %v3552 = vpop.xlane.xlu0 %3551
    %v3553 = vsel %vm184, %v3532, 0.0
    %3554 = vadd.xlane.f32.xlu0 %v3553
    %v3555 = vpop.xlane.xlu0 %3554
    %v3556 = vsel %vm184, %v3534, 0.0
    %3557 = vadd.xlane.f32.xlu0 %v3556
    %v3558 = vpop.xlane.xlu0 %3557
    %v3559 = vrcp.pop %v3537
    %v3560 = vrcp.pop %v3540
    %v3561 = vrcp.pop %v3543
    %v3562 = vrcp.pop %v3546
    %v3563 = vrcp.pop %v3549
    %v3564 = vrcp.pop %v3552
    %v3565 = vrcp.pop %v3555
    %v3566 = vrcp.pop %v3558
    %v3567 = vmul.f32 %v3520, %v3559
    %v3568 = vmul.f32 %v3522, %v3560
    %v3569 = vmul.f32 %v3524, %v3561
    %v3570 = vmul.f32 %v3526, %v3562
    %v3571 = vmul.f32 %v3528, %v3563
    %v3572 = vmul.f32 %v3530, %v3564
    %v3573 = vmul.f32 %v3532, %v3565
    %v3574 = vmul.f32 %v3534, %v3566
    %3575 = vrot.lane.b32.xlu0 %v143, 48
    %v3576 = vpop.permute.xlu0 %3575
    %v3579 = vsel %vm184, %v3567, 0
    %3581 = vmatprep.subr.mxu0 0.0
    %3582 = vmatpush1.msra.mxu0 0.0
    %3583 = vmatprep.subr.mxu0 0.0
    %3584 = vmatpush1.msra.mxu0 0.0
    %3585 = vmatprep.subr.mxu0 0.0
    %3586 = vmatpush1.msra.mxu0 0.0
    %3587 = vmatprep.subr.mxu0 0.0
    %3588 = vmatpush1.msra.mxu0 0.0
    %3589 = vmatprep.subr.mxu0 0.0
    %3590 = vmatpush1.msra.mxu0 0.0
    %3591 = vmatprep.subr.mxu0 0.0
    %3592 = vmatpush1.msra.mxu0 0.0
    %3593 = vmatprep.subr.mxu0 0.0
    %3594 = vmatpush1.msra.mxu0 0.0
    %3595 = vmatprep.subr.mxu0 0.0
    %3596 = vmatpush1.msra.mxu0 0.0
    %3597 = vmatprep.subr.mxu0 0.0
    %3598 = vmatpush1.msra.mxu0 0.0
    %3599 = vmatprep.subr.mxu0 0.0
    %3600 = vmatpush1.msra.mxu0 0.0
    %3601 = vmatprep.subr.mxu0 0.0
    %3602 = vmatpush1.msra.mxu0 0.0
    %3603 = vmatprep.subr.mxu0 0.0
    %3604 = vmatpush1.msra.mxu0 0.0
    %3605 = vmatprep.subr.mxu0 0.0
    %3606 = vmatpush1.msra.mxu0 0.0
    %3607 = vmatprep.subr.mxu0 0.0
    %3608 = vmatpush1.msra.mxu0 0.0
    %3609 = vmatprep.subr.mxu0 0.0
    %3610 = vmatpush1.msra.mxu0 0.0
    %3611 = vmatprep.subr.mxu0 0.0
    %3612 = vmatpush1.msra.mxu0 %v3576
    %3613 = vmatprep.subr.mxu0 0.0
    %3614 = vmatpush2.msra.mxu0 0.0
    %3615 = vmatprep.subr.mxu0 0.0
    %3616 = vmatpush2.msra.mxu0 0.0
    %3617 = vmatprep.subr.mxu0 0.0
    %3618 = vmatpush2.msra.mxu0 0.0
    %3619 = vmatprep.subr.mxu0 0.0
    %3620 = vmatpush2.msra.mxu0 0.0
    %3621 = vmatprep.subr.mxu0 0.0
    %3622 = vmatpush2.msra.mxu0 0.0
    %3623 = vmatprep.subr.mxu0 0.0
    %3624 = vmatpush2.msra.mxu0 0.0
    %3625 = vmatprep.subr.mxu0 0.0
    %3626 = vmatpush2.msra.mxu0 0.0
    %3627 = vmatprep.subr.mxu0 0.0
    %3628 = vmatpush2.msra.mxu0 0.0
    %3629 = vmatprep.subr.mxu0 0.0
    %3630 = vmatpush2.msra.mxu0 0.0
    %3631 = vmatprep.subr.mxu0 0.0
    %3632 = vmatpush2.msra.mxu0 0.0
    %3633 = vmatprep.subr.mxu0 0.0
    %3634 = vmatpush2.msra.mxu0 0.0
    %3635 = vmatprep.subr.mxu0 0.0
    %3636 = vmatpush2.msra.mxu0 0.0
    %3637 = vmatprep.subr.mxu0 0.0
    %3638 = vmatpush2.msra.mxu0 0.0
    %3639 = vmatprep.subr.mxu0 0.0
    %3640 = vmatpush2.msra.mxu0 0.0
    %3641 = vmatprep.subr.mxu0 0.0
    %3642 = vmatpush2.msra.mxu0 0.0
    %3643 = vmatprep.subr.mxu0 0.0
    %3644 = vmatpush2.msra.mxu0 0.0
    %3645 = vmatprep.mubr.f32.mxu0 0.0
    %3646 = vmatmul.mubr.f32.gmra.mxu0 %v3579
    %v3647 = vpop.f32.mrf.mxu0
    %v3648 = vadd.f32 0.0, %v3647
    %v3649 = vpop.f32.mrf.mxu0
    %3650 = vdwg.mxu0
    %3651 = vrot.lane.b32.xlu0 %v148, 48
    %v3652 = vpop.permute.xlu0 %3651
    %v3655 = vsel %vm184, %v3568, 0
    %3657 = vmatprep.subr.mxu0 0.0
    %3658 = vmatpush1.msra.mxu0 0.0
    %3659 = vmatprep.subr.mxu0 0.0
    %3660 = vmatpush1.msra.mxu0 0.0
    %3661 = vmatprep.subr.mxu0 0.0
    %3662 = vmatpush1.msra.mxu0 0.0
    %3663 = vmatprep.subr.mxu0 0.0
    %3664 = vmatpush1.msra.mxu0 0.0
    %3665 = vmatprep.subr.mxu0 0.0
    %3666 = vmatpush1.msra.mxu0 0.0
    %3667 = vmatprep.subr.mxu0 0.0
    %3668 = vmatpush1.msra.mxu0 0.0
    %3669 = vmatprep.subr.mxu0 0.0
    %3670 = vmatpush1.msra.mxu0 0.0
    %3671 = vmatprep.subr.mxu0 0.0
    %3672 = vmatpush1.msra.mxu0 0.0
    %3673 = vmatprep.subr.mxu0 0.0
    %3674 = vmatpush1.msra.mxu0 0.0
    %3675 = vmatprep.subr.mxu0 0.0
    %3676 = vmatpush1.msra.mxu0 0.0
    %3677 = vmatprep.subr.mxu0 0.0
    %3678 = vmatpush1.msra.mxu0 0.0
    %3679 = vmatprep.subr.mxu0 0.0
    %3680 = vmatpush1.msra.mxu0 0.0
    %3681 = vmatprep.subr.mxu0 0.0
    %3682 = vmatpush1.msra.mxu0 0.0
    %3683 = vmatprep.subr.mxu0 0.0
    %3684 = vmatpush1.msra.mxu0 0.0
    %3685 = vmatprep.subr.mxu0 0.0
    %3686 = vmatpush1.msra.mxu0 0.0
    %3687 = vmatprep.subr.mxu0 0.0
    %3688 = vmatpush1.msra.mxu0 %v3652
    %3689 = vmatprep.subr.mxu0 0.0
    %3690 = vmatpush2.msra.mxu0 0.0
    %3691 = vmatprep.subr.mxu0 0.0
    %3692 = vmatpush2.msra.mxu0 0.0
    %3693 = vmatprep.subr.mxu0 0.0
    %3694 = vmatpush2.msra.mxu0 0.0
    %3695 = vmatprep.subr.mxu0 0.0
    %3696 = vmatpush2.msra.mxu0 0.0
    %3697 = vmatprep.subr.mxu0 0.0
    %3698 = vmatpush2.msra.mxu0 0.0
    %3699 = vmatprep.subr.mxu0 0.0
    %3700 = vmatpush2.msra.mxu0 0.0
    %3701 = vmatprep.subr.mxu0 0.0
    %3702 = vmatpush2.msra.mxu0 0.0
    %3703 = vmatprep.subr.mxu0 0.0
    %3704 = vmatpush2.msra.mxu0 0.0
    %3705 = vmatprep.subr.mxu0 0.0
    %3706 = vmatpush2.msra.mxu0 0.0
    %3707 = vmatprep.subr.mxu0 0.0
    %3708 = vmatpush2.msra.mxu0 0.0
    %3709 = vmatprep.subr.mxu0 0.0
    %3710 = vmatpush2.msra.mxu0 0.0
    %3711 = vmatprep.subr.mxu0 0.0
    %3712 = vmatpush2.msra.mxu0 0.0
    %3713 = vmatprep.subr.mxu0 0.0
    %3714 = vmatpush2.msra.mxu0 0.0
    %3715 = vmatprep.subr.mxu0 0.0
    %3716 = vmatpush2.msra.mxu0 0.0
    %3717 = vmatprep.subr.mxu0 0.0
    %3718 = vmatpush2.msra.mxu0 0.0
    %3719 = vmatprep.subr.mxu0 0.0
    %3720 = vmatpush2.msra.mxu0 0.0
    %3721 = vmatprep.mubr.f32.mxu0 0.0
    %3722 = vmatmul.mubr.f32.gmra.mxu0 %v3655
    %v3723 = vpop.f32.mrf.mxu0
    %v3724 = vadd.f32 0.0, %v3723
    %v3725 = vpop.f32.mrf.mxu0
    %3726 = vdwg.mxu0
    %3727 = vrot.lane.b32.xlu0 %v153, 48
    %v3728 = vpop.permute.xlu0 %3727
    %v3731 = vsel %vm184, %v3569, 0
    %3733 = vmatprep.subr.mxu0 0.0
    %3734 = vmatpush1.msra.mxu0 0.0
    %3735 = vmatprep.subr.mxu0 0.0
    %3736 = vmatpush1.msra.mxu0 0.0
    %3737 = vmatprep.subr.mxu0 0.0
    %3738 = vmatpush1.msra.mxu0 0.0
    %3739 = vmatprep.subr.mxu0 0.0
    %3740 = vmatpush1.msra.mxu0 0.0
    %3741 = vmatprep.subr.mxu0 0.0
    %3742 = vmatpush1.msra.mxu0 0.0
    %3743 = vmatprep.subr.mxu0 0.0
    %3744 = vmatpush1.msra.mxu0 0.0
    %3745 = vmatprep.subr.mxu0 0.0
    %3746 = vmatpush1.msra.mxu0 0.0
    %3747 = vmatprep.subr.mxu0 0.0
    %3748 = vmatpush1.msra.mxu0 0.0
    %3749 = vmatprep.subr.mxu0 0.0
    %3750 = vmatpush1.msra.mxu0 0.0
    %3751 = vmatprep.subr.mxu0 0.0
    %3752 = vmatpush1.msra.mxu0 0.0
    %3753 = vmatprep.subr.mxu0 0.0
    %3754 = vmatpush1.msra.mxu0 0.0
    %3755 = vmatprep.subr.mxu0 0.0
    %3756 = vmatpush1.msra.mxu0 0.0
    %3757 = vmatprep.subr.mxu0 0.0
    %3758 = vmatpush1.msra.mxu0 0.0
    %3759 = vmatprep.subr.mxu0 0.0
    %3760 = vmatpush1.msra.mxu0 0.0
    %3761 = vmatprep.subr.mxu0 0.0
    %3762 = vmatpush1.msra.mxu0 0.0
    %3763 = vmatprep.subr.mxu0 0.0
    %3764 = vmatpush1.msra.mxu0 %v3728
    %3765 = vmatprep.subr.mxu0 0.0
    %3766 = vmatpush2.msra.mxu0 0.0
    %3767 = vmatprep.subr.mxu0 0.0
    %3768 = vmatpush2.msra.mxu0 0.0
    %3769 = vmatprep.subr.mxu0 0.0
    %3770 = vmatpush2.msra.mxu0 0.0
    %3771 = vmatprep.subr.mxu0 0.0
    %3772 = vmatpush2.msra.mxu0 0.0
    %3773 = vmatprep.subr.mxu0 0.0
    %3774 = vmatpush2.msra.mxu0 0.0
    %3775 = vmatprep.subr.mxu0 0.0
    %3776 = vmatpush2.msra.mxu0 0.0
    %3777 = vmatprep.subr.mxu0 0.0
    %3778 = vmatpush2.msra.mxu0 0.0
    %3779 = vmatprep.subr.mxu0 0.0
    %3780 = vmatpush2.msra.mxu0 0.0
    %3781 = vmatprep.subr.mxu0 0.0
    %3782 = vmatpush2.msra.mxu0 0.0
    %3783 = vmatprep.subr.mxu0 0.0
    %3784 = vmatpush2.msra.mxu0 0.0
    %3785 = vmatprep.subr.mxu0 0.0
    %3786 = vmatpush2.msra.mxu0 0.0
    %3787 = vmatprep.subr.mxu0 0.0
    %3788 = vmatpush2.msra.mxu0 0.0
    %3789 = vmatprep.subr.mxu0 0.0
    %3790 = vmatpush2.msra.mxu0 0.0
    %3791 = vmatprep.subr.mxu0 0.0
    %3792 = vmatpush2.msra.mxu0 0.0
    %3793 = vmatprep.subr.mxu0 0.0
    %3794 = vmatpush2.msra.mxu0 0.0
    %3795 = vmatprep.subr.mxu0 0.0
    %3796 = vmatpush2.msra.mxu0 0.0
    %3797 = vmatprep.mubr.f32.mxu0 0.0
    %3798 = vmatmul.mubr.f32.gmra.mxu0 %v3731
    %v3799 = vpop.f32.mrf.mxu0
    %v3800 = vadd.f32 0.0, %v3799
    %v3801 = vpop.f32.mrf.mxu0
    %3802 = vdwg.mxu0
    %3803 = vrot.lane.b32.xlu0 %v158, 48
    %v3804 = vpop.permute.xlu0 %3803
    %v3807 = vsel %vm184, %v3570, 0
    %3809 = vmatprep.subr.mxu0 0.0
    %3810 = vmatpush1.msra.mxu0 0.0
    %3811 = vmatprep.subr.mxu0 0.0
    %3812 = vmatpush1.msra.mxu0 0.0
    %3813 = vmatprep.subr.mxu0 0.0
    %3814 = vmatpush1.msra.mxu0 0.0
    %3815 = vmatprep.subr.mxu0 0.0
    %3816 = vmatpush1.msra.mxu0 0.0
    %3817 = vmatprep.subr.mxu0 0.0
    %3818 = vmatpush1.msra.mxu0 0.0
    %3819 = vmatprep.subr.mxu0 0.0
    %3820 = vmatpush1.msra.mxu0 0.0
    %3821 = vmatprep.subr.mxu0 0.0
    %3822 = vmatpush1.msra.mxu0 0.0
    %3823 = vmatprep.subr.mxu0 0.0
    %3824 = vmatpush1.msra.mxu0 0.0
    %3825 = vmatprep.subr.mxu0 0.0
    %3826 = vmatpush1.msra.mxu0 0.0
    %3827 = vmatprep.subr.mxu0 0.0
    %3828 = vmatpush1.msra.mxu0 0.0
    %3829 = vmatprep.subr.mxu0 0.0
    %3830 = vmatpush1.msra.mxu0 0.0
    %3831 = vmatprep.subr.mxu0 0.0
    %3832 = vmatpush1.msra.mxu0 0.0
    %3833 = vmatprep.subr.mxu0 0.0
    %3834 = vmatpush1.msra.mxu0 0.0
    %3835 = vmatprep.subr.mxu0 0.0
    %3836 = vmatpush1.msra.mxu0 0.0
    %3837 = vmatprep.subr.mxu0 0.0
    %3838 = vmatpush1.msra.mxu0 0.0
    %3839 = vmatprep.subr.mxu0 0.0
    %3840 = vmatpush1.msra.mxu0 %v3804
    %3841 = vmatprep.subr.mxu0 0.0
    %3842 = vmatpush2.msra.mxu0 0.0
    %3843 = vmatprep.subr.mxu0 0.0
    %3844 = vmatpush2.msra.mxu0 0.0
    %3845 = vmatprep.subr.mxu0 0.0
    %3846 = vmatpush2.msra.mxu0 0.0
    %3847 = vmatprep.subr.mxu0 0.0
    %3848 = vmatpush2.msra.mxu0 0.0
    %3849 = vmatprep.subr.mxu0 0.0
    %3850 = vmatpush2.msra.mxu0 0.0
    %3851 = vmatprep.subr.mxu0 0.0
    %3852 = vmatpush2.msra.mxu0 0.0
    %3853 = vmatprep.subr.mxu0 0.0
    %3854 = vmatpush2.msra.mxu0 0.0
    %3855 = vmatprep.subr.mxu0 0.0
    %3856 = vmatpush2.msra.mxu0 0.0
    %3857 = vmatprep.subr.mxu0 0.0
    %3858 = vmatpush2.msra.mxu0 0.0
    %3859 = vmatprep.subr.mxu0 0.0
    %3860 = vmatpush2.msra.mxu0 0.0
    %3861 = vmatprep.subr.mxu0 0.0
    %3862 = vmatpush2.msra.mxu0 0.0
    %3863 = vmatprep.subr.mxu0 0.0
    %3864 = vmatpush2.msra.mxu0 0.0
    %3865 = vmatprep.subr.mxu0 0.0
    %3866 = vmatpush2.msra.mxu0 0.0
    %3867 = vmatprep.subr.mxu0 0.0
    %3868 = vmatpush2.msra.mxu0 0.0
    %3869 = vmatprep.subr.mxu0 0.0
    %3870 = vmatpush2.msra.mxu0 0.0
    %3871 = vmatprep.subr.mxu0 0.0
    %3872 = vmatpush2.msra.mxu0 0.0
    %3873 = vmatprep.mubr.f32.mxu0 0.0
    %3874 = vmatmul.mubr.f32.gmra.mxu0 %v3807
    %v3875 = vpop.f32.mrf.mxu0
    %v3876 = vadd.f32 0.0, %v3875
    %v3877 = vpop.f32.mrf.mxu0
    %3878 = vdwg.mxu0
    %3879 = vrot.lane.b32.xlu0 %v163, 48
    %v3880 = vpop.permute.xlu0 %3879
    %v3883 = vsel %vm184, %v3571, 0
    %3885 = vmatprep.subr.mxu0 0.0
    %3886 = vmatpush1.msra.mxu0 0.0
    %3887 = vmatprep.subr.mxu0 0.0
    %3888 = vmatpush1.msra.mxu0 0.0
    %3889 = vmatprep.subr.mxu0 0.0
    %3890 = vmatpush1.msra.mxu0 0.0
    %3891 = vmatprep.subr.mxu0 0.0
    %3892 = vmatpush1.msra.mxu0 0.0
    %3893 = vmatprep.subr.mxu0 0.0
    %3894 = vmatpush1.msra.mxu0 0.0
    %3895 = vmatprep.subr.mxu0 0.0
    %3896 = vmatpush1.msra.mxu0 0.0
    %3897 = vmatprep.subr.mxu0 0.0
    %3898 = vmatpush1.msra.mxu0 0.0
    %3899 = vmatprep.subr.mxu0 0.0
    %3900 = vmatpush1.msra.mxu0 0.0
    %3901 = vmatprep.subr.mxu0 0.0
    %3902 = vmatpush1.msra.mxu0 0.0
    %3903 = vmatprep.subr.mxu0 0.0
    %3904 = vmatpush1.msra.mxu0 0.0
    %3905 = vmatprep.subr.mxu0 0.0
    %3906 = vmatpush1.msra.mxu0 0.0
    %3907 = vmatprep.subr.mxu0 0.0
    %3908 = vmatpush1.msra.mxu0 0.0
    %3909 = vmatprep.subr.mxu0 0.0
    %3910 = vmatpush1.msra.mxu0 0.0
    %3911 = vmatprep.subr.mxu0 0.0
    %3912 = vmatpush1.msra.mxu0 0.0
    %3913 = vmatprep.subr.mxu0 0.0
    %3914 = vmatpush1.msra.mxu0 0.0
    %3915 = vmatprep.subr.mxu0 0.0
    %3916 = vmatpush1.msra.mxu0 %v3880
    %3917 = vmatprep.subr.mxu0 0.0
    %3918 = vmatpush2.msra.mxu0 0.0
    %3919 = vmatprep.subr.mxu0 0.0
    %3920 = vmatpush2.msra.mxu0 0.0
    %3921 = vmatprep.subr.mxu0 0.0
    %3922 = vmatpush2.msra.mxu0 0.0
    %3923 = vmatprep.subr.mxu0 0.0
    %3924 = vmatpush2.msra.mxu0 0.0
    %3925 = vmatprep.subr.mxu0 0.0
    %3926 = vmatpush2.msra.mxu0 0.0
    %3927 = vmatprep.subr.mxu0 0.0
    %3928 = vmatpush2.msra.mxu0 0.0
    %3929 = vmatprep.subr.mxu0 0.0
    %3930 = vmatpush2.msra.mxu0 0.0
    %3931 = vmatprep.subr.mxu0 0.0
    %3932 = vmatpush2.msra.mxu0 0.0
    %3933 = vmatprep.subr.mxu0 0.0
    %3934 = vmatpush2.msra.mxu0 0.0
    %3935 = vmatprep.subr.mxu0 0.0
    %3936 = vmatpush2.msra.mxu0 0.0
    %3937 = vmatprep.subr.mxu0 0.0
    %3938 = vmatpush2.msra.mxu0 0.0
    %3939 = vmatprep.subr.mxu0 0.0
    %3940 = vmatpush2.msra.mxu0 0.0
    %3941 = vmatprep.subr.mxu0 0.0
    %3942 = vmatpush2.msra.mxu0 0.0
    %3943 = vmatprep.subr.mxu0 0.0
    %3944 = vmatpush2.msra.mxu0 0.0
    %3945 = vmatprep.subr.mxu0 0.0
    %3946 = vmatpush2.msra.mxu0 0.0
    %3947 = vmatprep.subr.mxu0 0.0
    %3948 = vmatpush2.msra.mxu0 0.0
    %3949 = vmatprep.mubr.f32.mxu0 0.0
    %3950 = vmatmul.mubr.f32.gmra.mxu0 %v3883
    %v3951 = vpop.f32.mrf.mxu0
    %v3952 = vadd.f32 0.0, %v3951
    %v3953 = vpop.f32.mrf.mxu0
    %3954 = vdwg.mxu0
    %3955 = vrot.lane.b32.xlu0 %v168, 48
    %v3956 = vpop.permute.xlu0 %3955
    %v3959 = vsel %vm184, %v3572, 0
    %3961 = vmatprep.subr.mxu0 0.0
    %3962 = vmatpush1.msra.mxu0 0.0
    %3963 = vmatprep.subr.mxu0 0.0
    %3964 = vmatpush1.msra.mxu0 0.0
    %3965 = vmatprep.subr.mxu0 0.0
    %3966 = vmatpush1.msra.mxu0 0.0
    %3967 = vmatprep.subr.mxu0 0.0
    %3968 = vmatpush1.msra.mxu0 0.0
    %3969 = vmatprep.subr.mxu0 0.0
    %3970 = vmatpush1.msra.mxu0 0.0
    %3971 = vmatprep.subr.mxu0 0.0
    %3972 = vmatpush1.msra.mxu0 0.0
    %3973 = vmatprep.subr.mxu0 0.0
    %3974 = vmatpush1.msra.mxu0 0.0
    %3975 = vmatprep.subr.mxu0 0.0
    %3976 = vmatpush1.msra.mxu0 0.0
    %3977 = vmatprep.subr.mxu0 0.0
    %3978 = vmatpush1.msra.mxu0 0.0
    %3979 = vmatprep.subr.mxu0 0.0
    %3980 = vmatpush1.msra.mxu0 0.0
    %3981 = vmatprep.subr.mxu0 0.0
    %3982 = vmatpush1.msra.mxu0 0.0
    %3983 = vmatprep.subr.mxu0 0.0
    %3984 = vmatpush1.msra.mxu0 0.0
    %3985 = vmatprep.subr.mxu0 0.0
    %3986 = vmatpush1.msra.mxu0 0.0
    %3987 = vmatprep.subr.mxu0 0.0
    %3988 = vmatpush1.msra.mxu0 0.0
    %3989 = vmatprep.subr.mxu0 0.0
    %3990 = vmatpush1.msra.mxu0 0.0
    %3991 = vmatprep.subr.mxu0 0.0
    %3992 = vmatpush1.msra.mxu0 %v3956
    %3993 = vmatprep.subr.mxu0 0.0
    %3994 = vmatpush2.msra.mxu0 0.0
    %3995 = vmatprep.subr.mxu0 0.0
    %3996 = vmatpush2.msra.mxu0 0.0
    %3997 = vmatprep.subr.mxu0 0.0
    %3998 = vmatpush2.msra.mxu0 0.0
    %3999 = vmatprep.subr.mxu0 0.0
    %4000 = vmatpush2.msra.mxu0 0.0
    %4001 = vmatprep.subr.mxu0 0.0
    %4002 = vmatpush2.msra.mxu0 0.0
    %4003 = vmatprep.subr.mxu0 0.0
    %4004 = vmatpush2.msra.mxu0 0.0
    %4005 = vmatprep.subr.mxu0 0.0
    %4006 = vmatpush2.msra.mxu0 0.0
    %4007 = vmatprep.subr.mxu0 0.0
    %4008 = vmatpush2.msra.mxu0 0.0
    %4009 = vmatprep.subr.mxu0 0.0
    %4010 = vmatpush2.msra.mxu0 0.0
    %4011 = vmatprep.subr.mxu0 0.0
    %4012 = vmatpush2.msra.mxu0 0.0
    %4013 = vmatprep.subr.mxu0 0.0
    %4014 = vmatpush2.msra.mxu0 0.0
    %4015 = vmatprep.subr.mxu0 0.0
    %4016 = vmatpush2.msra.mxu0 0.0
    %4017 = vmatprep.subr.mxu0 0.0
    %4018 = vmatpush2.msra.mxu0 0.0
    %4019 = vmatprep.subr.mxu0 0.0
    %4020 = vmatpush2.msra.mxu0 0.0
    %4021 = vmatprep.subr.mxu0 0.0
    %4022 = vmatpush2.msra.mxu0 0.0
    %4023 = vmatprep.subr.mxu0 0.0
    %4024 = vmatpush2.msra.mxu0 0.0
    %4025 = vmatprep.mubr.f32.mxu0 0.0
    %4026 = vmatmul.mubr.f32.gmra.mxu0 %v3959
    %v4027 = vpop.f32.mrf.mxu0
    %v4028 = vadd.f32 0.0, %v4027
    %v4029 = vpop.f32.mrf.mxu0
    %4030 = vdwg.mxu0
    %4031 = vrot.lane.b32.xlu0 %v173, 48
    %v4032 = vpop.permute.xlu0 %4031
    %v4035 = vsel %vm184, %v3573, 0
    %4037 = vmatprep.subr.mxu0 0.0
    %4038 = vmatpush1.msra.mxu0 0.0
    %4039 = vmatprep.subr.mxu0 0.0
    %4040 = vmatpush1.msra.mxu0 0.0
    %4041 = vmatprep.subr.mxu0 0.0
    %4042 = vmatpush1.msra.mxu0 0.0
    %4043 = vmatprep.subr.mxu0 0.0
    %4044 = vmatpush1.msra.mxu0 0.0
    %4045 = vmatprep.subr.mxu0 0.0
    %4046 = vmatpush1.msra.mxu0 0.0
    %4047 = vmatprep.subr.mxu0 0.0
    %4048 = vmatpush1.msra.mxu0 0.0
    %4049 = vmatprep.subr.mxu0 0.0
    %4050 = vmatpush1.msra.mxu0 0.0
    %4051 = vmatprep.subr.mxu0 0.0
    %4052 = vmatpush1.msra.mxu0 0.0
    %4053 = vmatprep.subr.mxu0 0.0
    %4054 = vmatpush1.msra.mxu0 0.0
    %4055 = vmatprep.subr.mxu0 0.0
    %4056 = vmatpush1.msra.mxu0 0.0
    %4057 = vmatprep.subr.mxu0 0.0
    %4058 = vmatpush1.msra.mxu0 0.0
    %4059 = vmatprep.subr.mxu0 0.0
    %4060 = vmatpush1.msra.mxu0 0.0
    %4061 = vmatprep.subr.mxu0 0.0
    %4062 = vmatpush1.msra.mxu0 0.0
    %4063 = vmatprep.subr.mxu0 0.0
    %4064 = vmatpush1.msra.mxu0 0.0
    %4065 = vmatprep.subr.mxu0 0.0
    %4066 = vmatpush1.msra.mxu0 0.0
    %4067 = vmatprep.subr.mxu0 0.0
    %4068 = vmatpush1.msra.mxu0 %v4032
    %4069 = vmatprep.subr.mxu0 0.0
    %4070 = vmatpush2.msra.mxu0 0.0
    %4071 = vmatprep.subr.mxu0 0.0
    %4072 = vmatpush2.msra.mxu0 0.0
    %4073 = vmatprep.subr.mxu0 0.0
    %4074 = vmatpush2.msra.mxu0 0.0
    %4075 = vmatprep.subr.mxu0 0.0
    %4076 = vmatpush2.msra.mxu0 0.0
    %4077 = vmatprep.subr.mxu0 0.0
    %4078 = vmatpush2.msra.mxu0 0.0
    %4079 = vmatprep.subr.mxu0 0.0
    %4080 = vmatpush2.msra.mxu0 0.0
    %4081 = vmatprep.subr.mxu0 0.0
    %4082 = vmatpush2.msra.mxu0 0.0
    %4083 = vmatprep.subr.mxu0 0.0
    %4084 = vmatpush2.msra.mxu0 0.0
    %4085 = vmatprep.subr.mxu0 0.0
    %4086 = vmatpush2.msra.mxu0 0.0
    %4087 = vmatprep.subr.mxu0 0.0
    %4088 = vmatpush2.msra.mxu0 0.0
    %4089 = vmatprep.subr.mxu0 0.0
    %4090 = vmatpush2.msra.mxu0 0.0
    %4091 = vmatprep.subr.mxu0 0.0
    %4092 = vmatpush2.msra.mxu0 0.0
    %4093 = vmatprep.subr.mxu0 0.0
    %4094 = vmatpush2.msra.mxu0 0.0
    %4095 = vmatprep.subr.mxu0 0.0
    %4096 = vmatpush2.msra.mxu0 0.0
    %4097 = vmatprep.subr.mxu0 0.0
    %4098 = vmatpush2.msra.mxu0 0.0
    %4099 = vmatprep.subr.mxu0 0.0
    %4100 = vmatpush2.msra.mxu0 0.0
    %4101 = vmatprep.mubr.f32.mxu0 0.0
    %4102 = vmatmul.mubr.f32.gmra.mxu0 %v4035
    %v4103 = vpop.f32.mrf.mxu0
    %v4104 = vadd.f32 0.0, %v4103
    %v4105 = vpop.f32.mrf.mxu0
    %4106 = vdwg.mxu0
    %4107 = vrot.lane.b32.xlu0 %v178, 48
    %v4108 = vpop.permute.xlu0 %4107
    %v4111 = vsel %vm184, %v3574, 0
    %4113 = vmatprep.subr.mxu0 0.0
    %4114 = vmatpush1.msra.mxu0 0.0
    %4115 = vmatprep.subr.mxu0 0.0
    %4116 = vmatpush1.msra.mxu0 0.0
    %4117 = vmatprep.subr.mxu0 0.0
    %4118 = vmatpush1.msra.mxu0 0.0
    %4119 = vmatprep.subr.mxu0 0.0
    %4120 = vmatpush1.msra.mxu0 0.0
    %4121 = vmatprep.subr.mxu0 0.0
    %4122 = vmatpush1.msra.mxu0 0.0
    %4123 = vmatprep.subr.mxu0 0.0
    %4124 = vmatpush1.msra.mxu0 0.0
    %4125 = vmatprep.subr.mxu0 0.0
    %4126 = vmatpush1.msra.mxu0 0.0
    %4127 = vmatprep.subr.mxu0 0.0
    %4128 = vmatpush1.msra.mxu0 0.0
    %4129 = vmatprep.subr.mxu0 0.0
    %4130 = vmatpush1.msra.mxu0 0.0
    %4131 = vmatprep.subr.mxu0 0.0
    %4132 = vmatpush1.msra.mxu0 0.0
    %4133 = vmatprep.subr.mxu0 0.0
    %4134 = vmatpush1.msra.mxu0 0.0
    %4135 = vmatprep.subr.mxu0 0.0
    %4136 = vmatpush1.msra.mxu0 0.0
    %4137 = vmatprep.subr.mxu0 0.0
    %4138 = vmatpush1.msra.mxu0 0.0
    %4139 = vmatprep.subr.mxu0 0.0
    %4140 = vmatpush1.msra.mxu0 0.0
    %4141 = vmatprep.subr.mxu0 0.0
    %4142 = vmatpush1.msra.mxu0 0.0
    %4143 = vmatprep.subr.mxu0 0.0
    %4144 = vmatpush1.msra.mxu0 %v4108
    %4145 = vmatprep.subr.mxu0 0.0
    %4146 = vmatpush2.msra.mxu0 0.0
    %4147 = vmatprep.subr.mxu0 0.0
    %4148 = vmatpush2.msra.mxu0 0.0
    %4149 = vmatprep.subr.mxu0 0.0
    %4150 = vmatpush2.msra.mxu0 0.0
    %4151 = vmatprep.subr.mxu0 0.0
    %4152 = vmatpush2.msra.mxu0 0.0
    %4153 = vmatprep.subr.mxu0 0.0
    %4154 = vmatpush2.msra.mxu0 0.0
    %4155 = vmatprep.subr.mxu0 0.0
    %4156 = vmatpush2.msra.mxu0 0.0
    %4157 = vmatprep.subr.mxu0 0.0
    %4158 = vmatpush2.msra.mxu0 0.0
    %4159 = vmatprep.subr.mxu0 0.0
    %4160 = vmatpush2.msra.mxu0 0.0
    %4161 = vmatprep.subr.mxu0 0.0
    %4162 = vmatpush2.msra.mxu0 0.0
    %4163 = vmatprep.subr.mxu0 0.0
    %4164 = vmatpush2.msra.mxu0 0.0
    %4165 = vmatprep.subr.mxu0 0.0
    %4166 = vmatpush2.msra.mxu0 0.0
    %4167 = vmatprep.subr.mxu0 0.0
    %4168 = vmatpush2.msra.mxu0 0.0
    %4169 = vmatprep.subr.mxu0 0.0
    %4170 = vmatpush2.msra.mxu0 0.0
    %4171 = vmatprep.subr.mxu0 0.0
    %4172 = vmatpush2.msra.mxu0 0.0
    %4173 = vmatprep.subr.mxu0 0.0
    %4174 = vmatpush2.msra.mxu0 0.0
    %4175 = vmatprep.subr.mxu0 0.0
    %4176 = vmatpush2.msra.mxu0 0.0
    %4177 = vmatprep.mubr.f32.mxu0 0.0
    %4178 = vmatmul.mubr.f32.gmra.mxu0 %v4111
    %v4179 = vpop.f32.mrf.mxu0
    %v4180 = vadd.f32 0.0, %v4179
    %v4181 = vpop.f32.mrf.mxu0
    %4182 = vdwg.mxu0
    %4191 = vrot.lane.b32.xlu0 %v3648, 16
    %v4192 = vpop.permute.xlu0 %4191
    %4193 = vrot.lane.b32.xlu0 %v3724, 16
    %v4194 = vpop.permute.xlu0 %4193
    %4195 = vrot.lane.b32.xlu0 %v3800, 16
    %v4196 = vpop.permute.xlu0 %4195
    %4197 = vrot.lane.b32.xlu0 %v3876, 16
    %v4198 = vpop.permute.xlu0 %4197
    %4199 = vrot.lane.b32.xlu0 %v3952, 16
    %v4200 = vpop.permute.xlu0 %4199
    %4201 = vrot.lane.b32.xlu0 %v4028, 16
    %v4202 = vpop.permute.xlu0 %4201
    %4203 = vrot.lane.b32.xlu0 %v4104, 16
    %v4204 = vpop.permute.xlu0 %4203
    %4205 = vrot.lane.b32.xlu0 %v4180, 16
    %v4206 = vpop.permute.xlu0 %4205
    %vm4215 = vcmask 195712
    %4216 = vst.msk [vmem:[#allocation2] sm:$0xff] %vm4215, %v4192
    %4217 = vst.msk [vmem:[#allocation2 + $0x8] sm:$0xff] %vm4215, %v4194
    %4218 = vst.msk [vmem:[#allocation2 + $0x10] sm:$0xff] %vm4215, %v4196
    %4219 = vst.msk [vmem:[#allocation2 + $0x18] sm:$0xff] %vm4215, %v4198
    %4220 = vst.msk [vmem:[#allocation2 + $0x20] sm:$0xff] %vm4215, %v4200
    %4221 = vst.msk [vmem:[#allocation2 + $0x28] sm:$0xff] %vm4215, %v4202
    %4222 = vst.msk [vmem:[#allocation2 + $0x30] sm:$0xff] %vm4215, %v4204
    %4223 = vst.msk [vmem:[#allocation2 + $0x38] sm:$0xff] %vm4215, %v4206
    %4224 = vrot.lane.b32.xlu0 %v143, 104
    %v4225 = vpop.permute.xlu0 %4224
    %4226 = vrot.lane.b32.xlu0 %v143, 72
    %v4227 = vpop.permute.xlu0 %4226
    %v4228 = vsel %vm184, %v4225, 0
    %v4230 = vsel %vm184, %v4227, 0
    %4232 = vmatprep.subr.mxu0 0.0
    %4233 = vmatpush1.xpose.msra.mxu0 0.0
    %4234 = vmatprep.subr.mxu0 0.0
    %4235 = vmatpush1.xpose.msra.mxu0 0.0
    %4236 = vmatprep.subr.mxu0 0.0
    %4237 = vmatpush1.xpose.msra.mxu0 0.0
    %4238 = vmatprep.subr.mxu0 0.0
    %4239 = vmatpush1.xpose.msra.mxu0 0.0
    %4240 = vmatprep.subr.mxu0 0.0
    %4241 = vmatpush1.xpose.msra.mxu0 0.0
    %4242 = vmatprep.subr.mxu0 0.0
    %4243 = vmatpush1.xpose.msra.mxu0 0.0
    %4244 = vmatprep.subr.mxu0 0.0
    %4245 = vmatpush1.xpose.msra.mxu0 0.0
    %4246 = vmatprep.subr.mxu0 0.0
    %4247 = vmatpush1.xpose.msra.mxu0 0.0
    %4248 = vmatprep.subr.mxu0 0.0
    %4249 = vmatpush1.xpose.msra.mxu0 0.0
    %4250 = vmatprep.subr.mxu0 0.0
    %4251 = vmatpush1.xpose.msra.mxu0 0.0
    %4252 = vmatprep.subr.mxu0 0.0
    %4253 = vmatpush1.xpose.msra.mxu0 0.0
    %4254 = vmatprep.subr.mxu0 0.0
    %4255 = vmatpush1.xpose.msra.mxu0 0.0
    %4256 = vmatprep.subr.mxu0 0.0
    %4257 = vmatpush1.xpose.msra.mxu0 0.0
    %4258 = vmatprep.subr.mxu0 0.0
    %4259 = vmatpush1.xpose.msra.mxu0 0.0
    %4260 = vmatprep.subr.mxu0 0.0
    %4261 = vmatpush1.xpose.msra.mxu0 0.0
    %4262 = vmatprep.subr.mxu0 0.0
    %4263 = vmatpush1.xpose.msra.mxu0 %v4230
    %4264 = vmatprep.subr.mxu0 0.0
    %4265 = vmatpush2.xpose.msra.mxu0 0.0
    %4266 = vmatprep.subr.mxu0 0.0
    %4267 = vmatpush2.xpose.msra.mxu0 0.0
    %4268 = vmatprep.subr.mxu0 0.0
    %4269 = vmatpush2.xpose.msra.mxu0 0.0
    %4270 = vmatprep.subr.mxu0 0.0
    %4271 = vmatpush2.xpose.msra.mxu0 0.0
    %4272 = vmatprep.subr.mxu0 0.0
    %4273 = vmatpush2.xpose.msra.mxu0 0.0
    %4274 = vmatprep.subr.mxu0 0.0
    %4275 = vmatpush2.xpose.msra.mxu0 0.0
    %4276 = vmatprep.subr.mxu0 0.0
    %4277 = vmatpush2.xpose.msra.mxu0 0.0
    %4278 = vmatprep.subr.mxu0 0.0
    %4279 = vmatpush2.xpose.msra.mxu0 0.0
    %4280 = vmatprep.subr.mxu0 0.0
    %4281 = vmatpush2.xpose.msra.mxu0 0.0
    %4282 = vmatprep.subr.mxu0 0.0
    %4283 = vmatpush2.xpose.msra.mxu0 0.0
    %4284 = vmatprep.subr.mxu0 0.0
    %4285 = vmatpush2.xpose.msra.mxu0 0.0
    %4286 = vmatprep.subr.mxu0 0.0
    %4287 = vmatpush2.xpose.msra.mxu0 0.0
    %4288 = vmatprep.subr.mxu0 0.0
    %4289 = vmatpush2.xpose.msra.mxu0 0.0
    %4290 = vmatprep.subr.mxu0 0.0
    %4291 = vmatpush2.xpose.msra.mxu0 0.0
    %4292 = vmatprep.subr.mxu0 0.0
    %4293 = vmatpush2.xpose.msra.mxu0 0.0
    %4294 = vmatprep.subr.mxu0 0.0
    %4295 = vmatpush2.xpose.msra.mxu0 0.0
    %4296 = vmatprep.mubr.f32.mxu0 0.0
    %4297 = vmatmul.mubr.f32.gmra.mxu0 %v4228
    %v4298 = vpop.f32.mrf.mxu0
    %v4299 = vadd.f32 0.0, %v4298
    %v4300 = vpop.f32.mrf.mxu0
    %4301 = vdwg.mxu0
    %4302 = vrot.lane.b32.xlu0 %v148, 104
    %v4303 = vpop.permute.xlu0 %4302
    %4304 = vrot.lane.b32.xlu0 %v148, 72
    %v4305 = vpop.permute.xlu0 %4304
    %v4306 = vsel %vm184, %v4303, 0
    %v4308 = vsel %vm184, %v4305, 0
    %4310 = vmatprep.subr.mxu0 0.0
    %4311 = vmatpush1.xpose.msra.mxu0 0.0
    %4312 = vmatprep.subr.mxu0 0.0
    %4313 = vmatpush1.xpose.msra.mxu0 0.0
    %4314 = vmatprep.subr.mxu0 0.0
    %4315 = vmatpush1.xpose.msra.mxu0 0.0
    %4316 = vmatprep.subr.mxu0 0.0
    %4317 = vmatpush1.xpose.msra.mxu0 0.0
    %4318 = vmatprep.subr.mxu0 0.0
    %4319 = vmatpush1.xpose.msra.mxu0 0.0
    %4320 = vmatprep.subr.mxu0 0.0
    %4321 = vmatpush1.xpose.msra.mxu0 0.0
    %4322 = vmatprep.subr.mxu0 0.0
    %4323 = vmatpush1.xpose.msra.mxu0 0.0
    %4324 = vmatprep.subr.mxu0 0.0
    %4325 = vmatpush1.xpose.msra.mxu0 0.0
    %4326 = vmatprep.subr.mxu0 0.0
    %4327 = vmatpush1.xpose.msra.mxu0 0.0
    %4328 = vmatprep.subr.mxu0 0.0
    %4329 = vmatpush1.xpose.msra.mxu0 0.0
    %4330 = vmatprep.subr.mxu0 0.0
    %4331 = vmatpush1.xpose.msra.mxu0 0.0
    %4332 = vmatprep.subr.mxu0 0.0
    %4333 = vmatpush1.xpose.msra.mxu0 0.0
    %4334 = vmatprep.subr.mxu0 0.0
    %4335 = vmatpush1.xpose.msra.mxu0 0.0
    %4336 = vmatprep.subr.mxu0 0.0
    %4337 = vmatpush1.xpose.msra.mxu0 0.0
    %4338 = vmatprep.subr.mxu0 0.0
    %4339 = vmatpush1.xpose.msra.mxu0 0.0
    %4340 = vmatprep.subr.mxu0 0.0
    %4341 = vmatpush1.xpose.msra.mxu0 %v4308
    %4342 = vmatprep.subr.mxu0 0.0
    %4343 = vmatpush2.xpose.msra.mxu0 0.0
    %4344 = vmatprep.subr.mxu0 0.0
    %4345 = vmatpush2.xpose.msra.mxu0 0.0
    %4346 = vmatprep.subr.mxu0 0.0
    %4347 = vmatpush2.xpose.msra.mxu0 0.0
    %4348 = vmatprep.subr.mxu0 0.0
    %4349 = vmatpush2.xpose.msra.mxu0 0.0
    %4350 = vmatprep.subr.mxu0 0.0
    %4351 = vmatpush2.xpose.msra.mxu0 0.0
    %4352 = vmatprep.subr.mxu0 0.0
    %4353 = vmatpush2.xpose.msra.mxu0 0.0
    %4354 = vmatprep.subr.mxu0 0.0
    %4355 = vmatpush2.xpose.msra.mxu0 0.0
    %4356 = vmatprep.subr.mxu0 0.0
    %4357 = vmatpush2.xpose.msra.mxu0 0.0
    %4358 = vmatprep.subr.mxu0 0.0
    %4359 = vmatpush2.xpose.msra.mxu0 0.0
    %4360 = vmatprep.subr.mxu0 0.0
    %4361 = vmatpush2.xpose.msra.mxu0 0.0
    %4362 = vmatprep.subr.mxu0 0.0
    %4363 = vmatpush2.xpose.msra.mxu0 0.0
    %4364 = vmatprep.subr.mxu0 0.0
    %4365 = vmatpush2.xpose.msra.mxu0 0.0
    %4366 = vmatprep.subr.mxu0 0.0
    %4367 = vmatpush2.xpose.msra.mxu0 0.0
    %4368 = vmatprep.subr.mxu0 0.0
    %4369 = vmatpush2.xpose.msra.mxu0 0.0
    %4370 = vmatprep.subr.mxu0 0.0
    %4371 = vmatpush2.xpose.msra.mxu0 0.0
    %4372 = vmatprep.subr.mxu0 0.0
    %4373 = vmatpush2.xpose.msra.mxu0 0.0
    %4374 = vmatprep.mubr.f32.mxu0 0.0
    %4375 = vmatmul.mubr.f32.gmra.mxu0 %v4306
    %v4376 = vpop.f32.mrf.mxu0
    %v4377 = vadd.f32 0.0, %v4376
    %v4378 = vpop.f32.mrf.mxu0
    %4379 = vdwg.mxu0
    %4380 = vrot.lane.b32.xlu0 %v153, 104
    %v4381 = vpop.permute.xlu0 %4380
    %4382 = vrot.lane.b32.xlu0 %v153, 72
    %v4383 = vpop.permute.xlu0 %4382
    %v4384 = vsel %vm184, %v4381, 0
    %v4386 = vsel %vm184, %v4383, 0
    %4388 = vmatprep.subr.mxu0 0.0
    %4389 = vmatpush1.xpose.msra.mxu0 0.0
    %4390 = vmatprep.subr.mxu0 0.0
    %4391 = vmatpush1.xpose.msra.mxu0 0.0
    %4392 = vmatprep.subr.mxu0 0.0
    %4393 = vmatpush1.xpose.msra.mxu0 0.0
    %4394 = vmatprep.subr.mxu0 0.0
    %4395 = vmatpush1.xpose.msra.mxu0 0.0
    %4396 = vmatprep.subr.mxu0 0.0
    %4397 = vmatpush1.xpose.msra.mxu0 0.0
    %4398 = vmatprep.subr.mxu0 0.0
    %4399 = vmatpush1.xpose.msra.mxu0 0.0
    %4400 = vmatprep.subr.mxu0 0.0
    %4401 = vmatpush1.xpose.msra.mxu0 0.0
    %4402 = vmatprep.subr.mxu0 0.0
    %4403 = vmatpush1.xpose.msra.mxu0 0.0
    %4404 = vmatprep.subr.mxu0 0.0
    %4405 = vmatpush1.xpose.msra.mxu0 0.0
    %4406 = vmatprep.subr.mxu0 0.0
    %4407 = vmatpush1.xpose.msra.mxu0 0.0
    %4408 = vmatprep.subr.mxu0 0.0
    %4409 = vmatpush1.xpose.msra.mxu0 0.0
    %4410 = vmatprep.subr.mxu0 0.0
    %4411 = vmatpush1.xpose.msra.mxu0 0.0
    %4412 = vmatprep.subr.mxu0 0.0
    %4413 = vmatpush1.xpose.msra.mxu0 0.0
    %4414 = vmatprep.subr.mxu0 0.0
    %4415 = vmatpush1.xpose.msra.mxu0 0.0
    %4416 = vmatprep.subr.mxu0 0.0
    %4417 = vmatpush1.xpose.msra.mxu0 0.0
    %4418 = vmatprep.subr.mxu0 0.0
    %4419 = vmatpush1.xpose.msra.mxu0 %v4386
    %4420 = vmatprep.subr.mxu0 0.0
    %4421 = vmatpush2.xpose.msra.mxu0 0.0
    %4422 = vmatprep.subr.mxu0 0.0
    %4423 = vmatpush2.xpose.msra.mxu0 0.0
    %4424 = vmatprep.subr.mxu0 0.0
    %4425 = vmatpush2.xpose.msra.mxu0 0.0
    %4426 = vmatprep.subr.mxu0 0.0
    %4427 = vmatpush2.xpose.msra.mxu0 0.0
    %4428 = vmatprep.subr.mxu0 0.0
    %4429 = vmatpush2.xpose.msra.mxu0 0.0
    %4430 = vmatprep.subr.mxu0 0.0
    %4431 = vmatpush2.xpose.msra.mxu0 0.0
    %4432 = vmatprep.subr.mxu0 0.0
    %4433 = vmatpush2.xpose.msra.mxu0 0.0
    %4434 = vmatprep.subr.mxu0 0.0
    %4435 = vmatpush2.xpose.msra.mxu0 0.0
    %4436 = vmatprep.subr.mxu0 0.0
    %4437 = vmatpush2.xpose.msra.mxu0 0.0
    %4438 = vmatprep.subr.mxu0 0.0
    %4439 = vmatpush2.xpose.msra.mxu0 0.0
    %4440 = vmatprep.subr.mxu0 0.0
    %4441 = vmatpush2.xpose.msra.mxu0 0.0
    %4442 = vmatprep.subr.mxu0 0.0
    %4443 = vmatpush2.xpose.msra.mxu0 0.0
    %4444 = vmatprep.subr.mxu0 0.0
    %4445 = vmatpush2.xpose.msra.mxu0 0.0
    %4446 = vmatprep.subr.mxu0 0.0
    %4447 = vmatpush2.xpose.msra.mxu0 0.0
    %4448 = vmatprep.subr.mxu0 0.0
    %4449 = vmatpush2.xpose.msra.mxu0 0.0
    %4450 = vmatprep.subr.mxu0 0.0
    %4451 = vmatpush2.xpose.msra.mxu0 0.0
    %4452 = vmatprep.mubr.f32.mxu0 0.0
    %4453 = vmatmul.mubr.f32.gmra.mxu0 %v4384
    %v4454 = vpop.f32.mrf.mxu0
    %v4455 = vadd.f32 0.0, %v4454
    %v4456 = vpop.f32.mrf.mxu0
    %4457 = vdwg.mxu0
    %4458 = vrot.lane.b32.xlu0 %v158, 104
    %v4459 = vpop.permute.xlu0 %4458
    %4460 = vrot.lane.b32.xlu0 %v158, 72
    %v4461 = vpop.permute.xlu0 %4460
    %v4462 = vsel %vm184, %v4459, 0
    %v4464 = vsel %vm184, %v4461, 0
    %4466 = vmatprep.subr.mxu0 0.0
    %4467 = vmatpush1.xpose.msra.mxu0 0.0
    %4468 = vmatprep.subr.mxu0 0.0
    %4469 = vmatpush1.xpose.msra.mxu0 0.0
    %4470 = vmatprep.subr.mxu0 0.0
    %4471 = vmatpush1.xpose.msra.mxu0 0.0
    %4472 = vmatprep.subr.mxu0 0.0
    %4473 = vmatpush1.xpose.msra.mxu0 0.0
    %4474 = vmatprep.subr.mxu0 0.0
    %4475 = vmatpush1.xpose.msra.mxu0 0.0
    %4476 = vmatprep.subr.mxu0 0.0
    %4477 = vmatpush1.xpose.msra.mxu0 0.0
    %4478 = vmatprep.subr.mxu0 0.0
    %4479 = vmatpush1.xpose.msra.mxu0 0.0
    %4480 = vmatprep.subr.mxu0 0.0
    %4481 = vmatpush1.xpose.msra.mxu0 0.0
    %4482 = vmatprep.subr.mxu0 0.0
    %4483 = vmatpush1.xpose.msra.mxu0 0.0
    %4484 = vmatprep.subr.mxu0 0.0
    %4485 = vmatpush1.xpose.msra.mxu0 0.0
    %4486 = vmatprep.subr.mxu0 0.0
    %4487 = vmatpush1.xpose.msra.mxu0 0.0
    %4488 = vmatprep.subr.mxu0 0.0
    %4489 = vmatpush1.xpose.msra.mxu0 0.0
    %4490 = vmatprep.subr.mxu0 0.0
    %4491 = vmatpush1.xpose.msra.mxu0 0.0
    %4492 = vmatprep.subr.mxu0 0.0
    %4493 = vmatpush1.xpose.msra.mxu0 0.0
    %4494 = vmatprep.subr.mxu0 0.0
    %4495 = vmatpush1.xpose.msra.mxu0 0.0
    %4496 = vmatprep.subr.mxu0 0.0
    %4497 = vmatpush1.xpose.msra.mxu0 %v4464
    %4498 = vmatprep.subr.mxu0 0.0
    %4499 = vmatpush2.xpose.msra.mxu0 0.0
    %4500 = vmatprep.subr.mxu0 0.0
    %4501 = vmatpush2.xpose.msra.mxu0 0.0
    %4502 = vmatprep.subr.mxu0 0.0
    %4503 = vmatpush2.xpose.msra.mxu0 0.0
    %4504 = vmatprep.subr.mxu0 0.0
    %4505 = vmatpush2.xpose.msra.mxu0 0.0
    %4506 = vmatprep.subr.mxu0 0.0
    %4507 = vmatpush2.xpose.msra.mxu0 0.0
    %4508 = vmatprep.subr.mxu0 0.0
    %4509 = vmatpush2.xpose.msra.mxu0 0.0
    %4510 = vmatprep.subr.mxu0 0.0
    %4511 = vmatpush2.xpose.msra.mxu0 0.0
    %4512 = vmatprep.subr.mxu0 0.0
    %4513 = vmatpush2.xpose.msra.mxu0 0.0
    %4514 = vmatprep.subr.mxu0 0.0
    %4515 = vmatpush2.xpose.msra.mxu0 0.0
    %4516 = vmatprep.subr.mxu0 0.0
    %4517 = vmatpush2.xpose.msra.mxu0 0.0
    %4518 = vmatprep.subr.mxu0 0.0
    %4519 = vmatpush2.xpose.msra.mxu0 0.0
    %4520 = vmatprep.subr.mxu0 0.0
    %4521 = vmatpush2.xpose.msra.mxu0 0.0
    %4522 = vmatprep.subr.mxu0 0.0
    %4523 = vmatpush2.xpose.msra.mxu0 0.0
    %4524 = vmatprep.subr.mxu0 0.0
    %4525 = vmatpush2.xpose.msra.mxu0 0.0
    %4526 = vmatprep.subr.mxu0 0.0
    %4527 = vmatpush2.xpose.msra.mxu0 0.0
    %4528 = vmatprep.subr.mxu0 0.0
    %4529 = vmatpush2.xpose.msra.mxu0 0.0
    %4530 = vmatprep.mubr.f32.mxu0 0.0
    %4531 = vmatmul.mubr.f32.gmra.mxu0 %v4462
    %v4532 = vpop.f32.mrf.mxu0
    %v4533 = vadd.f32 0.0, %v4532
    %v4534 = vpop.f32.mrf.mxu0
    %4535 = vdwg.mxu0
    %4536 = vrot.lane.b32.xlu0 %v163, 104
    %v4537 = vpop.permute.xlu0 %4536
    %4538 = vrot.lane.b32.xlu0 %v163, 72
    %v4539 = vpop.permute.xlu0 %4538
    %v4540 = vsel %vm184, %v4537, 0
    %v4542 = vsel %vm184, %v4539, 0
    %4544 = vmatprep.subr.mxu0 0.0
    %4545 = vmatpush1.xpose.msra.mxu0 0.0
    %4546 = vmatprep.subr.mxu0 0.0
    %4547 = vmatpush1.xpose.msra.mxu0 0.0
    %4548 = vmatprep.subr.mxu0 0.0
    %4549 = vmatpush1.xpose.msra.mxu0 0.0
    %4550 = vmatprep.subr.mxu0 0.0
    %4551 = vmatpush1.xpose.msra.mxu0 0.0
    %4552 = vmatprep.subr.mxu0 0.0
    %4553 = vmatpush1.xpose.msra.mxu0 0.0
    %4554 = vmatprep.subr.mxu0 0.0
    %4555 = vmatpush1.xpose.msra.mxu0 0.0
    %4556 = vmatprep.subr.mxu0 0.0
    %4557 = vmatpush1.xpose.msra.mxu0 0.0
    %4558 = vmatprep.subr.mxu0 0.0
    %4559 = vmatpush1.xpose.msra.mxu0 0.0
    %4560 = vmatprep.subr.mxu0 0.0
    %4561 = vmatpush1.xpose.msra.mxu0 0.0
    %4562 = vmatprep.subr.mxu0 0.0
    %4563 = vmatpush1.xpose.msra.mxu0 0.0
    %4564 = vmatprep.subr.mxu0 0.0
    %4565 = vmatpush1.xpose.msra.mxu0 0.0
    %4566 = vmatprep.subr.mxu0 0.0
    %4567 = vmatpush1.xpose.msra.mxu0 0.0
    %4568 = vmatprep.subr.mxu0 0.0
    %4569 = vmatpush1.xpose.msra.mxu0 0.0
    %4570 = vmatprep.subr.mxu0 0.0
    %4571 = vmatpush1.xpose.msra.mxu0 0.0
    %4572 = vmatprep.subr.mxu0 0.0
    %4573 = vmatpush1.xpose.msra.mxu0 0.0
    %4574 = vmatprep.subr.mxu0 0.0
    %4575 = vmatpush1.xpose.msra.mxu0 %v4542
    %4576 = vmatprep.subr.mxu0 0.0
    %4577 = vmatpush2.xpose.msra.mxu0 0.0
    %4578 = vmatprep.subr.mxu0 0.0
    %4579 = vmatpush2.xpose.msra.mxu0 0.0
    %4580 = vmatprep.subr.mxu0 0.0
    %4581 = vmatpush2.xpose.msra.mxu0 0.0
    %4582 = vmatprep.subr.mxu0 0.0
    %4583 = vmatpush2.xpose.msra.mxu0 0.0
    %4584 = vmatprep.subr.mxu0 0.0
    %4585 = vmatpush2.xpose.msra.mxu0 0.0
    %4586 = vmatprep.subr.mxu0 0.0
    %4587 = vmatpush2.xpose.msra.mxu0 0.0
    %4588 = vmatprep.subr.mxu0 0.0
    %4589 = vmatpush2.xpose.msra.mxu0 0.0
    %4590 = vmatprep.subr.mxu0 0.0
    %4591 = vmatpush2.xpose.msra.mxu0 0.0
    %4592 = vmatprep.subr.mxu0 0.0
    %4593 = vmatpush2.xpose.msra.mxu0 0.0
    %4594 = vmatprep.subr.mxu0 0.0
    %4595 = vmatpush2.xpose.msra.mxu0 0.0
    %4596 = vmatprep.subr.mxu0 0.0
    %4597 = vmatpush2.xpose.msra.mxu0 0.0
    %4598 = vmatprep.subr.mxu0 0.0
    %4599 = vmatpush2.xpose.msra.mxu0 0.0
    %4600 = vmatprep.subr.mxu0 0.0
    %4601 = vmatpush2.xpose.msra.mxu0 0.0
    %4602 = vmatprep.subr.mxu0 0.0
    %4603 = vmatpush2.xpose.msra.mxu0 0.0
    %4604 = vmatprep.subr.mxu0 0.0
    %4605 = vmatpush2.xpose.msra.mxu0 0.0
    %4606 = vmatprep.subr.mxu0 0.0
    %4607 = vmatpush2.xpose.msra.mxu0 0.0
    %4608 = vmatprep.mubr.f32.mxu0 0.0
    %4609 = vmatmul.mubr.f32.gmra.mxu0 %v4540
    %v4610 = vpop.f32.mrf.mxu0
    %v4611 = vadd.f32 0.0, %v4610
    %v4612 = vpop.f32.mrf.mxu0
    %4613 = vdwg.mxu0
    %4614 = vrot.lane.b32.xlu0 %v168, 104
    %v4615 = vpop.permute.xlu0 %4614
    %4616 = vrot.lane.b32.xlu0 %v168, 72
    %v4617 = vpop.permute.xlu0 %4616
    %v4618 = vsel %vm184, %v4615, 0
    %v4620 = vsel %vm184, %v4617, 0
    %4622 = vmatprep.subr.mxu0 0.0
    %4623 = vmatpush1.xpose.msra.mxu0 0.0
    %4624 = vmatprep.subr.mxu0 0.0
    %4625 = vmatpush1.xpose.msra.mxu0 0.0
    %4626 = vmatprep.subr.mxu0 0.0
    %4627 = vmatpush1.xpose.msra.mxu0 0.0
    %4628 = vmatprep.subr.mxu0 0.0
    %4629 = vmatpush1.xpose.msra.mxu0 0.0
    %4630 = vmatprep.subr.mxu0 0.0
    %4631 = vmatpush1.xpose.msra.mxu0 0.0
    %4632 = vmatprep.subr.mxu0 0.0
    %4633 = vmatpush1.xpose.msra.mxu0 0.0
    %4634 = vmatprep.subr.mxu0 0.0
    %4635 = vmatpush1.xpose.msra.mxu0 0.0
    %4636 = vmatprep.subr.mxu0 0.0
    %4637 = vmatpush1.xpose.msra.mxu0 0.0
    %4638 = vmatprep.subr.mxu0 0.0
    %4639 = vmatpush1.xpose.msra.mxu0 0.0
    %4640 = vmatprep.subr.mxu0 0.0
    %4641 = vmatpush1.xpose.msra.mxu0 0.0
    %4642 = vmatprep.subr.mxu0 0.0
    %4643 = vmatpush1.xpose.msra.mxu0 0.0
    %4644 = vmatprep.subr.mxu0 0.0
    %4645 = vmatpush1.xpose.msra.mxu0 0.0
    %4646 = vmatprep.subr.mxu0 0.0
    %4647 = vmatpush1.xpose.msra.mxu0 0.0
    %4648 = vmatprep.subr.mxu0 0.0
    %4649 = vmatpush1.xpose.msra.mxu0 0.0
    %4650 = vmatprep.subr.mxu0 0.0
    %4651 = vmatpush1.xpose.msra.mxu0 0.0
    %4652 = vmatprep.subr.mxu0 0.0
    %4653 = vmatpush1.xpose.msra.mxu0 %v4620
    %4654 = vmatprep.subr.mxu0 0.0
    %4655 = vmatpush2.xpose.msra.mxu0 0.0
    %4656 = vmatprep.subr.mxu0 0.0
    %4657 = vmatpush2.xpose.msra.mxu0 0.0
    %4658 = vmatprep.subr.mxu0 0.0
    %4659 = vmatpush2.xpose.msra.mxu0 0.0
    %4660 = vmatprep.subr.mxu0 0.0
    %4661 = vmatpush2.xpose.msra.mxu0 0.0
    %4662 = vmatprep.subr.mxu0 0.0
    %4663 = vmatpush2.xpose.msra.mxu0 0.0
    %4664 = vmatprep.subr.mxu0 0.0
    %4665 = vmatpush2.xpose.msra.mxu0 0.0
    %4666 = vmatprep.subr.mxu0 0.0
    %4667 = vmatpush2.xpose.msra.mxu0 0.0
    %4668 = vmatprep.subr.mxu0 0.0
    %4669 = vmatpush2.xpose.msra.mxu0 0.0
    %4670 = vmatprep.subr.mxu0 0.0
    %4671 = vmatpush2.xpose.msra.mxu0 0.0
    %4672 = vmatprep.subr.mxu0 0.0
    %4673 = vmatpush2.xpose.msra.mxu0 0.0
    %4674 = vmatprep.subr.mxu0 0.0
    %4675 = vmatpush2.xpose.msra.mxu0 0.0
    %4676 = vmatprep.subr.mxu0 0.0
    %4677 = vmatpush2.xpose.msra.mxu0 0.0
    %4678 = vmatprep.subr.mxu0 0.0
    %4679 = vmatpush2.xpose.msra.mxu0 0.0
    %4680 = vmatprep.subr.mxu0 0.0
    %4681 = vmatpush2.xpose.msra.mxu0 0.0
    %4682 = vmatprep.subr.mxu0 0.0
    %4683 = vmatpush2.xpose.msra.mxu0 0.0
    %4684 = vmatprep.subr.mxu0 0.0
    %4685 = vmatpush2.xpose.msra.mxu0 0.0
    %4686 = vmatprep.mubr.f32.mxu0 0.0
    %4687 = vmatmul.mubr.f32.gmra.mxu0 %v4618
    %v4688 = vpop.f32.mrf.mxu0
    %v4689 = vadd.f32 0.0, %v4688
    %v4690 = vpop.f32.mrf.mxu0
    %4691 = vdwg.mxu0
    %4692 = vrot.lane.b32.xlu0 %v173, 104
    %v4693 = vpop.permute.xlu0 %4692
    %4694 = vrot.lane.b32.xlu0 %v173, 72
    %v4695 = vpop.permute.xlu0 %4694
    %v4696 = vsel %vm184, %v4693, 0
    %v4698 = vsel %vm184, %v4695, 0
    %4700 = vmatprep.subr.mxu0 0.0
    %4701 = vmatpush1.xpose.msra.mxu0 0.0
    %4702 = vmatprep.subr.mxu0 0.0
    %4703 = vmatpush1.xpose.msra.mxu0 0.0
    %4704 = vmatprep.subr.mxu0 0.0
    %4705 = vmatpush1.xpose.msra.mxu0 0.0
    %4706 = vmatprep.subr.mxu0 0.0
    %4707 = vmatpush1.xpose.msra.mxu0 0.0
    %4708 = vmatprep.subr.mxu0 0.0
    %4709 = vmatpush1.xpose.msra.mxu0 0.0
    %4710 = vmatprep.subr.mxu0 0.0
    %4711 = vmatpush1.xpose.msra.mxu0 0.0
    %4712 = vmatprep.subr.mxu0 0.0
    %4713 = vmatpush1.xpose.msra.mxu0 0.0
    %4714 = vmatprep.subr.mxu0 0.0
    %4715 = vmatpush1.xpose.msra.mxu0 0.0
    %4716 = vmatprep.subr.mxu0 0.0
    %4717 = vmatpush1.xpose.msra.mxu0 0.0
    %4718 = vmatprep.subr.mxu0 0.0
    %4719 = vmatpush1.xpose.msra.mxu0 0.0
    %4720 = vmatprep.subr.mxu0 0.0
    %4721 = vmatpush1.xpose.msra.mxu0 0.0
    %4722 = vmatprep.subr.mxu0 0.0
    %4723 = vmatpush1.xpose.msra.mxu0 0.0
    %4724 = vmatprep.subr.mxu0 0.0
    %4725 = vmatpush1.xpose.msra.mxu0 0.0
    %4726 = vmatprep.subr.mxu0 0.0
    %4727 = vmatpush1.xpose.msra.mxu0 0.0
    %4728 = vmatprep.subr.mxu0 0.0
    %4729 = vmatpush1.xpose.msra.mxu0 0.0
    %4730 = vmatprep.subr.mxu0 0.0
    %4731 = vmatpush1.xpose.msra.mxu0 %v4698
    %4732 = vmatprep.subr.mxu0 0.0
    %4733 = vmatpush2.xpose.msra.mxu0 0.0
    %4734 = vmatprep.subr.mxu0 0.0
    %4735 = vmatpush2.xpose.msra.mxu0 0.0
    %4736 = vmatprep.subr.mxu0 0.0
    %4737 = vmatpush2.xpose.msra.mxu0 0.0
    %4738 = vmatprep.subr.mxu0 0.0
    %4739 = vmatpush2.xpose.msra.mxu0 0.0
    %4740 = vmatprep.subr.mxu0 0.0
    %4741 = vmatpush2.xpose.msra.mxu0 0.0
    %4742 = vmatprep.subr.mxu0 0.0
    %4743 = vmatpush2.xpose.msra.mxu0 0.0
    %4744 = vmatprep.subr.mxu0 0.0
    %4745 = vmatpush2.xpose.msra.mxu0 0.0
    %4746 = vmatprep.subr.mxu0 0.0
    %4747 = vmatpush2.xpose.msra.mxu0 0.0
    %4748 = vmatprep.subr.mxu0 0.0
    %4749 = vmatpush2.xpose.msra.mxu0 0.0
    %4750 = vmatprep.subr.mxu0 0.0
    %4751 = vmatpush2.xpose.msra.mxu0 0.0
    %4752 = vmatprep.subr.mxu0 0.0
    %4753 = vmatpush2.xpose.msra.mxu0 0.0
    %4754 = vmatprep.subr.mxu0 0.0
    %4755 = vmatpush2.xpose.msra.mxu0 0.0
    %4756 = vmatprep.subr.mxu0 0.0
    %4757 = vmatpush2.xpose.msra.mxu0 0.0
    %4758 = vmatprep.subr.mxu0 0.0
    %4759 = vmatpush2.xpose.msra.mxu0 0.0
    %4760 = vmatprep.subr.mxu0 0.0
    %4761 = vmatpush2.xpose.msra.mxu0 0.0
    %4762 = vmatprep.subr.mxu0 0.0
    %4763 = vmatpush2.xpose.msra.mxu0 0.0
    %4764 = vmatprep.mubr.f32.mxu0 0.0
    %4765 = vmatmul.mubr.f32.gmra.mxu0 %v4696
    %v4766 = vpop.f32.mrf.mxu0
    %v4767 = vadd.f32 0.0, %v4766
    %v4768 = vpop.f32.mrf.mxu0
    %4769 = vdwg.mxu0
    %4770 = vrot.lane.b32.xlu0 %v178, 104
    %v4771 = vpop.permute.xlu0 %4770
    %4772 = vrot.lane.b32.xlu0 %v178, 72
    %v4773 = vpop.permute.xlu0 %4772
    %v4774 = vsel %vm184, %v4771, 0
    %v4776 = vsel %vm184, %v4773, 0
    %4778 = vmatprep.subr.mxu0 0.0
    %4779 = vmatpush1.xpose.msra.mxu0 0.0
    %4780 = vmatprep.subr.mxu0 0.0
    %4781 = vmatpush1.xpose.msra.mxu0 0.0
    %4782 = vmatprep.subr.mxu0 0.0
    %4783 = vmatpush1.xpose.msra.mxu0 0.0
    %4784 = vmatprep.subr.mxu0 0.0
    %4785 = vmatpush1.xpose.msra.mxu0 0.0
    %4786 = vmatprep.subr.mxu0 0.0
    %4787 = vmatpush1.xpose.msra.mxu0 0.0
    %4788 = vmatprep.subr.mxu0 0.0
    %4789 = vmatpush1.xpose.msra.mxu0 0.0
    %4790 = vmatprep.subr.mxu0 0.0
    %4791 = vmatpush1.xpose.msra.mxu0 0.0
    %4792 = vmatprep.subr.mxu0 0.0
    %4793 = vmatpush1.xpose.msra.mxu0 0.0
    %4794 = vmatprep.subr.mxu0 0.0
    %4795 = vmatpush1.xpose.msra.mxu0 0.0
    %4796 = vmatprep.subr.mxu0 0.0
    %4797 = vmatpush1.xpose.msra.mxu0 0.0
    %4798 = vmatprep.subr.mxu0 0.0
    %4799 = vmatpush1.xpose.msra.mxu0 0.0
    %4800 = vmatprep.subr.mxu0 0.0
    %4801 = vmatpush1.xpose.msra.mxu0 0.0
    %4802 = vmatprep.subr.mxu0 0.0
    %4803 = vmatpush1.xpose.msra.mxu0 0.0
    %4804 = vmatprep.subr.mxu0 0.0
    %4805 = vmatpush1.xpose.msra.mxu0 0.0
    %4806 = vmatprep.subr.mxu0 0.0
    %4807 = vmatpush1.xpose.msra.mxu0 0.0
    %4808 = vmatprep.subr.mxu0 0.0
    %4809 = vmatpush1.xpose.msra.mxu0 %v4776
    %4810 = vmatprep.subr.mxu0 0.0
    %4811 = vmatpush2.xpose.msra.mxu0 0.0
    %4812 = vmatprep.subr.mxu0 0.0
    %4813 = vmatpush2.xpose.msra.mxu0 0.0
    %4814 = vmatprep.subr.mxu0 0.0
    %4815 = vmatpush2.xpose.msra.mxu0 0.0
    %4816 = vmatprep.subr.mxu0 0.0
    %4817 = vmatpush2.xpose.msra.mxu0 0.0
    %4818 = vmatprep.subr.mxu0 0.0
    %4819 = vmatpush2.xpose.msra.mxu0 0.0
    %4820 = vmatprep.subr.mxu0 0.0
    %4821 = vmatpush2.xpose.msra.mxu0 0.0
    %4822 = vmatprep.subr.mxu0 0.0
    %4823 = vmatpush2.xpose.msra.mxu0 0.0
    %4824 = vmatprep.subr.mxu0 0.0
    %4825 = vmatpush2.xpose.msra.mxu0 0.0
    %4826 = vmatprep.subr.mxu0 0.0
    %4827 = vmatpush2.xpose.msra.mxu0 0.0
    %4828 = vmatprep.subr.mxu0 0.0
    %4829 = vmatpush2.xpose.msra.mxu0 0.0
    %4830 = vmatprep.subr.mxu0 0.0
    %4831 = vmatpush2.xpose.msra.mxu0 0.0
    %4832 = vmatprep.subr.mxu0 0.0
    %4833 = vmatpush2.xpose.msra.mxu0 0.0
    %4834 = vmatprep.subr.mxu0 0.0
    %4835 = vmatpush2.xpose.msra.mxu0 0.0
    %4836 = vmatprep.subr.mxu0 0.0
    %4837 = vmatpush2.xpose.msra.mxu0 0.0
    %4838 = vmatprep.subr.mxu0 0.0
    %4839 = vmatpush2.xpose.msra.mxu0 0.0
    %4840 = vmatprep.subr.mxu0 0.0
    %4841 = vmatpush2.xpose.msra.mxu0 0.0
    %4842 = vmatprep.mubr.f32.mxu0 0.0
    %4843 = vmatmul.mubr.f32.gmra.mxu0 %v4774
    %v4844 = vpop.f32.mrf.mxu0
    %v4845 = vadd.f32 0.0, %v4844
    %v4846 = vpop.f32.mrf.mxu0
    %4847 = vdwg.mxu0
    %v4848 = vsel %vm184, %v4299, -inf
    %4849 = vmax.xlane.f32.xlu0 %v4848
    %v4850 = vpop.xlane.xlu0 %4849
    %v4851 = vsel %vm184, %v4377, -inf
    %4852 = vmax.xlane.f32.xlu0 %v4851
    %v4853 = vpop.xlane.xlu0 %4852
    %v4854 = vsel %vm184, %v4455, -inf
    %4855 = vmax.xlane.f32.xlu0 %v4854
    %v4856 = vpop.xlane.xlu0 %4855
    %v4857 = vsel %vm184, %v4533, -inf
    %4858 = vmax.xlane.f32.xlu0 %v4857
    %v4859 = vpop.xlane.xlu0 %4858
    %v4860 = vsel %vm184, %v4611, -inf
    %4861 = vmax.xlane.f32.xlu0 %v4860
    %v4862 = vpop.xlane.xlu0 %4861
    %v4863 = vsel %vm184, %v4689, -inf
    %4864 = vmax.xlane.f32.xlu0 %v4863
    %v4865 = vpop.xlane.xlu0 %4864
    %v4866 = vsel %vm184, %v4767, -inf
    %4867 = vmax.xlane.f32.xlu0 %v4866
    %v4868 = vpop.xlane.xlu0 %4867
    %v4869 = vsel %vm184, %v4845, -inf
    %4870 = vmax.xlane.f32.xlu0 %v4869
    %v4871 = vpop.xlane.xlu0 %4870
    %v4872 = vsub.f32 %v4299, %v4850
    %v4873 = vsub.f32 %v4377, %v4853
    %v4874 = vsub.f32 %v4455, %v4856
    %v4875 = vsub.f32 %v4533, %v4859
    %v4876 = vsub.f32 %v4611, %v4862
    %v4877 = vsub.f32 %v4689, %v4865
    %v4878 = vsub.f32 %v4767, %v4868
    %v4879 = vsub.f32 %v4845, %v4871
    %v4880 = vmul.f32 %v4872, 1.442695
    %v4881 = vpow.pop %v4880
    %v4882 = vmul.f32 %v4873, 1.442695
    %v4883 = vpow.pop %v4882
    %v4884 = vmul.f32 %v4874, 1.442695
    %v4885 = vpow.pop %v4884
    %v4886 = vmul.f32 %v4875, 1.442695
    %v4887 = vpow.pop %v4886
    %v4888 = vmul.f32 %v4876, 1.442695
    %v4889 = vpow.pop %v4888
    %v4890 = vmul.f32 %v4877, 1.442695
    %v4891 = vpow.pop %v4890
    %v4892 = vmul.f32 %v4878, 1.442695
    %v4893 = vpow.pop %v4892
    %v4894 = vmul.f32 %v4879, 1.442695
    %v4895 = vpow.pop %v4894
    %v4896 = vsel %vm184, %v4881, 0.0
    %4897 = vadd.xlane.f32.xlu0 %v4896
    %v4898 = vpop.xlane.xlu0 %4897
    %v4899 = vsel %vm184, %v4883, 0.0
    %4900 = vadd.xlane.f32.xlu0 %v4899
    %v4901 = vpop.xlane.xlu0 %4900
    %v4902 = vsel %vm184, %v4885, 0.0
    %4903 = vadd.xlane.f32.xlu0 %v4902
    %v4904 = vpop.xlane.xlu0 %4903
    %v4905 = vsel %vm184, %v4887, 0.0
    %4906 = vadd.xlane.f32.xlu0 %v4905
    %v4907 = vpop.xlane.xlu0 %4906
    %v4908 = vsel %vm184, %v4889, 0.0
    %4909 = vadd.xlane.f32.xlu0 %v4908
    %v4910 = vpop.xlane.xlu0 %4909
    %v4911 = vsel %vm184, %v4891, 0.0
    %4912 = vadd.xlane.f32.xlu0 %v4911
    %v4913 = vpop.xlane.xlu0 %4912
    %v4914 = vsel %vm184, %v4893, 0.0
    %4915 = vadd.xlane.f32.xlu0 %v4914
    %v4916 = vpop.xlane.xlu0 %4915
    %v4917 = vsel %vm184, %v4895, 0.0
    %4918 = vadd.xlane.f32.xlu0 %v4917
    %v4919 = vpop.xlane.xlu0 %4918
    %v4920 = vrcp.pop %v4898
    %v4921 = vrcp.pop %v4901
    %v4922 = vrcp.pop %v4904
    %v4923 = vrcp.pop %v4907
    %v4924 = vrcp.pop %v4910
    %v4925 = vrcp.pop %v4913
    %v4926 = vrcp.pop %v4916
    %v4927 = vrcp.pop %v4919
    %v4928 = vmul.f32 %v4881, %v4920
    %v4929 = vmul.f32 %v4883, %v4921
    %v4930 = vmul.f32 %v4885, %v4922
    %v4931 = vmul.f32 %v4887, %v4923
    %v4932 = vmul.f32 %v4889, %v4924
    %v4933 = vmul.f32 %v4891, %v4925
    %v4934 = vmul.f32 %v4893, %v4926
    %v4935 = vmul.f32 %v4895, %v4927
    %4936 = vrot.lane.b32.xlu0 %v143, 40
    %v4937 = vpop.permute.xlu0 %4936
    %v4940 = vsel %vm184, %v4928, 0
    %4942 = vmatprep.subr.mxu0 0.0
    %4943 = vmatpush1.msra.mxu0 0.0
    %4944 = vmatprep.subr.mxu0 0.0
    %4945 = vmatpush1.msra.mxu0 0.0
    %4946 = vmatprep.subr.mxu0 0.0
    %4947 = vmatpush1.msra.mxu0 0.0
    %4948 = vmatprep.subr.mxu0 0.0
    %4949 = vmatpush1.msra.mxu0 0.0
    %4950 = vmatprep.subr.mxu0 0.0
    %4951 = vmatpush1.msra.mxu0 0.0
    %4952 = vmatprep.subr.mxu0 0.0
    %4953 = vmatpush1.msra.mxu0 0.0
    %4954 = vmatprep.subr.mxu0 0.0
    %4955 = vmatpush1.msra.mxu0 0.0
    %4956 = vmatprep.subr.mxu0 0.0
    %4957 = vmatpush1.msra.mxu0 0.0
    %4958 = vmatprep.subr.mxu0 0.0
    %4959 = vmatpush1.msra.mxu0 0.0
    %4960 = vmatprep.subr.mxu0 0.0
    %4961 = vmatpush1.msra.mxu0 0.0
    %4962 = vmatprep.subr.mxu0 0.0
    %4963 = vmatpush1.msra.mxu0 0.0
    %4964 = vmatprep.subr.mxu0 0.0
    %4965 = vmatpush1.msra.mxu0 0.0
    %4966 = vmatprep.subr.mxu0 0.0
    %4967 = vmatpush1.msra.mxu0 0.0
    %4968 = vmatprep.subr.mxu0 0.0
    %4969 = vmatpush1.msra.mxu0 0.0
    %4970 = vmatprep.subr.mxu0 0.0
    %4971 = vmatpush1.msra.mxu0 0.0
    %4972 = vmatprep.subr.mxu0 0.0
    %4973 = vmatpush1.msra.mxu0 %v4937
    %4974 = vmatprep.subr.mxu0 0.0
    %4975 = vmatpush2.msra.mxu0 0.0
    %4976 = vmatprep.subr.mxu0 0.0
    %4977 = vmatpush2.msra.mxu0 0.0
    %4978 = vmatprep.subr.mxu0 0.0
    %4979 = vmatpush2.msra.mxu0 0.0
    %4980 = vmatprep.subr.mxu0 0.0
    %4981 = vmatpush2.msra.mxu0 0.0
    %4982 = vmatprep.subr.mxu0 0.0
    %4983 = vmatpush2.msra.mxu0 0.0
    %4984 = vmatprep.subr.mxu0 0.0
    %4985 = vmatpush2.msra.mxu0 0.0
    %4986 = vmatprep.subr.mxu0 0.0
    %4987 = vmatpush2.msra.mxu0 0.0
    %4988 = vmatprep.subr.mxu0 0.0
    %4989 = vmatpush2.msra.mxu0 0.0
    %4990 = vmatprep.subr.mxu0 0.0
    %4991 = vmatpush2.msra.mxu0 0.0
    %4992 = vmatprep.subr.mxu0 0.0
    %4993 = vmatpush2.msra.mxu0 0.0
    %4994 = vmatprep.subr.mxu0 0.0
    %4995 = vmatpush2.msra.mxu0 0.0
    %4996 = vmatprep.subr.mxu0 0.0
    %4997 = vmatpush2.msra.mxu0 0.0
    %4998 = vmatprep.subr.mxu0 0.0
    %4999 = vmatpush2.msra.mxu0 0.0
    %5000 = vmatprep.subr.mxu0 0.0
    %5001 = vmatpush2.msra.mxu0 0.0
    %5002 = vmatprep.subr.mxu0 0.0
    %5003 = vmatpush2.msra.mxu0 0.0
    %5004 = vmatprep.subr.mxu0 0.0
    %5005 = vmatpush2.msra.mxu0 0.0
    %5006 = vmatprep.mubr.f32.mxu0 0.0
    %5007 = vmatmul.mubr.f32.gmra.mxu0 %v4940
    %v5008 = vpop.f32.mrf.mxu0
    %v5009 = vadd.f32 0.0, %v5008
    %v5010 = vpop.f32.mrf.mxu0
    %5011 = vdwg.mxu0
    %5012 = vrot.lane.b32.xlu0 %v148, 40
    %v5013 = vpop.permute.xlu0 %5012
    %v5016 = vsel %vm184, %v4929, 0
    %5018 = vmatprep.subr.mxu0 0.0
    %5019 = vmatpush1.msra.mxu0 0.0
    %5020 = vmatprep.subr.mxu0 0.0
    %5021 = vmatpush1.msra.mxu0 0.0
    %5022 = vmatprep.subr.mxu0 0.0
    %5023 = vmatpush1.msra.mxu0 0.0
    %5024 = vmatprep.subr.mxu0 0.0
    %5025 = vmatpush1.msra.mxu0 0.0
    %5026 = vmatprep.subr.mxu0 0.0
    %5027 = vmatpush1.msra.mxu0 0.0
    %5028 = vmatprep.subr.mxu0 0.0
    %5029 = vmatpush1.msra.mxu0 0.0
    %5030 = vmatprep.subr.mxu0 0.0
    %5031 = vmatpush1.msra.mxu0 0.0
    %5032 = vmatprep.subr.mxu0 0.0
    %5033 = vmatpush1.msra.mxu0 0.0
    %5034 = vmatprep.subr.mxu0 0.0
    %5035 = vmatpush1.msra.mxu0 0.0
    %5036 = vmatprep.subr.mxu0 0.0
    %5037 = vmatpush1.msra.mxu0 0.0
    %5038 = vmatprep.subr.mxu0 0.0
    %5039 = vmatpush1.msra.mxu0 0.0
    %5040 = vmatprep.subr.mxu0 0.0
    %5041 = vmatpush1.msra.mxu0 0.0
    %5042 = vmatprep.subr.mxu0 0.0
    %5043 = vmatpush1.msra.mxu0 0.0
    %5044 = vmatprep.subr.mxu0 0.0
    %5045 = vmatpush1.msra.mxu0 0.0
    %5046 = vmatprep.subr.mxu0 0.0
    %5047 = vmatpush1.msra.mxu0 0.0
    %5048 = vmatprep.subr.mxu0 0.0
    %5049 = vmatpush1.msra.mxu0 %v5013
    %5050 = vmatprep.subr.mxu0 0.0
    %5051 = vmatpush2.msra.mxu0 0.0
    %5052 = vmatprep.subr.mxu0 0.0
    %5053 = vmatpush2.msra.mxu0 0.0
    %5054 = vmatprep.subr.mxu0 0.0
    %5055 = vmatpush2.msra.mxu0 0.0
    %5056 = vmatprep.subr.mxu0 0.0
    %5057 = vmatpush2.msra.mxu0 0.0
    %5058 = vmatprep.subr.mxu0 0.0
    %5059 = vmatpush2.msra.mxu0 0.0
    %5060 = vmatprep.subr.mxu0 0.0
    %5061 = vmatpush2.msra.mxu0 0.0
    %5062 = vmatprep.subr.mxu0 0.0
    %5063 = vmatpush2.msra.mxu0 0.0
    %5064 = vmatprep.subr.mxu0 0.0
    %5065 = vmatpush2.msra.mxu0 0.0
    %5066 = vmatprep.subr.mxu0 0.0
    %5067 = vmatpush2.msra.mxu0 0.0
    %5068 = vmatprep.subr.mxu0 0.0
    %5069 = vmatpush2.msra.mxu0 0.0
    %5070 = vmatprep.subr.mxu0 0.0
    %5071 = vmatpush2.msra.mxu0 0.0
    %5072 = vmatprep.subr.mxu0 0.0
    %5073 = vmatpush2.msra.mxu0 0.0
    %5074 = vmatprep.subr.mxu0 0.0
    %5075 = vmatpush2.msra.mxu0 0.0
    %5076 = vmatprep.subr.mxu0 0.0
    %5077 = vmatpush2.msra.mxu0 0.0
    %5078 = vmatprep.subr.mxu0 0.0
    %5079 = vmatpush2.msra.mxu0 0.0
    %5080 = vmatprep.subr.mxu0 0.0
    %5081 = vmatpush2.msra.mxu0 0.0
    %5082 = vmatprep.mubr.f32.mxu0 0.0
    %5083 = vmatmul.mubr.f32.gmra.mxu0 %v5016
    %v5084 = vpop.f32.mrf.mxu0
    %v5085 = vadd.f32 0.0, %v5084
    %v5086 = vpop.f32.mrf.mxu0
    %5087 = vdwg.mxu0
    %5088 = vrot.lane.b32.xlu0 %v153, 40
    %v5089 = vpop.permute.xlu0 %5088
    %v5092 = vsel %vm184, %v4930, 0
    %5094 = vmatprep.subr.mxu0 0.0
    %5095 = vmatpush1.msra.mxu0 0.0
    %5096 = vmatprep.subr.mxu0 0.0
    %5097 = vmatpush1.msra.mxu0 0.0
    %5098 = vmatprep.subr.mxu0 0.0
    %5099 = vmatpush1.msra.mxu0 0.0
    %5100 = vmatprep.subr.mxu0 0.0
    %5101 = vmatpush1.msra.mxu0 0.0
    %5102 = vmatprep.subr.mxu0 0.0
    %5103 = vmatpush1.msra.mxu0 0.0
    %5104 = vmatprep.subr.mxu0 0.0
    %5105 = vmatpush1.msra.mxu0 0.0
    %5106 = vmatprep.subr.mxu0 0.0
    %5107 = vmatpush1.msra.mxu0 0.0
    %5108 = vmatprep.subr.mxu0 0.0
    %5109 = vmatpush1.msra.mxu0 0.0
    %5110 = vmatprep.subr.mxu0 0.0
    %5111 = vmatpush1.msra.mxu0 0.0
    %5112 = vmatprep.subr.mxu0 0.0
    %5113 = vmatpush1.msra.mxu0 0.0
    %5114 = vmatprep.subr.mxu0 0.0
    %5115 = vmatpush1.msra.mxu0 0.0
    %5116 = vmatprep.subr.mxu0 0.0
    %5117 = vmatpush1.msra.mxu0 0.0
    %5118 = vmatprep.subr.mxu0 0.0
    %5119 = vmatpush1.msra.mxu0 0.0
    %5120 = vmatprep.subr.mxu0 0.0
    %5121 = vmatpush1.msra.mxu0 0.0
    %5122 = vmatprep.subr.mxu0 0.0
    %5123 = vmatpush1.msra.mxu0 0.0
    %5124 = vmatprep.subr.mxu0 0.0
    %5125 = vmatpush1.msra.mxu0 %v5089
    %5126 = vmatprep.subr.mxu0 0.0
    %5127 = vmatpush2.msra.mxu0 0.0
    %5128 = vmatprep.subr.mxu0 0.0
    %5129 = vmatpush2.msra.mxu0 0.0
    %5130 = vmatprep.subr.mxu0 0.0
    %5131 = vmatpush2.msra.mxu0 0.0
    %5132 = vmatprep.subr.mxu0 0.0
    %5133 = vmatpush2.msra.mxu0 0.0
    %5134 = vmatprep.subr.mxu0 0.0
    %5135 = vmatpush2.msra.mxu0 0.0
    %5136 = vmatprep.subr.mxu0 0.0
    %5137 = vmatpush2.msra.mxu0 0.0
    %5138 = vmatprep.subr.mxu0 0.0
    %5139 = vmatpush2.msra.mxu0 0.0
    %5140 = vmatprep.subr.mxu0 0.0
    %5141 = vmatpush2.msra.mxu0 0.0
    %5142 = vmatprep.subr.mxu0 0.0
    %5143 = vmatpush2.msra.mxu0 0.0
    %5144 = vmatprep.subr.mxu0 0.0
    %5145 = vmatpush2.msra.mxu0 0.0
    %5146 = vmatprep.subr.mxu0 0.0
    %5147 = vmatpush2.msra.mxu0 0.0
    %5148 = vmatprep.subr.mxu0 0.0
    %5149 = vmatpush2.msra.mxu0 0.0
    %5150 = vmatprep.subr.mxu0 0.0
    %5151 = vmatpush2.msra.mxu0 0.0
    %5152 = vmatprep.subr.mxu0 0.0
    %5153 = vmatpush2.msra.mxu0 0.0
    %5154 = vmatprep.subr.mxu0 0.0
    %5155 = vmatpush2.msra.mxu0 0.0
    %5156 = vmatprep.subr.mxu0 0.0
    %5157 = vmatpush2.msra.mxu0 0.0
    %5158 = vmatprep.mubr.f32.mxu0 0.0
    %5159 = vmatmul.mubr.f32.gmra.mxu0 %v5092
    %v5160 = vpop.f32.mrf.mxu0
    %v5161 = vadd.f32 0.0, %v5160
    %v5162 = vpop.f32.mrf.mxu0
    %5163 = vdwg.mxu0
    %5164 = vrot.lane.b32.xlu0 %v158, 40
    %v5165 = vpop.permute.xlu0 %5164
    %v5168 = vsel %vm184, %v4931, 0
    %5170 = vmatprep.subr.mxu0 0.0
    %5171 = vmatpush1.msra.mxu0 0.0
    %5172 = vmatprep.subr.mxu0 0.0
    %5173 = vmatpush1.msra.mxu0 0.0
    %5174 = vmatprep.subr.mxu0 0.0
    %5175 = vmatpush1.msra.mxu0 0.0
    %5176 = vmatprep.subr.mxu0 0.0
    %5177 = vmatpush1.msra.mxu0 0.0
    %5178 = vmatprep.subr.mxu0 0.0
    %5179 = vmatpush1.msra.mxu0 0.0
    %5180 = vmatprep.subr.mxu0 0.0
    %5181 = vmatpush1.msra.mxu0 0.0
    %5182 = vmatprep.subr.mxu0 0.0
    %5183 = vmatpush1.msra.mxu0 0.0
    %5184 = vmatprep.subr.mxu0 0.0
    %5185 = vmatpush1.msra.mxu0 0.0
    %5186 = vmatprep.subr.mxu0 0.0
    %5187 = vmatpush1.msra.mxu0 0.0
    %5188 = vmatprep.subr.mxu0 0.0
    %5189 = vmatpush1.msra.mxu0 0.0
    %5190 = vmatprep.subr.mxu0 0.0
    %5191 = vmatpush1.msra.mxu0 0.0
    %5192 = vmatprep.subr.mxu0 0.0
    %5193 = vmatpush1.msra.mxu0 0.0
    %5194 = vmatprep.subr.mxu0 0.0
    %5195 = vmatpush1.msra.mxu0 0.0
    %5196 = vmatprep.subr.mxu0 0.0
    %5197 = vmatpush1.msra.mxu0 0.0
    %5198 = vmatprep.subr.mxu0 0.0
    %5199 = vmatpush1.msra.mxu0 0.0
    %5200 = vmatprep.subr.mxu0 0.0
    %5201 = vmatpush1.msra.mxu0 %v5165
    %5202 = vmatprep.subr.mxu0 0.0
    %5203 = vmatpush2.msra.mxu0 0.0
    %5204 = vmatprep.subr.mxu0 0.0
    %5205 = vmatpush2.msra.mxu0 0.0
    %5206 = vmatprep.subr.mxu0 0.0
    %5207 = vmatpush2.msra.mxu0 0.0
    %5208 = vmatprep.subr.mxu0 0.0
    %5209 = vmatpush2.msra.mxu0 0.0
    %5210 = vmatprep.subr.mxu0 0.0
    %5211 = vmatpush2.msra.mxu0 0.0
    %5212 = vmatprep.subr.mxu0 0.0
    %5213 = vmatpush2.msra.mxu0 0.0
    %5214 = vmatprep.subr.mxu0 0.0
    %5215 = vmatpush2.msra.mxu0 0.0
    %5216 = vmatprep.subr.mxu0 0.0
    %5217 = vmatpush2.msra.mxu0 0.0
    %5218 = vmatprep.subr.mxu0 0.0
    %5219 = vmatpush2.msra.mxu0 0.0
    %5220 = vmatprep.subr.mxu0 0.0
    %5221 = vmatpush2.msra.mxu0 0.0
    %5222 = vmatprep.subr.mxu0 0.0
    %5223 = vmatpush2.msra.mxu0 0.0
    %5224 = vmatprep.subr.mxu0 0.0
    %5225 = vmatpush2.msra.mxu0 0.0
    %5226 = vmatprep.subr.mxu0 0.0
    %5227 = vmatpush2.msra.mxu0 0.0
    %5228 = vmatprep.subr.mxu0 0.0
    %5229 = vmatpush2.msra.mxu0 0.0
    %5230 = vmatprep.subr.mxu0 0.0
    %5231 = vmatpush2.msra.mxu0 0.0
    %5232 = vmatprep.subr.mxu0 0.0
    %5233 = vmatpush2.msra.mxu0 0.0
    %5234 = vmatprep.mubr.f32.mxu0 0.0
    %5235 = vmatmul.mubr.f32.gmra.mxu0 %v5168
    %v5236 = vpop.f32.mrf.mxu0
    %v5237 = vadd.f32 0.0, %v5236
    %v5238 = vpop.f32.mrf.mxu0
    %5239 = vdwg.mxu0
    %5240 = vrot.lane.b32.xlu0 %v163, 40
    %v5241 = vpop.permute.xlu0 %5240
    %v5244 = vsel %vm184, %v4932, 0
    %5246 = vmatprep.subr.mxu0 0.0
    %5247 = vmatpush1.msra.mxu0 0.0
    %5248 = vmatprep.subr.mxu0 0.0
    %5249 = vmatpush1.msra.mxu0 0.0
    %5250 = vmatprep.subr.mxu0 0.0
    %5251 = vmatpush1.msra.mxu0 0.0
    %5252 = vmatprep.subr.mxu0 0.0
    %5253 = vmatpush1.msra.mxu0 0.0
    %5254 = vmatprep.subr.mxu0 0.0
    %5255 = vmatpush1.msra.mxu0 0.0
    %5256 = vmatprep.subr.mxu0 0.0
    %5257 = vmatpush1.msra.mxu0 0.0
    %5258 = vmatprep.subr.mxu0 0.0
    %5259 = vmatpush1.msra.mxu0 0.0
    %5260 = vmatprep.subr.mxu0 0.0
    %5261 = vmatpush1.msra.mxu0 0.0
    %5262 = vmatprep.subr.mxu0 0.0
    %5263 = vmatpush1.msra.mxu0 0.0
    %5264 = vmatprep.subr.mxu0 0.0
    %5265 = vmatpush1.msra.mxu0 0.0
    %5266 = vmatprep.subr.mxu0 0.0
    %5267 = vmatpush1.msra.mxu0 0.0
    %5268 = vmatprep.subr.mxu0 0.0
    %5269 = vmatpush1.msra.mxu0 0.0
    %5270 = vmatprep.subr.mxu0 0.0
    %5271 = vmatpush1.msra.mxu0 0.0
    %5272 = vmatprep.subr.mxu0 0.0
    %5273 = vmatpush1.msra.mxu0 0.0
    %5274 = vmatprep.subr.mxu0 0.0
    %5275 = vmatpush1.msra.mxu0 0.0
    %5276 = vmatprep.subr.mxu0 0.0
    %5277 = vmatpush1.msra.mxu0 %v5241
    %5278 = vmatprep.subr.mxu0 0.0
    %5279 = vmatpush2.msra.mxu0 0.0
    %5280 = vmatprep.subr.mxu0 0.0
    %5281 = vmatpush2.msra.mxu0 0.0
    %5282 = vmatprep.subr.mxu0 0.0
    %5283 = vmatpush2.msra.mxu0 0.0
    %5284 = vmatprep.subr.mxu0 0.0
    %5285 = vmatpush2.msra.mxu0 0.0
    %5286 = vmatprep.subr.mxu0 0.0
    %5287 = vmatpush2.msra.mxu0 0.0
    %5288 = vmatprep.subr.mxu0 0.0
    %5289 = vmatpush2.msra.mxu0 0.0
    %5290 = vmatprep.subr.mxu0 0.0
    %5291 = vmatpush2.msra.mxu0 0.0
    %5292 = vmatprep.subr.mxu0 0.0
    %5293 = vmatpush2.msra.mxu0 0.0
    %5294 = vmatprep.subr.mxu0 0.0
    %5295 = vmatpush2.msra.mxu0 0.0
    %5296 = vmatprep.subr.mxu0 0.0
    %5297 = vmatpush2.msra.mxu0 0.0
    %5298 = vmatprep.subr.mxu0 0.0
    %5299 = vmatpush2.msra.mxu0 0.0
    %5300 = vmatprep.subr.mxu0 0.0
    %5301 = vmatpush2.msra.mxu0 0.0
    %5302 = vmatprep.subr.mxu0 0.0
    %5303 = vmatpush2.msra.mxu0 0.0
    %5304 = vmatprep.subr.mxu0 0.0
    %5305 = vmatpush2.msra.mxu0 0.0
    %5306 = vmatprep.subr.mxu0 0.0
    %5307 = vmatpush2.msra.mxu0 0.0
    %5308 = vmatprep.subr.mxu0 0.0
    %5309 = vmatpush2.msra.mxu0 0.0
    %5310 = vmatprep.mubr.f32.mxu0 0.0
    %5311 = vmatmul.mubr.f32.gmra.mxu0 %v5244
    %v5312 = vpop.f32.mrf.mxu0
    %v5313 = vadd.f32 0.0, %v5312
    %v5314 = vpop.f32.mrf.mxu0
    %5315 = vdwg.mxu0
    %5316 = vrot.lane.b32.xlu0 %v168, 40
    %v5317 = vpop.permute.xlu0 %5316
    %v5320 = vsel %vm184, %v4933, 0
    %5322 = vmatprep.subr.mxu0 0.0
    %5323 = vmatpush1.msra.mxu0 0.0
    %5324 = vmatprep.subr.mxu0 0.0
    %5325 = vmatpush1.msra.mxu0 0.0
    %5326 = vmatprep.subr.mxu0 0.0
    %5327 = vmatpush1.msra.mxu0 0.0
    %5328 = vmatprep.subr.mxu0 0.0
    %5329 = vmatpush1.msra.mxu0 0.0
    %5330 = vmatprep.subr.mxu0 0.0
    %5331 = vmatpush1.msra.mxu0 0.0
    %5332 = vmatprep.subr.mxu0 0.0
    %5333 = vmatpush1.msra.mxu0 0.0
    %5334 = vmatprep.subr.mxu0 0.0
    %5335 = vmatpush1.msra.mxu0 0.0
    %5336 = vmatprep.subr.mxu0 0.0
    %5337 = vmatpush1.msra.mxu0 0.0
    %5338 = vmatprep.subr.mxu0 0.0
    %5339 = vmatpush1.msra.mxu0 0.0
    %5340 = vmatprep.subr.mxu0 0.0
    %5341 = vmatpush1.msra.mxu0 0.0
    %5342 = vmatprep.subr.mxu0 0.0
    %5343 = vmatpush1.msra.mxu0 0.0
    %5344 = vmatprep.subr.mxu0 0.0
    %5345 = vmatpush1.msra.mxu0 0.0
    %5346 = vmatprep.subr.mxu0 0.0
    %5347 = vmatpush1.msra.mxu0 0.0
    %5348 = vmatprep.subr.mxu0 0.0
    %5349 = vmatpush1.msra.mxu0 0.0
    %5350 = vmatprep.subr.mxu0 0.0
    %5351 = vmatpush1.msra.mxu0 0.0
    %5352 = vmatprep.subr.mxu0 0.0
    %5353 = vmatpush1.msra.mxu0 %v5317
    %5354 = vmatprep.subr.mxu0 0.0
    %5355 = vmatpush2.msra.mxu0 0.0
    %5356 = vmatprep.subr.mxu0 0.0
    %5357 = vmatpush2.msra.mxu0 0.0
    %5358 = vmatprep.subr.mxu0 0.0
    %5359 = vmatpush2.msra.mxu0 0.0
    %5360 = vmatprep.subr.mxu0 0.0
    %5361 = vmatpush2.msra.mxu0 0.0
    %5362 = vmatprep.subr.mxu0 0.0
    %5363 = vmatpush2.msra.mxu0 0.0
    %5364 = vmatprep.subr.mxu0 0.0
    %5365 = vmatpush2.msra.mxu0 0.0
    %5366 = vmatprep.subr.mxu0 0.0
    %5367 = vmatpush2.msra.mxu0 0.0
    %5368 = vmatprep.subr.mxu0 0.0
    %5369 = vmatpush2.msra.mxu0 0.0
    %5370 = vmatprep.subr.mxu0 0.0
    %5371 = vmatpush2.msra.mxu0 0.0
    %5372 = vmatprep.subr.mxu0 0.0
    %5373 = vmatpush2.msra.mxu0 0.0
    %5374 = vmatprep.subr.mxu0 0.0
    %5375 = vmatpush2.msra.mxu0 0.0
    %5376 = vmatprep.subr.mxu0 0.0
    %5377 = vmatpush2.msra.mxu0 0.0
    %5378 = vmatprep.subr.mxu0 0.0
    %5379 = vmatpush2.msra.mxu0 0.0
    %5380 = vmatprep.subr.mxu0 0.0
    %5381 = vmatpush2.msra.mxu0 0.0
    %5382 = vmatprep.subr.mxu0 0.0
    %5383 = vmatpush2.msra.mxu0 0.0
    %5384 = vmatprep.subr.mxu0 0.0
    %5385 = vmatpush2.msra.mxu0 0.0
    %5386 = vmatprep.mubr.f32.mxu0 0.0
    %5387 = vmatmul.mubr.f32.gmra.mxu0 %v5320
    %v5388 = vpop.f32.mrf.mxu0
    %v5389 = vadd.f32 0.0, %v5388
    %v5390 = vpop.f32.mrf.mxu0
    %5391 = vdwg.mxu0
    %5392 = vrot.lane.b32.xlu0 %v173, 40
    %v5393 = vpop.permute.xlu0 %5392
    %v5396 = vsel %vm184, %v4934, 0
    %5398 = vmatprep.subr.mxu0 0.0
    %5399 = vmatpush1.msra.mxu0 0.0
    %5400 = vmatprep.subr.mxu0 0.0
    %5401 = vmatpush1.msra.mxu0 0.0
    %5402 = vmatprep.subr.mxu0 0.0
    %5403 = vmatpush1.msra.mxu0 0.0
    %5404 = vmatprep.subr.mxu0 0.0
    %5405 = vmatpush1.msra.mxu0 0.0
    %5406 = vmatprep.subr.mxu0 0.0
    %5407 = vmatpush1.msra.mxu0 0.0
    %5408 = vmatprep.subr.mxu0 0.0
    %5409 = vmatpush1.msra.mxu0 0.0
    %5410 = vmatprep.subr.mxu0 0.0
    %5411 = vmatpush1.msra.mxu0 0.0
    %5412 = vmatprep.subr.mxu0 0.0
    %5413 = vmatpush1.msra.mxu0 0.0
    %5414 = vmatprep.subr.mxu0 0.0
    %5415 = vmatpush1.msra.mxu0 0.0
    %5416 = vmatprep.subr.mxu0 0.0
    %5417 = vmatpush1.msra.mxu0 0.0
    %5418 = vmatprep.subr.mxu0 0.0
    %5419 = vmatpush1.msra.mxu0 0.0
    %5420 = vmatprep.subr.mxu0 0.0
    %5421 = vmatpush1.msra.mxu0 0.0
    %5422 = vmatprep.subr.mxu0 0.0
    %5423 = vmatpush1.msra.mxu0 0.0
    %5424 = vmatprep.subr.mxu0 0.0
    %5425 = vmatpush1.msra.mxu0 0.0
    %5426 = vmatprep.subr.mxu0 0.0
    %5427 = vmatpush1.msra.mxu0 0.0
    %5428 = vmatprep.subr.mxu0 0.0
    %5429 = vmatpush1.msra.mxu0 %v5393
    %5430 = vmatprep.subr.mxu0 0.0
    %5431 = vmatpush2.msra.mxu0 0.0
    %5432 = vmatprep.subr.mxu0 0.0
    %5433 = vmatpush2.msra.mxu0 0.0
    %5434 = vmatprep.subr.mxu0 0.0
    %5435 = vmatpush2.msra.mxu0 0.0
    %5436 = vmatprep.subr.mxu0 0.0
    %5437 = vmatpush2.msra.mxu0 0.0
    %5438 = vmatprep.subr.mxu0 0.0
    %5439 = vmatpush2.msra.mxu0 0.0
    %5440 = vmatprep.subr.mxu0 0.0
    %5441 = vmatpush2.msra.mxu0 0.0
    %5442 = vmatprep.subr.mxu0 0.0
    %5443 = vmatpush2.msra.mxu0 0.0
    %5444 = vmatprep.subr.mxu0 0.0
    %5445 = vmatpush2.msra.mxu0 0.0
    %5446 = vmatprep.subr.mxu0 0.0
    %5447 = vmatpush2.msra.mxu0 0.0
    %5448 = vmatprep.subr.mxu0 0.0
    %5449 = vmatpush2.msra.mxu0 0.0
    %5450 = vmatprep.subr.mxu0 0.0
    %5451 = vmatpush2.msra.mxu0 0.0
    %5452 = vmatprep.subr.mxu0 0.0
    %5453 = vmatpush2.msra.mxu0 0.0
    %5454 = vmatprep.subr.mxu0 0.0
    %5455 = vmatpush2.msra.mxu0 0.0
    %5456 = vmatprep.subr.mxu0 0.0
    %5457 = vmatpush2.msra.mxu0 0.0
    %5458 = vmatprep.subr.mxu0 0.0
    %5459 = vmatpush2.msra.mxu0 0.0
    %5460 = vmatprep.subr.mxu0 0.0
    %5461 = vmatpush2.msra.mxu0 0.0
    %5462 = vmatprep.mubr.f32.mxu0 0.0
    %5463 = vmatmul.mubr.f32.gmra.mxu0 %v5396
    %v5464 = vpop.f32.mrf.mxu0
    %v5465 = vadd.f32 0.0, %v5464
    %v5466 = vpop.f32.mrf.mxu0
    %5467 = vdwg.mxu0
    %5468 = vrot.lane.b32.xlu0 %v178, 40
    %v5469 = vpop.permute.xlu0 %5468
    %v5472 = vsel %vm184, %v4935, 0
    %5474 = vmatprep.subr.mxu0 0.0
    %5475 = vmatpush1.msra.mxu0 0.0
    %5476 = vmatprep.subr.mxu0 0.0
    %5477 = vmatpush1.msra.mxu0 0.0
    %5478 = vmatprep.subr.mxu0 0.0
    %5479 = vmatpush1.msra.mxu0 0.0
    %5480 = vmatprep.subr.mxu0 0.0
    %5481 = vmatpush1.msra.mxu0 0.0
    %5482 = vmatprep.subr.mxu0 0.0
    %5483 = vmatpush1.msra.mxu0 0.0
    %5484 = vmatprep.subr.mxu0 0.0
    %5485 = vmatpush1.msra.mxu0 0.0
    %5486 = vmatprep.subr.mxu0 0.0
    %5487 = vmatpush1.msra.mxu0 0.0
    %5488 = vmatprep.subr.mxu0 0.0
    %5489 = vmatpush1.msra.mxu0 0.0
    %5490 = vmatprep.subr.mxu0 0.0
    %5491 = vmatpush1.msra.mxu0 0.0
    %5492 = vmatprep.subr.mxu0 0.0
    %5493 = vmatpush1.msra.mxu0 0.0
    %5494 = vmatprep.subr.mxu0 0.0
    %5495 = vmatpush1.msra.mxu0 0.0
    %5496 = vmatprep.subr.mxu0 0.0
    %5497 = vmatpush1.msra.mxu0 0.0
    %5498 = vmatprep.subr.mxu0 0.0
    %5499 = vmatpush1.msra.mxu0 0.0
    %5500 = vmatprep.subr.mxu0 0.0
    %5501 = vmatpush1.msra.mxu0 0.0
    %5502 = vmatprep.subr.mxu0 0.0
    %5503 = vmatpush1.msra.mxu0 0.0
    %5504 = vmatprep.subr.mxu0 0.0
    %5505 = vmatpush1.msra.mxu0 %v5469
    %5506 = vmatprep.subr.mxu0 0.0
    %5507 = vmatpush2.msra.mxu0 0.0
    %5508 = vmatprep.subr.mxu0 0.0
    %5509 = vmatpush2.msra.mxu0 0.0
    %5510 = vmatprep.subr.mxu0 0.0
    %5511 = vmatpush2.msra.mxu0 0.0
    %5512 = vmatprep.subr.mxu0 0.0
    %5513 = vmatpush2.msra.mxu0 0.0
    %5514 = vmatprep.subr.mxu0 0.0
    %5515 = vmatpush2.msra.mxu0 0.0
    %5516 = vmatprep.subr.mxu0 0.0
    %5517 = vmatpush2.msra.mxu0 0.0
    %5518 = vmatprep.subr.mxu0 0.0
    %5519 = vmatpush2.msra.mxu0 0.0
    %5520 = vmatprep.subr.mxu0 0.0
    %5521 = vmatpush2.msra.mxu0 0.0
    %5522 = vmatprep.subr.mxu0 0.0
    %5523 = vmatpush2.msra.mxu0 0.0
    %5524 = vmatprep.subr.mxu0 0.0
    %5525 = vmatpush2.msra.mxu0 0.0
    %5526 = vmatprep.subr.mxu0 0.0
    %5527 = vmatpush2.msra.mxu0 0.0
    %5528 = vmatprep.subr.mxu0 0.0
    %5529 = vmatpush2.msra.mxu0 0.0
    %5530 = vmatprep.subr.mxu0 0.0
    %5531 = vmatpush2.msra.mxu0 0.0
    %5532 = vmatprep.subr.mxu0 0.0
    %5533 = vmatpush2.msra.mxu0 0.0
    %5534 = vmatprep.subr.mxu0 0.0
    %5535 = vmatpush2.msra.mxu0 0.0
    %5536 = vmatprep.subr.mxu0 0.0
    %5537 = vmatpush2.msra.mxu0 0.0
    %5538 = vmatprep.mubr.f32.mxu0 0.0
    %5539 = vmatmul.mubr.f32.gmra.mxu0 %v5472
    %v5540 = vpop.f32.mrf.mxu0
    %v5541 = vadd.f32 0.0, %v5540
    %v5542 = vpop.f32.mrf.mxu0
    %5543 = vdwg.mxu0
    %5552 = vrot.lane.b32.xlu0 %v5009, 24
    %v5553 = vpop.permute.xlu0 %5552
    %5554 = vrot.lane.b32.xlu0 %v5085, 24
    %v5555 = vpop.permute.xlu0 %5554
    %5556 = vrot.lane.b32.xlu0 %v5161, 24
    %v5557 = vpop.permute.xlu0 %5556
    %5558 = vrot.lane.b32.xlu0 %v5237, 24
    %v5559 = vpop.permute.xlu0 %5558
    %5560 = vrot.lane.b32.xlu0 %v5313, 24
    %v5561 = vpop.permute.xlu0 %5560
    %5562 = vrot.lane.b32.xlu0 %v5389, 24
    %v5563 = vpop.permute.xlu0 %5562
    %5564 = vrot.lane.b32.xlu0 %v5465, 24
    %v5565 = vpop.permute.xlu0 %5564
    %5566 = vrot.lane.b32.xlu0 %v5541, 24
    %v5567 = vpop.permute.xlu0 %5566
    %vm5576 = vcmask 261312
    %5577 = vst.msk [vmem:[#allocation2] sm:$0xff] %vm5576, %v5553
    %5578 = vst.msk [vmem:[#allocation2 + $0x8] sm:$0xff] %vm5576, %v5555
    %5579 = vst.msk [vmem:[#allocation2 + $0x10] sm:$0xff] %vm5576, %v5557
    %5580 = vst.msk [vmem:[#allocation2 + $0x18] sm:$0xff] %vm5576, %v5559
    %5581 = vst.msk [vmem:[#allocation2 + $0x20] sm:$0xff] %vm5576, %v5561
    %5582 = vst.msk [vmem:[#allocation2 + $0x28] sm:$0xff] %vm5576, %v5563
    %5583 = vst.msk [vmem:[#allocation2 + $0x30] sm:$0xff] %vm5576, %v5565
    %5584 = vst.msk [vmem:[#allocation2 + $0x38] sm:$0xff] %vm5576, %v5567
    %v5585 = vld [vmem:[#allocation2] sm:$0xff]
    %v5586 = vld [vmem:[#allocation2 + $0x8] sm:$0xff]
    %v5587 = vld [vmem:[#allocation2 + $0x10] sm:$0xff]
    %v5588 = vld [vmem:[#allocation2 + $0x18] sm:$0xff]
    %v5589 = vld [vmem:[#allocation2 + $0x20] sm:$0xff]
    %v5590 = vld [vmem:[#allocation2 + $0x28] sm:$0xff]
    %v5591 = vld [vmem:[#allocation2 + $0x30] sm:$0xff]
    %v5592 = vld [vmem:[#allocation2 + $0x38] sm:$0xff]
    %v5593 = vld [vmem:[%s2] sm:$0xff]
    %v5594 = vld [vmem:[%s2 + $0x8] sm:$0xff]
    %v5595 = vld [vmem:[%s2 + $0x10] sm:$0xff]
    %v5596 = vld [vmem:[%s2 + $0x18] sm:$0xff]
    %v5598 = vsel %vm51, %v5585, 0
    %v5601 = vsel %vm51, %v5586, 0
    %v5604 = vsel %vm51, %v5587, 0
    %v5607 = vsel %vm51, %v5588, 0
    %v5610 = vsel %vm51, %v5589, 0
    %v5613 = vsel %vm51, %v5590, 0
    %v5616 = vsel %vm51, %v5591, 0
    %v5619 = vsel %vm51, %v5592, 0
    %5621 = vmatprep.subr.mxu0 0.0
    %5622 = vmatpush1.msra.mxu0 0.0
    %5623 = vmatprep.subr.mxu0 0.0
    %5624 = vmatpush1.msra.mxu0 0.0
    %5625 = vmatprep.subr.mxu0 0.0
    %5626 = vmatpush1.msra.mxu0 0.0
    %5627 = vmatprep.subr.mxu0 0.0
    %5628 = vmatpush1.msra.mxu0 0.0
    %5629 = vmatprep.subr.mxu0 0.0
    %5630 = vmatpush1.msra.mxu0 0.0
    %5631 = vmatprep.subr.mxu0 0.0
    %5632 = vmatpush1.msra.mxu0 0.0
    %5633 = vmatprep.subr.mxu0 0.0
    %5634 = vmatpush1.msra.mxu0 0.0
    %5635 = vmatprep.subr.mxu0 0.0
    %5636 = vmatpush1.msra.mxu0 0.0
    %5637 = vmatprep.subr.mxu0 0.0
    %5638 = vmatpush1.msra.mxu0 0.0
    %5639 = vmatprep.subr.mxu0 0.0
    %5640 = vmatpush1.msra.mxu0 0.0
    %5641 = vmatprep.subr.mxu0 0.0
    %5642 = vmatpush1.msra.mxu0 0.0
    %5643 = vmatprep.subr.mxu0 0.0
    %5644 = vmatpush1.msra.mxu0 0.0
    %5645 = vmatprep.subr.mxu0 0.0
    %5646 = vmatpush1.msra.mxu0 %v5596
    %5647 = vmatprep.subr.mxu0 0.0
    %5648 = vmatpush1.msra.mxu0 %v5595
    %5649 = vmatprep.subr.mxu0 0.0
    %5650 = vmatpush1.msra.mxu0 %v5594
    %5651 = vmatprep.subr.mxu0 0.0
    %5652 = vmatpush1.msra.mxu0 %v5593
    %5653 = vmatprep.subr.mxu0 0.0
    %5654 = vmatpush2.msra.mxu0 0.0
    %5655 = vmatprep.subr.mxu0 0.0
    %5656 = vmatpush2.msra.mxu0 0.0
    %5657 = vmatprep.subr.mxu0 0.0
    %5658 = vmatpush2.msra.mxu0 0.0
    %5659 = vmatprep.subr.mxu0 0.0
    %5660 = vmatpush2.msra.mxu0 0.0
    %5661 = vmatprep.subr.mxu0 0.0
    %5662 = vmatpush2.msra.mxu0 0.0
    %5663 = vmatprep.subr.mxu0 0.0
    %5664 = vmatpush2.msra.mxu0 0.0
    %5665 = vmatprep.subr.mxu0 0.0
    %5666 = vmatpush2.msra.mxu0 0.0
    %5667 = vmatprep.subr.mxu0 0.0
    %5668 = vmatpush2.msra.mxu0 0.0
    %5669 = vmatprep.subr.mxu0 0.0
    %5670 = vmatpush2.msra.mxu0 0.0
    %5671 = vmatprep.subr.mxu0 0.0
    %5672 = vmatpush2.msra.mxu0 0.0
    %5673 = vmatprep.subr.mxu0 0.0
    %5674 = vmatpush2.msra.mxu0 0.0
    %5675 = vmatprep.subr.mxu0 0.0
    %5676 = vmatpush2.msra.mxu0 0.0
    %5677 = vmatprep.subr.mxu0 0.0
    %5678 = vmatpush2.msra.mxu0 0.0
    %5679 = vmatprep.subr.mxu0 0.0
    %5680 = vmatpush2.msra.mxu0 0.0
    %5681 = vmatprep.subr.mxu0 0.0
    %5682 = vmatpush2.msra.mxu0 0.0
    %5683 = vmatprep.subr.mxu0 0.0
    %5684 = vmatpush2.msra.mxu0 0.0
    %5685 = vmatprep.mubr.f32.mxu0 0.0
    %5686 = vmatmul.mubr.f32.gmra.mxu0 %v5598
    %v5687 = vpop.f32.mrf.mxu0
    %v5688 = vadd.f32 0.0, %v5687
    %v5689 = vpop.f32.mrf.mxu0
    %5690 = vmatprep.mubr.f32.mxu0 0.0
    %5691 = vmatmul.mubr.f32.gmra.mxu0 %v5601
    %v5692 = vpop.f32.mrf.mxu0
    %v5693 = vadd.f32 0.0, %v5692
    %v5694 = vpop.f32.mrf.mxu0
    %5695 = vmatprep.mubr.f32.mxu0 0.0
    %5696 = vmatmul.mubr.f32.gmra.mxu0 %v5604
    %v5697 = vpop.f32.mrf.mxu0
    %v5698 = vadd.f32 0.0, %v5697
    %v5699 = vpop.f32.mrf.mxu0
    %5700 = vmatprep.mubr.f32.mxu0 0.0
    %5701 = vmatmul.mubr.f32.gmra.mxu0 %v5607
    %v5702 = vpop.f32.mrf.mxu0
    %v5703 = vadd.f32 0.0, %v5702
    %v5704 = vpop.f32.mrf.mxu0
    %5705 = vmatprep.mubr.f32.mxu0 0.0
    %5706 = vmatmul.mubr.f32.gmra.mxu0 %v5610
    %v5707 = vpop.f32.mrf.mxu0
    %v5708 = vadd.f32 0.0, %v5707
    %v5709 = vpop.f32.mrf.mxu0
    %5710 = vmatprep.mubr.f32.mxu0 0.0
    %5711 = vmatmul.mubr.f32.gmra.mxu0 %v5613
    %v5712 = vpop.f32.mrf.mxu0
    %v5713 = vadd.f32 0.0, %v5712
    %v5714 = vpop.f32.mrf.mxu0
    %5715 = vmatprep.mubr.f32.mxu0 0.0
    %5716 = vmatmul.mubr.f32.gmra.mxu0 %v5616
    %v5717 = vpop.f32.mrf.mxu0
    %v5718 = vadd.f32 0.0, %v5717
    %v5719 = vpop.f32.mrf.mxu0
    %5720 = vmatprep.mubr.f32.mxu0 0.0
    %5721 = vmatmul.mubr.f32.gmra.mxu0 %v5619
    %v5722 = vpop.f32.mrf.mxu0
    %v5723 = vadd.f32 0.0, %v5722
    %v5724 = vpop.f32.mrf.mxu0
    %5725 = vdwg.mxu0
    %v5726 = vadd.f32 %v39, %v5688
    %v5727 = vadd.f32 %v40, %v5693
    %v5728 = vadd.f32 %v41, %v5698
    %v5729 = vadd.f32 %v42, %v5703
    %v5730 = vadd.f32 %v43, %v5708
    %v5731 = vadd.f32 %v44, %v5713
    %v5732 = vadd.f32 %v45, %v5718
    %v5733 = vadd.f32 %v46, %v5723
    %v5734 = vld [vmem:[%s7] sm:$0xff]
    %v5735 = vld [vmem:[%s7 + $0x8] sm:$0xff]
    %v5736 = vld [vmem:[%s7 + $0x10] sm:$0xff]
    %v5737 = vld [vmem:[%s7 + $0x18] sm:$0xff]
    %v5738 = vld [vmem:[%s7 + $0x20] sm:$0xff]
    %v5739 = vld [vmem:[%s7 + $0x28] sm:$0xff]
    %v5740 = vld [vmem:[%s7 + $0x30] sm:$0xff]
    %v5741 = vld [vmem:[%s7 + $0x38] sm:$0xff]
    %v5742 = vmul.f32 %v5726, %v5734
    %v5743 = vmul.f32 %v5727, %v5735
    %v5744 = vmul.f32 %v5728, %v5736
    %v5745 = vmul.f32 %v5729, %v5737
    %v5746 = vmul.f32 %v5730, %v5738
    %v5747 = vmul.f32 %v5731, %v5739
    %v5748 = vmul.f32 %v5732, %v5740
    %v5749 = vmul.f32 %v5733, %v5741
    %v5750 = vld [vmem:[%s8] sm:$0xff]
    %v5751 = vld [vmem:[%s8 + $0x8] sm:$0xff]
    %v5752 = vld [vmem:[%s8 + $0x10] sm:$0xff]
    %v5753 = vld [vmem:[%s8 + $0x18] sm:$0xff]
    %v5754 = vld [vmem:[%s8 + $0x20] sm:$0xff]
    %v5755 = vld [vmem:[%s8 + $0x28] sm:$0xff]
    %v5756 = vld [vmem:[%s8 + $0x30] sm:$0xff]
    %v5757 = vld [vmem:[%s8 + $0x38] sm:$0xff]
    %v5758 = vadd.f32 %v5742, %v5750
    %v5759 = vadd.f32 %v5743, %v5751
    %v5760 = vadd.f32 %v5744, %v5752
    %v5761 = vadd.f32 %v5745, %v5753
    %v5762 = vadd.f32 %v5746, %v5754
    %v5763 = vadd.f32 %v5747, %v5755
    %v5764 = vadd.f32 %v5748, %v5756
    %v5765 = vadd.f32 %v5749, %v5757
    %v5766 = vld [vmem:[%s3] sm:$0xff]
    %v5767 = vld [vmem:[%s3 + $0x8] sm:$0xff]
    %v5768 = vld [vmem:[%s3 + $0x10] sm:$0xff]
    %v5769 = vld [vmem:[%s3 + $0x18] sm:$0xff]
    %v5770 = vld [vmem:[%s4] sm:$0x1]
    %v5772 = vlaneseq
    %v5773 = vshrl.u32 %v5772, 7
    %v5774 = vsub.s32 0, %v5773
    %v5775 = vrot.slane %v5770, %v5774
    %v5778 = vsel %vm51, %v5758, 0
    %v5781 = vsel %vm51, %v5759, 0
    %v5784 = vsel %vm51, %v5760, 0
    %v5787 = vsel %vm51, %v5761, 0
    %v5790 = vsel %vm51, %v5762, 0
    %v5793 = vsel %vm51, %v5763, 0
    %v5796 = vsel %vm51, %v5764, 0
    %v5799 = vsel %vm51, %v5765, 0
    %5801 = vmatprep.subr.mxu0 0.0
    %5802 = vmatpush1.msra.mxu0 0.0
    %5803 = vmatprep.subr.mxu0 0.0
    %5804 = vmatpush1.msra.mxu0 0.0
    %5805 = vmatprep.subr.mxu0 0.0
    %5806 = vmatpush1.msra.mxu0 0.0
    %5807 = vmatprep.subr.mxu0 0.0
    %5808 = vmatpush1.msra.mxu0 0.0
    %5809 = vmatprep.subr.mxu0 0.0
    %5810 = vmatpush1.msra.mxu0 0.0
    %5811 = vmatprep.subr.mxu0 0.0
    %5812 = vmatpush1.msra.mxu0 0.0
    %5813 = vmatprep.subr.mxu0 0.0
    %5814 = vmatpush1.msra.mxu0 0.0
    %5815 = vmatprep.subr.mxu0 0.0
    %5816 = vmatpush1.msra.mxu0 0.0
    %5817 = vmatprep.subr.mxu0 0.0
    %5818 = vmatpush1.msra.mxu0 0.0
    %5819 = vmatprep.subr.mxu0 0.0
    %5820 = vmatpush1.msra.mxu0 0.0
    %5821 = vmatprep.subr.mxu0 0.0
    %5822 = vmatpush1.msra.mxu0 0.0
    %5823 = vmatprep.subr.mxu0 0.0
    %5824 = vmatpush1.msra.mxu0 0.0
    %5825 = vmatprep.subr.mxu0 0.0
    %5826 = vmatpush1.msra.mxu0 %v5769
    %5827 = vmatprep.subr.mxu0 0.0
    %5828 = vmatpush1.msra.mxu0 %v5768
    %5829 = vmatprep.subr.mxu0 0.0
    %5830 = vmatpush1.msra.mxu0 %v5767
    %5831 = vmatprep.subr.mxu0 0.0
    %5832 = vmatpush1.msra.mxu0 %v5766
    %5833 = vmatprep.subr.mxu0 0.0
    %5834 = vmatpush2.msra.mxu0 0.0
    %5835 = vmatprep.subr.mxu0 0.0
    %5836 = vmatpush2.msra.mxu0 0.0
    %5837 = vmatprep.subr.mxu0 0.0
    %5838 = vmatpush2.msra.mxu0 0.0
    %5839 = vmatprep.subr.mxu0 0.0
    %5840 = vmatpush2.msra.mxu0 0.0
    %5841 = vmatprep.subr.mxu0 0.0
    %5842 = vmatpush2.msra.mxu0 0.0
    %5843 = vmatprep.subr.mxu0 0.0
    %5844 = vmatpush2.msra.mxu0 0.0
    %5845 = vmatprep.subr.mxu0 0.0
    %5846 = vmatpush2.msra.mxu0 0.0
    %5847 = vmatprep.subr.mxu0 0.0
    %5848 = vmatpush2.msra.mxu0 0.0
    %5849 = vmatprep.subr.mxu0 0.0
    %5850 = vmatpush2.msra.mxu0 0.0
    %5851 = vmatprep.subr.mxu0 0.0
    %5852 = vmatpush2.msra.mxu0 0.0
    %5853 = vmatprep.subr.mxu0 0.0
    %5854 = vmatpush2.msra.mxu0 0.0
    %5855 = vmatprep.subr.mxu0 0.0
    %5856 = vmatpush2.msra.mxu0 0.0
    %5857 = vmatprep.subr.mxu0 0.0
    %5858 = vmatpush2.msra.mxu0 0.0
    %5859 = vmatprep.subr.mxu0 0.0
    %5860 = vmatpush2.msra.mxu0 0.0
    %5861 = vmatprep.subr.mxu0 0.0
    %5862 = vmatpush2.msra.mxu0 0.0
    %5863 = vmatprep.subr.mxu0 0.0
    %5864 = vmatpush2.msra.mxu0 0.0
    %5865 = vmatprep.mubr.f32.mxu0 0.0
    %5866 = vmatmul.mubr.f32.gmra.mxu0 %v5778
    %v5867 = vpop.f32.mrf.mxu0
    %v5868 = vadd.f32 %v5775, %v5867
    %v5869 = vpop.f32.mrf.mxu0
    %5870 = vmatprep.mubr.f32.mxu0 0.0
    %5871 = vmatmul.mubr.f32.gmra.mxu0 %v5781
    %v5872 = vpop.f32.mrf.mxu0
    %v5873 = vadd.f32 %v5775, %v5872
    %v5874 = vpop.f32.mrf.mxu0
    %5875 = vmatprep.mubr.f32.mxu0 0.0
    %5876 = vmatmul.mubr.f32.gmra.mxu0 %v5784
    %v5877 = vpop.f32.mrf.mxu0
    %v5878 = vadd.f32 %v5775, %v5877
    %v5879 = vpop.f32.mrf.mxu0
    %5880 = vmatprep.mubr.f32.mxu0 0.0
    %5881 = vmatmul.mubr.f32.gmra.mxu0 %v5787
    %v5882 = vpop.f32.mrf.mxu0
    %v5883 = vadd.f32 %v5775, %v5882
    %v5884 = vpop.f32.mrf.mxu0
    %5885 = vmatprep.mubr.f32.mxu0 0.0
    %5886 = vmatmul.mubr.f32.gmra.mxu0 %v5790
    %v5887 = vpop.f32.mrf.mxu0
    %v5888 = vadd.f32 %v5775, %v5887
    %v5889 = vpop.f32.mrf.mxu0
    %5890 = vmatprep.mubr.f32.mxu0 0.0
    %5891 = vmatmul.mubr.f32.gmra.mxu0 %v5793
    %v5892 = vpop.f32.mrf.mxu0
    %v5893 = vadd.f32 %v5775, %v5892
    %v5894 = vpop.f32.mrf.mxu0
    %5895 = vmatprep.mubr.f32.mxu0 0.0
    %5896 = vmatmul.mubr.f32.gmra.mxu0 %v5796
    %v5897 = vpop.f32.mrf.mxu0
    %v5898 = vadd.f32 %v5775, %v5897
    %v5899 = vpop.f32.mrf.mxu0
    %5900 = vmatprep.mubr.f32.mxu0 0.0
    %5901 = vmatmul.mubr.f32.gmra.mxu0 %v5799
    %v5902 = vpop.f32.mrf.mxu0
    %v5903 = vadd.f32 %v5775, %v5902
    %v5904 = vpop.f32.mrf.mxu0
    %5905 = vdwg.mxu0
    %v5906 = vmul.f32 %v5868, 0.5
    %v5907 = vmul.f32 %v5873, 0.5
    %v5908 = vmul.f32 %v5878, 0.5
    %v5909 = vmul.f32 %v5883, 0.5
    %v5910 = vmul.f32 %v5888, 0.5
    %v5911 = vmul.f32 %v5893, 0.5
    %v5912 = vmul.f32 %v5898, 0.5
    %v5913 = vmul.f32 %v5903, 0.5
    %v5914 = vmul.f32 %v5868, %v5868
    %v5915 = vmul.f32 %v5873, %v5873
    %v5916 = vmul.f32 %v5878, %v5878
    %v5917 = vmul.f32 %v5883, %v5883
    %v5918 = vmul.f32 %v5888, %v5888
    %v5919 = vmul.f32 %v5893, %v5893
    %v5920 = vmul.f32 %v5898, %v5898
    %v5921 = vmul.f32 %v5903, %v5903
    %v5922 = vmul.f32 %v5914, %v5868
    %v5923 = vmul.f32 %v5915, %v5873
    %v5924 = vmul.f32 %v5916, %v5878
    %v5925 = vmul.f32 %v5917, %v5883
    %v5926 = vmul.f32 %v5918, %v5888
    %v5927 = vmul.f32 %v5919, %v5893
    %v5928 = vmul.f32 %v5920, %v5898
    %v5929 = vmul.f32 %v5921, %v5903
    %v5930 = vmul.f32 %v5922, 0.044715
    %v5931 = vmul.f32 %v5923, 0.044715
    %v5932 = vmul.f32 %v5924, 0.044715
    %v5933 = vmul.f32 %v5925, 0.044715
    %v5934 = vmul.f32 %v5926, 0.044715
    %v5935 = vmul.f32 %v5927, 0.044715
    %v5936 = vmul.f32 %v5928, 0.044715
    %v5937 = vmul.f32 %v5929, 0.044715
    %v5938 = vadd.f32 %v5868, %v5930
    %v5939 = vadd.f32 %v5873, %v5931
    %v5940 = vadd.f32 %v5878, %v5932
    %v5941 = vadd.f32 %v5883, %v5933
    %v5942 = vadd.f32 %v5888, %v5934
    %v5943 = vadd.f32 %v5893, %v5935
    %v5944 = vadd.f32 %v5898, %v5936
    %v5945 = vadd.f32 %v5903, %v5937
    %v5946 = vmul.f32 %v5938, 0.7978846
    %v5947 = vmul.f32 %v5939, 0.7978846
    %v5948 = vmul.f32 %v5940, 0.7978846
    %v5949 = vmul.f32 %v5941, 0.7978846
    %v5950 = vmul.f32 %v5942, 0.7978846
    %v5951 = vmul.f32 %v5943, 0.7978846
    %v5952 = vmul.f32 %v5944, 0.7978846
    %v5953 = vmul.f32 %v5945, 0.7978846
    %v5954 = vtanh.pop %v5946
    %v5955 = vtanh.pop %v5947
    %v5956 = vtanh.pop %v5948
    %v5957 = vtanh.pop %v5949
    %v5958 = vtanh.pop %v5950
    %v5959 = vtanh.pop %v5951
    %v5960 = vtanh.pop %v5952
    %v5961 = vtanh.pop %v5953
    %v5962 = vadd.f32 %v5954, 1.0
    %v5963 = vadd.f32 %v5955, 1.0
    %v5964 = vadd.f32 %v5956, 1.0
    %v5965 = vadd.f32 %v5957, 1.0
    %v5966 = vadd.f32 %v5958, 1.0
    %v5967 = vadd.f32 %v5959, 1.0
    %v5968 = vadd.f32 %v5960, 1.0
    %v5969 = vadd.f32 %v5961, 1.0
    %v5970 = vmul.f32 %v5906, %v5962
    %v5971 = vmul.f32 %v5907, %v5963
    %v5972 = vmul.f32 %v5908, %v5964
    %v5973 = vmul.f32 %v5909, %v5965
    %v5974 = vmul.f32 %v5910, %v5966
    %v5975 = vmul.f32 %v5911, %v5967
    %v5976 = vmul.f32 %v5912, %v5968
    %v5977 = vmul.f32 %v5913, %v5969
    %v5978 = vld [vmem:[%s5] sm:$0xff]
    %v5979 = vld [vmem:[%s5 + $0x8] sm:$0xff]
    %v5980 = vld [vmem:[%s5 + $0x10] sm:$0xff]
    %v5981 = vld [vmem:[%s5 + $0x18] sm:$0xff]
    %v5982 = vld [vmem:[%s5 + $0x20] sm:$0xff]
    %v5983 = vld [vmem:[%s5 + $0x28] sm:$0xff]
    %v5984 = vld [vmem:[%s5 + $0x30] sm:$0xff]
    %v5985 = vld [vmem:[%s5 + $0x38] sm:$0xff]
    %v5986 = vld [vmem:[%s6] sm:$0x1]
    %v5988 = vlaneseq
    %v5989 = vshrl.u32 %v5988, 7
    %v5990 = vsub.s32 0, %v5989
    %v5991 = vrot.slane %v5986, %v5990
    %vm5993 = vcmask 523264
    %v5995 = vsel %vm5993, %v5970, 0
    %v5998 = vsel %vm5993, %v5971, 0
    %v6001 = vsel %vm5993, %v5972, 0
    %v6004 = vsel %vm5993, %v5973, 0
    %v6007 = vsel %vm5993, %v5974, 0
    %v6010 = vsel %vm5993, %v5975, 0
    %v6013 = vsel %vm5993, %v5976, 0
    %v6016 = vsel %vm5993, %v5977, 0
    %6018 = vmatprep.subr.mxu0 0.0
    %6019 = vmatpush1.msra.mxu0 0.0
    %6020 = vmatprep.subr.mxu0 0.0
    %6021 = vmatpush1.msra.mxu0 0.0
    %6022 = vmatprep.subr.mxu0 0.0
    %6023 = vmatpush1.msra.mxu0 0.0
    %6024 = vmatprep.subr.mxu0 0.0
    %6025 = vmatpush1.msra.mxu0 0.0
    %6026 = vmatprep.subr.mxu0 0.0
    %6027 = vmatpush1.msra.mxu0 0.0
    %6028 = vmatprep.subr.mxu0 0.0
    %6029 = vmatpush1.msra.mxu0 0.0
    %6030 = vmatprep.subr.mxu0 0.0
    %6031 = vmatpush1.msra.mxu0 0.0
    %6032 = vmatprep.subr.mxu0 0.0
    %6033 = vmatpush1.msra.mxu0 0.0
    %6034 = vmatprep.subr.mxu0 0.0
    %6035 = vmatpush1.msra.mxu0 %v5985
    %6036 = vmatprep.subr.mxu0 0.0
    %6037 = vmatpush1.msra.mxu0 %v5984
    %6038 = vmatprep.subr.mxu0 0.0
    %6039 = vmatpush1.msra.mxu0 %v5983
    %6040 = vmatprep.subr.mxu0 0.0
    %6041 = vmatpush1.msra.mxu0 %v5982
    %6042 = vmatprep.subr.mxu0 0.0
    %6043 = vmatpush1.msra.mxu0 %v5981
    %6044 = vmatprep.subr.mxu0 0.0
    %6045 = vmatpush1.msra.mxu0 %v5980
    %6046 = vmatprep.subr.mxu0 0.0
    %6047 = vmatpush1.msra.mxu0 %v5979
    %6048 = vmatprep.subr.mxu0 0.0
    %6049 = vmatpush1.msra.mxu0 %v5978
    %6050 = vmatprep.subr.mxu0 0.0
    %6051 = vmatpush2.msra.mxu0 0.0
    %6052 = vmatprep.subr.mxu0 0.0
    %6053 = vmatpush2.msra.mxu0 0.0
    %6054 = vmatprep.subr.mxu0 0.0
    %6055 = vmatpush2.msra.mxu0 0.0
    %6056 = vmatprep.subr.mxu0 0.0
    %6057 = vmatpush2.msra.mxu0 0.0
    %6058 = vmatprep.subr.mxu0 0.0
    %6059 = vmatpush2.msra.mxu0 0.0
    %6060 = vmatprep.subr.mxu0 0.0
    %6061 = vmatpush2.msra.mxu0 0.0
    %6062 = vmatprep.subr.mxu0 0.0
    %6063 = vmatpush2.msra.mxu0 0.0
    %6064 = vmatprep.subr.mxu0 0.0
    %6065 = vmatpush2.msra.mxu0 0.0
    %6066 = vmatprep.subr.mxu0 0.0
    %6067 = vmatpush2.msra.mxu0 0.0
    %6068 = vmatprep.subr.mxu0 0.0
    %6069 = vmatpush2.msra.mxu0 0.0
    %6070 = vmatprep.subr.mxu0 0.0
    %6071 = vmatpush2.msra.mxu0 0.0
    %6072 = vmatprep.subr.mxu0 0.0
    %6073 = vmatpush2.msra.mxu0 0.0
    %6074 = vmatprep.subr.mxu0 0.0
    %6075 = vmatpush2.msra.mxu0 0.0
    %6076 = vmatprep.subr.mxu0 0.0
    %6077 = vmatpush2.msra.mxu0 0.0
    %6078 = vmatprep.subr.mxu0 0.0
    %6079 = vmatpush2.msra.mxu0 0.0
    %6080 = vmatprep.subr.mxu0 0.0
    %6081 = vmatpush2.msra.mxu0 0.0
    %6082 = vmatprep.mubr.f32.mxu0 0.0
    %6083 = vmatmul.mubr.f32.gmra.mxu0 %v5995
    %v6084 = vpop.f32.mrf.mxu0
    %v6085 = vadd.f32 %v5991, %v6084
    %v6086 = vpop.f32.mrf.mxu0
    %6087 = vmatprep.mubr.f32.mxu0 0.0
    %6088 = vmatmul.mubr.f32.gmra.mxu0 %v5998
    %v6089 = vpop.f32.mrf.mxu0
    %v6090 = vadd.f32 %v5991, %v6089
    %v6091 = vpop.f32.mrf.mxu0
    %6092 = vmatprep.mubr.f32.mxu0 0.0
    %6093 = vmatmul.mubr.f32.gmra.mxu0 %v6001
    %v6094 = vpop.f32.mrf.mxu0
    %v6095 = vadd.f32 %v5991, %v6094
    %v6096 = vpop.f32.mrf.mxu0
    %6097 = vmatprep.mubr.f32.mxu0 0.0
    %6098 = vmatmul.mubr.f32.gmra.mxu0 %v6004
    %v6099 = vpop.f32.mrf.mxu0
    %v6100 = vadd.f32 %v5991, %v6099
    %v6101 = vpop.f32.mrf.mxu0
    %6102 = vmatprep.mubr.f32.mxu0 0.0
    %6103 = vmatmul.mubr.f32.gmra.mxu0 %v6007
    %v6104 = vpop.f32.mrf.mxu0
    %v6105 = vadd.f32 %v5991, %v6104
    %v6106 = vpop.f32.mrf.mxu0
    %6107 = vmatprep.mubr.f32.mxu0 0.0
    %6108 = vmatmul.mubr.f32.gmra.mxu0 %v6010
    %v6109 = vpop.f32.mrf.mxu0
    %v6110 = vadd.f32 %v5991, %v6109
    %v6111 = vpop.f32.mrf.mxu0
    %6112 = vmatprep.mubr.f32.mxu0 0.0
    %6113 = vmatmul.mubr.f32.gmra.mxu0 %v6013
    %v6114 = vpop.f32.mrf.mxu0
    %v6115 = vadd.f32 %v5991, %v6114
    %v6116 = vpop.f32.mrf.mxu0
    %6117 = vmatprep.mubr.f32.mxu0 0.0
    %6118 = vmatmul.mubr.f32.gmra.mxu0 %v6016
    %v6119 = vpop.f32.mrf.mxu0
    %v6120 = vadd.f32 %v5991, %v6119
    %v6121 = vpop.f32.mrf.mxu0
    %6122 = vdwg.mxu0
    %v6123 = vadd.f32 %v5758, %v6085
    %v6124 = vadd.f32 %v5759, %v6090
    %v6125 = vadd.f32 %v5760, %v6095
    %v6126 = vadd.f32 %v5761, %v6100
    %v6127 = vadd.f32 %v5762, %v6105
    %v6128 = vadd.f32 %v5763, %v6110
    %v6129 = vadd.f32 %v5764, %v6115
    %v6130 = vadd.f32 %v5765, %v6120
    %v6131 = vld [vmem:[%s9] sm:$0xff]
    %v6132 = vld [vmem:[%s9 + $0x8] sm:$0xff]
    %v6133 = vld [vmem:[%s9 + $0x10] sm:$0xff]
    %v6134 = vld [vmem:[%s9 + $0x18] sm:$0xff]
    %v6135 = vld [vmem:[%s9 + $0x20] sm:$0xff]
    %v6136 = vld [vmem:[%s9 + $0x28] sm:$0xff]
    %v6137 = vld [vmem:[%s9 + $0x30] sm:$0xff]
    %v6138 = vld [vmem:[%s9 + $0x38] sm:$0xff]
    %v6139 = vmul.f32 %v6123, %v6131
    %v6140 = vmul.f32 %v6124, %v6132
    %v6141 = vmul.f32 %v6125, %v6133
    %v6142 = vmul.f32 %v6126, %v6134
    %v6143 = vmul.f32 %v6127, %v6135
    %v6144 = vmul.f32 %v6128, %v6136
    %v6145 = vmul.f32 %v6129, %v6137
    %v6146 = vmul.f32 %v6130, %v6138
    %v6147 = vld [vmem:[%s10] sm:$0xff]
    %v6148 = vld [vmem:[%s10 + $0x8] sm:$0xff]
    %v6149 = vld [vmem:[%s10 + $0x10] sm:$0xff]
    %v6150 = vld [vmem:[%s10 + $0x18] sm:$0xff]
    %v6151 = vld [vmem:[%s10 + $0x20] sm:$0xff]
    %v6152 = vld [vmem:[%s10 + $0x28] sm:$0xff]
    %v6153 = vld [vmem:[%s10 + $0x30] sm:$0xff]
    %v6154 = vld [vmem:[%s10 + $0x38] sm:$0xff]
    %v6155 = vadd.f32 %v6139, %v6147
    %v6156 = vadd.f32 %v6140, %v6148
    %v6157 = vadd.f32 %v6141, %v6149
    %v6158 = vadd.f32 %v6142, %v6150
    %v6159 = vadd.f32 %v6143, %v6151
    %v6160 = vadd.f32 %v6144, %v6152
    %v6161 = vadd.f32 %v6145, %v6153
    %v6162 = vadd.f32 %v6146, %v6154
    %6163 = vst.msk [vmem:[#allocation3] sm:$0xff] %vm51, %v6155
    %6164 = vst.msk [vmem:[#allocation3 + $0x8] sm:$0xff] %vm51, %v6156
    %6165 = vst.msk [vmem:[#allocation3 + $0x10] sm:$0xff] %vm51, %v6157
    %6166 = vst.msk [vmem:[#allocation3 + $0x18] sm:$0xff] %vm51, %v6158
    %6167 = vst.msk [vmem:[#allocation3 + $0x20] sm:$0xff] %vm51, %v6159
    %6168 = vst.msk [vmem:[#allocation3 + $0x28] sm:$0xff] %vm51, %v6160
    %6169 = vst.msk [vmem:[#allocation3 + $0x30] sm:$0xff] %vm51, %v6161
    %6170 = vst.msk [vmem:[#allocation3 + $0x38] sm:$0xff] %vm51, %v6162
    // Predicated region
    $region46: #{tpu_custom_call.1} parent=1 // pred_check
      _
    $region47: #{tpu_custom_call.1} parent=1 // pred_check_branch
      %6172 = sbr.rel (0) target = $region49
    $region48: #{tpu_custom_call.1} parent=1 // pred_region
      %s6174 = ssub.s32 1024, 1024
      %6175 = vsyncadd [#allocation4], %s6174
      %s6176 = sshll.u32 [#allocation3], 4
      %s6177 = int_to_ptr.vmem [resolvable:$true] %s6176
      %6182 = dma.vmem_to_hbm [thread:$0]  %s6177, 1024, %s11, [#allocation4], 128, 128, 8
    $region49: #{tpu_custom_call.1} parent=1 // pred_fallthru
      _
    // Predicated region
    $region50: #{tpu_custom_call.1} parent=1 // pred_check
      _
    $region51: #{tpu_custom_call.1} parent=1 // pred_check_branch
      %6184 = sbr.rel (0) target = $region53
    $region52: #{tpu_custom_call.1} parent=1 // pred_region
      %6185 = dma.done [#allocation4], 1024
    $region53: #{tpu_custom_call.1} parent=1 // pred_fallthru
      _
    %6186 = vsyncpa [#allocation4], 1

</llo_original>
